<compile_context>
chip_gen: v5e
topology: v5e:2x2
jax: 0.10.0
libtpu: 0.0.40
codegen_flags: <defaults>
</compile_context>

<pallas_src>
import math
from functools import partial

import jax
import jax.numpy as jnp
from jax.experimental import pallas as pl
from jax.experimental.pallas import tpu as pltpu


# ----------------------------------------------------------------------------
# Fused Pallas kernel: qkv 1x1 conv -> window attention -> proj 1x1 conv
# ----------------------------------------------------------------------------
def fused_window_attention(x_flat, w_qkv, b_qkv, w_proj, b_proj, bias, *,
                           num_heads, window_size, width):
    """x_flat:(B, C, H*W) f32 NCHW-flat.  Returns (B, C, H*W) f32.

    w_qkv:(C, 3C) bf16 (scale pre-folded into q cols), b_qkv:(1, 3C) f32,
    w_proj:(C, C) bf16, b_proj:(1, C) f32, bias:(heads, N, N) f32.
    Each grid step handles one row of windows (all heads, all W) of one batch image.
    """
    B, C, HW = x_flat.shape
    ws = window_size
    W = width
    H = HW // W
    N = ws * ws
    hd = C // num_heads
    Wn = W // ws                 # windows per grid step
    M = ws * W                   # pixels per grid step (= 128 here -> lane-dense blocks)

    def kernel(x_ref, wqkv_ref, bqkv_ref, wproj_ref, bproj_ref, bias_ref, o_ref):
        # NCHW block (C, M) -> pixel-major (M, C); bf16 inputs, f32 MXU accumulation.
        xp = jnp.transpose(x_ref[0], (1, 0)).astype(jnp.bfloat16)        # (M, C)

        # Fused QK|V 1x1 convs; softmax scale already folded into the q columns.
        qkv = jnp.dot(xp, wqkv_ref[...], preferred_element_type=jnp.float32)
        qkv = (qkv + bqkv_ref[...]).astype(jnp.bfloat16)                 # (M, 3C)

        # window_partition of this row of windows (tile-aligned reshapes + leading-dim swap).
        qkv = qkv.reshape(ws, Wn, ws, 3 * C)
        qkv = jnp.transpose(qkv, (1, 0, 2, 3)).reshape(Wn, N, 3 * C)     # (Wn, N, 3C)

        # Per-head attention; proj contraction accumulated per head (no lane concat).
        acc = jnp.zeros((Wn * N, C), jnp.float32)
        for h in range(num_heads):                                       # unrolled (4 heads)
            q = qkv[:, :, h * hd:(h + 1) * hd]                           # (Wn, N, hd)
            k = qkv[:, :, C + h * hd:C + (h + 1) * hd]
            v = qkv[:, :, 2 * C + h * hd:2 * C + (h + 1) * hd]
            s = jnp.einsum("bnd,bmd->bnm", q, k,
                           preferred_element_type=jnp.float32)           # (Wn, N, N)
            s = s + bias_ref[h][None]
            s = s - jnp.max(s, axis=-1, keepdims=True)                   # stable softmax
            p = jnp.exp(s)
            p = p * pl.reciprocal(jnp.sum(p, axis=-1, keepdims=True), approx=False)
            o_h = jnp.einsum("bnm,bmd->bnd", p.astype(v.dtype), v,
                             preferred_element_type=jnp.float32)         # (Wn, N, hd)
            # proj partial: contract this head's hd channels against its proj_w rows.
            acc = acc + jnp.dot(o_h.reshape(Wn * N, hd).astype(jnp.bfloat16),
                                wproj_ref[h * hd:(h + 1) * hd, :],
                                preferred_element_type=jnp.float32)
        acc = acc + bproj_ref[...]                                       # (Wn*N, C)

        # window_reverse back to pixel order, then (M, C) -> (C, M) lane-dense store.
        o = acc.reshape(Wn, ws, ws, C)
        o = jnp.transpose(o, (1, 0, 2, 3)).reshape(M, C)                 # pixel-major
        o_ref[0] = jnp.transpose(o, (1, 0)).astype(o_ref.dtype)          # (C, M=128 lanes)

    return pl.pallas_call(
        kernel,
        out_shape=jax.ShapeDtypeStruct((B, C, HW), jnp.float32),
        grid_spec=pltpu.PrefetchScalarGridSpec(
            num_scalar_prefetch=0,
            grid=(B, H // ws),
            in_specs=[
                pl.BlockSpec((1, C, M), lambda b, i: (b, 0, i)),           # x row-of-windows
                pl.BlockSpec((C, 3 * C), lambda b, i: (0, 0)),             # w_qkv resident
                pl.BlockSpec((1, 3 * C), lambda b, i: (0, 0)),             # b_qkv resident
                pl.BlockSpec((C, C), lambda b, i: (0, 0)),                 # w_proj resident
                pl.BlockSpec((1, C), lambda b, i: (0, 0)),                 # b_proj resident
                pl.BlockSpec((num_heads, N, N), lambda b, i: (0, 0, 0)),   # rel-pos bias resident
            ],
            out_specs=pl.BlockSpec((1, C, M), lambda b, i: (b, 0, i)),
        ),
        compiler_params=pltpu.CompilerParams(
            dimension_semantics=("parallel", "parallel")),
    )(x_flat, w_qkv, b_qkv, w_proj, b_proj, bias)


# ----------------------------------------------------------------------------
# Input-independent relative-position bias (hoisted; plain JAX, computed once)
# ----------------------------------------------------------------------------
def get_relative_positions(window_size):
    coords = jnp.stack(
        jnp.meshgrid(jnp.arange(window_size), jnp.arange(window_size), indexing="ij"))
    flat = coords.reshape(2, -1)                          # (2, N)
    rel = flat[:, :, None] - flat[:, None, :]             # (2, N, N)
    rel = rel.transpose(1, 2, 0).astype(jnp.float32)      # (N, N, 2)
    return jnp.sign(rel) * jnp.log1p(jnp.abs(rel))


def relative_position_bias(p, num_heads, window_size):
    """meta MLP: Linear(2,256) + ReLU + Linear(256, heads); returns (heads, N, N)."""
    N = window_size * window_size
    rel = get_relative_positions(window_size).reshape(N * N, 2)
    h1 = jnp.maximum(rel @ p["meta_w1"] + p["meta_b1"], 0.0)
    bias = h1 @ p["meta_w2"] + p["meta_b2"]
    return bias.reshape(N, N, num_heads).transpose(2, 0, 1).astype(jnp.float32)


# ----------------------------------------------------------------------------
# Forward (use_attn=True, conv_type=None, shift_size=0)
# ----------------------------------------------------------------------------
@partial(jax.jit, static_argnames=("dim", "num_heads", "window_size"))
def attention_forward(x, p, rel_bias, dim, num_heads, window_size):
    B, C, H, W = x.shape
    ws = window_size
    assert C == dim and H % ws == 0 and W % ws == 0, (C, H, W, ws)
    hd = dim // num_heads
    scale = hd ** (-0.5)

    # Fused QK|V weight (channel order [q|k|v], matches torch.cat([QK, V], dim=1)),
    # with the softmax scale folded into the q output channels at trace time.
    w_qkv = jnp.concatenate([p["qk_w"], p["v_w"]], axis=1)          # (C, 3C)
    b_qkv = jnp.concatenate([p["qk_b"], p["v_b"]], axis=0)          # (3C,)
    col_scale = jnp.concatenate([jnp.full((C,), scale, jnp.float32),
                                 jnp.ones((2 * C,), jnp.float32)])
    w_qkv = (w_qkv * col_scale[None, :]).astype(jnp.bfloat16)
    b_qkv = (b_qkv * col_scale).reshape(1, 3 * C)
    w_proj = p["proj_w"].astype(jnp.bfloat16)
    b_proj = p["proj_b"].reshape(1, C)

    # NCHW-flat view (free); the kernel handles the C<->pixel transpose on-chip.
    x_flat = x.reshape(B, C, H * W)
    out = fused_window_attention(x_flat, w_qkv, b_qkv, w_proj, b_proj, rel_bias,
                                 num_heads=num_heads, window_size=ws, width=W)
    return out.reshape(B, C, H, W)                                   # free reshape


# ----------------------------------------------------------------------------
# Pure-JAX f32 reference (mirrors the PyTorch math) for correctness check
# ----------------------------------------------------------------------------
def reference_forward(x, p, dim, num_heads, window_size):
    hp = jax.lax.Precision.HIGHEST
    B, C, H, W = x.shape
    ws, N, hd = window_size, window_size * window_size, dim // num_heads
    xf = x.transpose(0, 2, 3, 1).reshape(-1, C)
    V = jnp.dot(xf, p["v_w"], precision=hp) + p["v_b"]
    QK = jnp.dot(xf, p["qk_w"], precision=hp) + p["qk_b"]
    QKV = jnp.concatenate([QK, V], axis=-1)
    qkv = (QKV.reshape(B, H // ws, ws, W // ws, ws, 3 * C)
           .transpose(0, 1, 3, 2, 4, 5).reshape(-1, N, 3 * C))
    nW = qkv.shape[0]
    qkv = qkv.reshape(nW, N, 3, num_heads, hd).transpose(2, 0, 3, 1, 4)
    q, k, v = qkv[0] * (hd ** -0.5), qkv[1], qkv[2]
    attn = jnp.einsum("whnd,whmd->whnm", q, k, precision=hp)
    rel = get_relative_positions(ws).reshape(N * N, 2)
    h1 = jnp.maximum(jnp.dot(rel, p["meta_w1"], precision=hp) + p["meta_b1"], 0.0)
    bias = (jnp.dot(h1, p["meta_w2"], precision=hp) + p["meta_b2"]
            ).reshape(N, N, num_heads).transpose(2, 0, 1)
    attn = jax.nn.softmax(attn + bias[None], axis=-1)
    o = jnp.einsum("whnm,whmd->whnd", attn, v, precision=hp
                   ).transpose(0, 2, 1, 3).reshape(nW, N, C)
    out = (o.reshape(B, H // ws, W // ws, ws, ws, C)
           .transpose(0, 1, 3, 2, 4, 5).reshape(B, H, W, C))
    out = jnp.dot(out.reshape(-1, C), p["proj_w"], precision=hp) + p["proj_b"]
    return out.reshape(B, H, W, C).transpose(0, 3, 1, 2)


# ----------------------------------------------------------------------------
# Deterministic parameter init (shapes follow the nn.Module __init__)
# ----------------------------------------------------------------------------
def init_params(key, dim, num_heads, network_depth):
    ks = jax.random.split(key, 5)
    gain = (8 * network_depth) ** (-0.25)
    std_v = gain * math.sqrt(2.0 / (dim + dim))           # V / proj 1x1 convs
    std_qk = math.sqrt(2.0 / (dim + 2 * dim))             # QK 1x1 conv (out == 2*dim)
    return {
        "v_w": jax.random.normal(ks[0], (dim, dim), jnp.float32) * std_v,
        "v_b": jnp.zeros((dim,), jnp.float32),
        "qk_w": jax.random.normal(ks[1], (dim, 2 * dim), jnp.float32) * std_qk,
        "qk_b": jnp.zeros((2 * dim,), jnp.float32),
        "proj_w": jax.random.normal(ks[2], (dim, dim), jnp.float32) * std_v,
        "proj_b": jnp.zeros((dim,), jnp.float32),
        "meta_w1": jax.random.normal(ks[3], (2, 256), jnp.float32) * 0.1,
        "meta_b1": jnp.zeros((256,), jnp.float32),
        "meta_w2": jax.random.normal(ks[4], (256, num_heads), jnp.float32) * 0.1,
        "meta_b2": jnp.zeros((num_heads,), jnp.float32),
    }


if __name__ == "__main__":
    import numpy as np

    B, dim, H, W = 2, 32, 16, 16
    num_heads, window_size, network_depth = 4, 8, 4
    # config: use_attn=True, conv_type=None, shift_size=0

    key = jax.random.PRNGKey(0)
    k_x, k_p = jax.random.split(key)
    x = jax.random.normal(k_x, (B, dim, H, W), jnp.float32)
    params = init_params(k_p, dim, num_heads, network_depth)

    # Input-independent relative-position bias: computed once, reused across forwards.
    rel_bias = jax.block_until_ready(relative_position_bias(params, num_heads, window_size))

    out = attention_forward(x, params, rel_bias, dim, num_heads, window_size)
    out = jax.block_until_ready(out)

    ref = jax.block_until_ready(reference_forward(x, params, dim, num_heads, window_size))
    assert out.shape == (B, dim, H, W), out.shape
    # bf16 MXU path vs f32 HIGHEST reference -> ~1% relative error budget.
    assert np.allclose(np.asarray(out), np.asarray(ref), rtol=2e-2, atol=2e-2)

    print("KERNEL_OK")
</pallas_src>

<mosaic_0001>
module attributes {stable_mosaic.version = 11 : i64} {
  func.func @kernel(%arg0: i32, %arg1: i32, %arg2: memref<1x32x128xf32, #tpu.memory_space<vmem>>, %arg3: memref<32x96xbf16, #tpu.memory_space<vmem>>, %arg4: memref<1x96xf32, #tpu.memory_space<vmem>>, %arg5: memref<32x32xbf16, #tpu.memory_space<vmem>>, %arg6: memref<1x32xf32, #tpu.memory_space<vmem>>, %arg7: memref<4x64x64xf32, #tpu.memory_space<vmem>>, %arg8: memref<1x32x128xf32, #tpu.memory_space<vmem>>) attributes {dimension_semantics = [#tpu.dimension_semantics<parallel>, #tpu.dimension_semantics<parallel>], iteration_bounds = array<i64: 2, 2>, scalar_prefetch = 0 : i64, scratch_operands = 0 : i64, tpu.core_type = #tpu.core_type<tc>, window_params = [{transform_indices = @transform_0, window_bounds = array<i64: 1, 32, 128>}, {pipeline_mode = #tpu.pipeline_mode<synchronous>, transform_indices = @transform_1, window_bounds = array<i64: 32, 96>}, {pipeline_mode = #tpu.pipeline_mode<synchronous>, transform_indices = @transform_2, window_bounds = array<i64: 1, 96>}, {pipeline_mode = #tpu.pipeline_mode<synchronous>, transform_indices = @transform_3, window_bounds = array<i64: 32, 32>}, {pipeline_mode = #tpu.pipeline_mode<synchronous>, transform_indices = @transform_4, window_bounds = array<i64: 1, 32>}, {pipeline_mode = #tpu.pipeline_mode<synchronous>, transform_indices = @transform_5, window_bounds = array<i64: 4, 64, 64>}, {transform_indices = @transform_6, window_bounds = array<i64: 1, 32, 128>}]} {
    %c0 = arith.constant 0 : index
    %c0_0 = arith.constant 0 : index
    %c0_1 = arith.constant 0 : index
    %0 = vector.load %arg2[%c0, %c0_0, %c0_1] : memref<1x32x128xf32, #tpu.memory_space<vmem>>, vector<1x32x128xf32>
    %1 = vector.shape_cast %0 : vector<1x32x128xf32> to vector<32x128xf32>
    %2 = tpu.transpose %1, [1, 0] : vector<32x128xf32> -> vector<128x32xf32>
    %3 = arith.truncf %2 : vector<128x32xf32> to vector<128x32xbf16>
    %c0_2 = arith.constant 0 : index
    %c0_3 = arith.constant 0 : index
    %4 = vector.load %arg3[%c0_2, %c0_3] : memref<32x96xbf16, #tpu.memory_space<vmem>>, vector<32x96xbf16>
    %cst = arith.constant dense<0.000000e+00> : vector<128x96xf32>
    %5 = tpu.matmul %3, %4, %cst {dimension_numbers = #tpu.dot_dimension_numbers<[1], [0], [0], [1], [0, 0, 1, 1], [], []>} : vector<128x32xbf16>, vector<32x96xbf16>, vector<128x96xf32> -> vector<128x96xf32>
    %c0_4 = arith.constant 0 : index
    %c0_5 = arith.constant 0 : index
    %6 = vector.load %arg4[%c0_4, %c0_5] : memref<1x96xf32, #tpu.memory_space<vmem>>, vector<1x96xf32>
    %7 = vector.broadcast %6 : vector<1x96xf32> to vector<128x96xf32>
    %8 = arith.addf %5, %7 : vector<128x96xf32>
    %9 = arith.truncf %8 : vector<128x96xf32> to vector<128x96xbf16>
    %10 = vector.shape_cast %9 : vector<128x96xbf16> to vector<8x2x8x96xbf16>
    %11 = tpu.transpose %10, [1, 0, 2, 3] : vector<8x2x8x96xbf16> -> vector<2x8x8x96xbf16>
    %12 = vector.shape_cast %11 : vector<2x8x8x96xbf16> to vector<2x64x96xbf16>
    %cst_6 = arith.constant 0.000000e+00 : f32
    %13 = vector.broadcast %cst_6 : f32 to vector<128x32xf32>
    %14 = vector.extract_strided_slice %12 {offsets = [0, 0, 0], sizes = [2, 64, 8], strides = [1, 1, 1]} : vector<2x64x96xbf16> to vector<2x64x8xbf16>
    %15 = vector.extract_strided_slice %12 {offsets = [0, 0, 32], sizes = [2, 64, 8], strides = [1, 1, 1]} : vector<2x64x96xbf16> to vector<2x64x8xbf16>
    %16 = vector.extract_strided_slice %12 {offsets = [0, 0, 64], sizes = [2, 64, 8], strides = [1, 1, 1]} : vector<2x64x96xbf16> to vector<2x64x8xbf16>
    "tpu.trace_start"() <{level = 10 : i32, message = "bnd,bmd->bnm"}> : () -> ()
    %cst_7 = arith.constant dense<0.000000e+00> : vector<2x64x64xf32>
    %17 = tpu.matmul %14, %15, %cst_7 {dimension_numbers = #tpu.dot_dimension_numbers<[2], [2], [1], [1], [0, 0, 0, 1, 1, 1], [0], [0]>} : vector<2x64x8xbf16>, vector<2x64x8xbf16>, vector<2x64x64xf32> -> vector<2x64x64xf32>
    "tpu.trace_stop"() : () -> ()
    %c0_8 = arith.constant 0 : index
    %c0_9 = arith.constant 0 : index
    %c0_10 = arith.constant 0 : index
    %18 = vector.load %arg7[%c0_8, %c0_9, %c0_10] : memref<4x64x64xf32, #tpu.memory_space<vmem>>, vector<1x64x64xf32>
    %19 = vector.shape_cast %18 : vector<1x64x64xf32> to vector<64x64xf32>
    %20 = vector.shape_cast %19 : vector<64x64xf32> to vector<1x64x64xf32>
    %21 = vector.broadcast %20 : vector<1x64x64xf32> to vector<2x64x64xf32>
    %22 = arith.addf %17, %21 : vector<2x64x64xf32>
    %cst_11 = arith.constant dense<0xFF800000> : vector<2x64xf32>
    %23 = vector.multi_reduction <maximumf>, %22, %cst_11 [2] : vector<2x64x64xf32> to vector<2x64xf32>
    %24 = vector.shape_cast %23 : vector<2x64xf32> to vector<2x64x1xf32>
    %25 = vector.broadcast %24 : vector<2x64x1xf32> to vector<2x64x64xf32>
    %26 = arith.subf %22, %25 : vector<2x64x64xf32>
    %27 = math.exp %26 : vector<2x64x64xf32>
    %cst_12 = arith.constant dense<0.000000e+00> : vector<2x64xf32>
    %28 = vector.multi_reduction <add>, %27, %cst_12 [2] : vector<2x64x64xf32> to vector<2x64xf32>
    %29 = vector.shape_cast %28 : vector<2x64xf32> to vector<2x64x1xf32>
    %30 = tpu.reciprocal %29 : vector<2x64x1xf32> -> vector<2x64x1xf32>
    %31 = vector.broadcast %30 : vector<2x64x1xf32> to vector<2x64x64xf32>
    %32 = arith.mulf %27, %31 : vector<2x64x64xf32>
    %33 = arith.truncf %32 : vector<2x64x64xf32> to vector<2x64x64xbf16>
    "tpu.trace_start"() <{level = 10 : i32, message = "bnm,bmd->bnd"}> : () -> ()
    %cst_13 = arith.constant dense<0.000000e+00> : vector<2x64x8xf32>
    %34 = tpu.matmul %33, %16, %cst_13 {dimension_numbers = #tpu.dot_dimension_numbers<[2], [1], [1], [2], [0, 0, 0, 1, 1, 2], [0], [0]>} : vector<2x64x64xbf16>, vector<2x64x8xbf16>, vector<2x64x8xf32> -> vector<2x64x8xf32>
    "tpu.trace_stop"() : () -> ()
    %35 = vector.shape_cast %34 : vector<2x64x8xf32> to vector<128x8xf32>
    %36 = arith.truncf %35 : vector<128x8xf32> to vector<128x8xbf16>
    %c0_14 = arith.constant 0 : index
    %c0_15 = arith.constant 0 : index
    %37 = vector.load %arg5[%c0_14, %c0_15] : memref<32x32xbf16, #tpu.memory_space<vmem>>, vector<8x32xbf16>
    %cst_16 = arith.constant dense<0.000000e+00> : vector<128x32xf32>
    %38 = tpu.matmul %36, %37, %cst_16 {dimension_numbers = #tpu.dot_dimension_numbers<[1], [0], [0], [1], [0, 0, 1, 1], [], []>} : vector<128x8xbf16>, vector<8x32xbf16>, vector<128x32xf32> -> vector<128x32xf32>
    %39 = arith.addf %13, %38 : vector<128x32xf32>
    %40 = vector.extract_strided_slice %12 {offsets = [0, 0, 8], sizes = [2, 64, 8], strides = [1, 1, 1]} : vector<2x64x96xbf16> to vector<2x64x8xbf16>
    %41 = vector.extract_strided_slice %12 {offsets = [0, 0, 40], sizes = [2, 64, 8], strides = [1, 1, 1]} : vector<2x64x96xbf16> to vector<2x64x8xbf16>
    %42 = vector.extract_strided_slice %12 {offsets = [0, 0, 72], sizes = [2, 64, 8], strides = [1, 1, 1]} : vector<2x64x96xbf16> to vector<2x64x8xbf16>
    "tpu.trace_start"() <{level = 10 : i32, message = "bnd,bmd->bnm"}> : () -> ()
    %cst_17 = arith.constant dense<0.000000e+00> : vector<2x64x64xf32>
    %43 = tpu.matmul %40, %41, %cst_17 {dimension_numbers = #tpu.dot_dimension_numbers<[2], [2], [1], [1], [0, 0, 0, 1, 1, 1], [0], [0]>} : vector<2x64x8xbf16>, vector<2x64x8xbf16>, vector<2x64x64xf32> -> vector<2x64x64xf32>
    "tpu.trace_stop"() : () -> ()
    %c1 = arith.constant 1 : index
    %c0_18 = arith.constant 0 : index
    %c0_19 = arith.constant 0 : index
    %44 = vector.load %arg7[%c1, %c0_18, %c0_19] : memref<4x64x64xf32, #tpu.memory_space<vmem>>, vector<1x64x64xf32>
    %45 = vector.shape_cast %44 : vector<1x64x64xf32> to vector<64x64xf32>
    %46 = vector.shape_cast %45 : vector<64x64xf32> to vector<1x64x64xf32>
    %47 = vector.broadcast %46 : vector<1x64x64xf32> to vector<2x64x64xf32>
    %48 = arith.addf %43, %47 : vector<2x64x64xf32>
    %cst_20 = arith.constant dense<0xFF800000> : vector<2x64xf32>
    %49 = vector.multi_reduction <maximumf>, %48, %cst_20 [2] : vector<2x64x64xf32> to vector<2x64xf32>
    %50 = vector.shape_cast %49 : vector<2x64xf32> to vector<2x64x1xf32>
    %51 = vector.broadcast %50 : vector<2x64x1xf32> to vector<2x64x64xf32>
    %52 = arith.subf %48, %51 : vector<2x64x64xf32>
    %53 = math.exp %52 : vector<2x64x64xf32>
    %cst_21 = arith.constant dense<0.000000e+00> : vector<2x64xf32>
    %54 = vector.multi_reduction <add>, %53, %cst_21 [2] : vector<2x64x64xf32> to vector<2x64xf32>
    %55 = vector.shape_cast %54 : vector<2x64xf32> to vector<2x64x1xf32>
    %56 = tpu.reciprocal %55 : vector<2x64x1xf32> -> vector<2x64x1xf32>
    %57 = vector.broadcast %56 : vector<2x64x1xf32> to vector<2x64x64xf32>
    %58 = arith.mulf %53, %57 : vector<2x64x64xf32>
    %59 = arith.truncf %58 : vector<2x64x64xf32> to vector<2x64x64xbf16>
    "tpu.trace_start"() <{level = 10 : i32, message = "bnm,bmd->bnd"}> : () -> ()
    %cst_22 = arith.constant dense<0.000000e+00> : vector<2x64x8xf32>
    %60 = tpu.matmul %59, %42, %cst_22 {dimension_numbers = #tpu.dot_dimension_numbers<[2], [1], [1], [2], [0, 0, 0, 1, 1, 2], [0], [0]>} : vector<2x64x64xbf16>, vector<2x64x8xbf16>, vector<2x64x8xf32> -> vector<2x64x8xf32>
    "tpu.trace_stop"() : () -> ()
    %61 = vector.shape_cast %60 : vector<2x64x8xf32> to vector<128x8xf32>
    %62 = arith.truncf %61 : vector<128x8xf32> to vector<128x8xbf16>
    %c8 = arith.constant 8 : index
    %c0_23 = arith.constant 0 : index
    %63 = vector.load %arg5[%c8, %c0_23] : memref<32x32xbf16, #tpu.memory_space<vmem>>, vector<8x32xbf16>
    %cst_24 = arith.constant dense<0.000000e+00> : vector<128x32xf32>
    %64 = tpu.matmul %62, %63, %cst_24 {dimension_numbers = #tpu.dot_dimension_numbers<[1], [0], [0], [1], [0, 0, 1, 1], [], []>} : vector<128x8xbf16>, vector<8x32xbf16>, vector<128x32xf32> -> vector<128x32xf32>
    %65 = arith.addf %39, %64 : vector<128x32xf32>
    %66 = vector.extract_strided_slice %12 {offsets = [0, 0, 16], sizes = [2, 64, 8], strides = [1, 1, 1]} : vector<2x64x96xbf16> to vector<2x64x8xbf16>
    %67 = vector.extract_strided_slice %12 {offsets = [0, 0, 48], sizes = [2, 64, 8], strides = [1, 1, 1]} : vector<2x64x96xbf16> to vector<2x64x8xbf16>
    %68 = vector.extract_strided_slice %12 {offsets = [0, 0, 80], sizes = [2, 64, 8], strides = [1, 1, 1]} : vector<2x64x96xbf16> to vector<2x64x8xbf16>
    "tpu.trace_start"() <{level = 10 : i32, message = "bnd,bmd->bnm"}> : () -> ()
    %cst_25 = arith.constant dense<0.000000e+00> : vector<2x64x64xf32>
    %69 = tpu.matmul %66, %67, %cst_25 {dimension_numbers = #tpu.dot_dimension_numbers<[2], [2], [1], [1], [0, 0, 0, 1, 1, 1], [0], [0]>} : vector<2x64x8xbf16>, vector<2x64x8xbf16>, vector<2x64x64xf32> -> vector<2x64x64xf32>
    "tpu.trace_stop"() : () -> ()
    %c2 = arith.constant 2 : index
    %c0_26 = arith.constant 0 : index
    %c0_27 = arith.constant 0 : index
    %70 = vector.load %arg7[%c2, %c0_26, %c0_27] : memref<4x64x64xf32, #tpu.memory_space<vmem>>, vector<1x64x64xf32>
    %71 = vector.shape_cast %70 : vector<1x64x64xf32> to vector<64x64xf32>
    %72 = vector.shape_cast %71 : vector<64x64xf32> to vector<1x64x64xf32>
    %73 = vector.broadcast %72 : vector<1x64x64xf32> to vector<2x64x64xf32>
    %74 = arith.addf %69, %73 : vector<2x64x64xf32>
    %cst_28 = arith.constant dense<0xFF800000> : vector<2x64xf32>
    %75 = vector.multi_reduction <maximumf>, %74, %cst_28 [2] : vector<2x64x64xf32> to vector<2x64xf32>
    %76 = vector.shape_cast %75 : vector<2x64xf32> to vector<2x64x1xf32>
    %77 = vector.broadcast %76 : vector<2x64x1xf32> to vector<2x64x64xf32>
    %78 = arith.subf %74, %77 : vector<2x64x64xf32>
    %79 = math.exp %78 : vector<2x64x64xf32>
    %cst_29 = arith.constant dense<0.000000e+00> : vector<2x64xf32>
    %80 = vector.multi_reduction <add>, %79, %cst_29 [2] : vector<2x64x64xf32> to vector<2x64xf32>
    %81 = vector.shape_cast %80 : vector<2x64xf32> to vector<2x64x1xf32>
    %82 = tpu.reciprocal %81 : vector<2x64x1xf32> -> vector<2x64x1xf32>
    %83 = vector.broadcast %82 : vector<2x64x1xf32> to vector<2x64x64xf32>
    %84 = arith.mulf %79, %83 : vector<2x64x64xf32>
    %85 = arith.truncf %84 : vector<2x64x64xf32> to vector<2x64x64xbf16>
    "tpu.trace_start"() <{level = 10 : i32, message = "bnm,bmd->bnd"}> : () -> ()
    %cst_30 = arith.constant dense<0.000000e+00> : vector<2x64x8xf32>
    %86 = tpu.matmul %85, %68, %cst_30 {dimension_numbers = #tpu.dot_dimension_numbers<[2], [1], [1], [2], [0, 0, 0, 1, 1, 2], [0], [0]>} : vector<2x64x64xbf16>, vector<2x64x8xbf16>, vector<2x64x8xf32> -> vector<2x64x8xf32>
    "tpu.trace_stop"() : () -> ()
    %87 = vector.shape_cast %86 : vector<2x64x8xf32> to vector<128x8xf32>
    %88 = arith.truncf %87 : vector<128x8xf32> to vector<128x8xbf16>
    %c16 = arith.constant 16 : index
    %c0_31 = arith.constant 0 : index
    %89 = vector.load %arg5[%c16, %c0_31] : memref<32x32xbf16, #tpu.memory_space<vmem>>, vector<8x32xbf16>
    %cst_32 = arith.constant dense<0.000000e+00> : vector<128x32xf32>
    %90 = tpu.matmul %88, %89, %cst_32 {dimension_numbers = #tpu.dot_dimension_numbers<[1], [0], [0], [1], [0, 0, 1, 1], [], []>} : vector<128x8xbf16>, vector<8x32xbf16>, vector<128x32xf32> -> vector<128x32xf32>
    %91 = arith.addf %65, %90 : vector<128x32xf32>
    %92 = vector.extract_strided_slice %12 {offsets = [0, 0, 24], sizes = [2, 64, 8], strides = [1, 1, 1]} : vector<2x64x96xbf16> to vector<2x64x8xbf16>
    %93 = vector.extract_strided_slice %12 {offsets = [0, 0, 56], sizes = [2, 64, 8], strides = [1, 1, 1]} : vector<2x64x96xbf16> to vector<2x64x8xbf16>
    %94 = vector.extract_strided_slice %12 {offsets = [0, 0, 88], sizes = [2, 64, 8], strides = [1, 1, 1]} : vector<2x64x96xbf16> to vector<2x64x8xbf16>
    "tpu.trace_start"() <{level = 10 : i32, message = "bnd,bmd->bnm"}> : () -> ()
    %cst_33 = arith.constant dense<0.000000e+00> : vector<2x64x64xf32>
    %95 = tpu.matmul %92, %93, %cst_33 {dimension_numbers = #tpu.dot_dimension_numbers<[2], [2], [1], [1], [0, 0, 0, 1, 1, 1], [0], [0]>} : vector<2x64x8xbf16>, vector<2x64x8xbf16>, vector<2x64x64xf32> -> vector<2x64x64xf32>
    "tpu.trace_stop"() : () -> ()
    %c3 = arith.constant 3 : index
    %c0_34 = arith.constant 0 : index
    %c0_35 = arith.constant 0 : index
    %96 = vector.load %arg7[%c3, %c0_34, %c0_35] : memref<4x64x64xf32, #tpu.memory_space<vmem>>, vector<1x64x64xf32>
    %97 = vector.shape_cast %96 : vector<1x64x64xf32> to vector<64x64xf32>
    %98 = vector.shape_cast %97 : vector<64x64xf32> to vector<1x64x64xf32>
    %99 = vector.broadcast %98 : vector<1x64x64xf32> to vector<2x64x64xf32>
    %100 = arith.addf %95, %99 : vector<2x64x64xf32>
    %cst_36 = arith.constant dense<0xFF800000> : vector<2x64xf32>
    %101 = vector.multi_reduction <maximumf>, %100, %cst_36 [2] : vector<2x64x64xf32> to vector<2x64xf32>
    %102 = vector.shape_cast %101 : vector<2x64xf32> to vector<2x64x1xf32>
    %103 = vector.broadcast %102 : vector<2x64x1xf32> to vector<2x64x64xf32>
    %104 = arith.subf %100, %103 : vector<2x64x64xf32>
    %105 = math.exp %104 : vector<2x64x64xf32>
    %cst_37 = arith.constant dense<0.000000e+00> : vector<2x64xf32>
    %106 = vector.multi_reduction <add>, %105, %cst_37 [2] : vector<2x64x64xf32> to vector<2x64xf32>
    %107 = vector.shape_cast %106 : vector<2x64xf32> to vector<2x64x1xf32>
    %108 = tpu.reciprocal %107 : vector<2x64x1xf32> -> vector<2x64x1xf32>
    %109 = vector.broadcast %108 : vector<2x64x1xf32> to vector<2x64x64xf32>
    %110 = arith.mulf %105, %109 : vector<2x64x64xf32>
    %111 = arith.truncf %110 : vector<2x64x64xf32> to vector<2x64x64xbf16>
    "tpu.trace_start"() <{level = 10 : i32, message = "bnm,bmd->bnd"}> : () -> ()
    %cst_38 = arith.constant dense<0.000000e+00> : vector<2x64x8xf32>
    %112 = tpu.matmul %111, %94, %cst_38 {dimension_numbers = #tpu.dot_dimension_numbers<[2], [1], [1], [2], [0, 0, 0, 1, 1, 2], [0], [0]>} : vector<2x64x64xbf16>, vector<2x64x8xbf16>, vector<2x64x8xf32> -> vector<2x64x8xf32>
    "tpu.trace_stop"() : () -> ()
    %113 = vector.shape_cast %112 : vector<2x64x8xf32> to vector<128x8xf32>
    %114 = arith.truncf %113 : vector<128x8xf32> to vector<128x8xbf16>
    %c24 = arith.constant 24 : index
    %c0_39 = arith.constant 0 : index
    %115 = vector.load %arg5[%c24, %c0_39] : memref<32x32xbf16, #tpu.memory_space<vmem>>, vector<8x32xbf16>
    %cst_40 = arith.constant dense<0.000000e+00> : vector<128x32xf32>
    %116 = tpu.matmul %114, %115, %cst_40 {dimension_numbers = #tpu.dot_dimension_numbers<[1], [0], [0], [1], [0, 0, 1, 1], [], []>} : vector<128x8xbf16>, vector<8x32xbf16>, vector<128x32xf32> -> vector<128x32xf32>
    %117 = arith.addf %91, %116 : vector<128x32xf32>
    %c0_41 = arith.constant 0 : index
    %c0_42 = arith.constant 0 : index
    %118 = vector.load %arg6[%c0_41, %c0_42] : memref<1x32xf32, #tpu.memory_space<vmem>>, vector<1x32xf32>
    %119 = vector.broadcast %118 : vector<1x32xf32> to vector<128x32xf32>
    %120 = arith.addf %117, %119 : vector<128x32xf32>
    %121 = vector.shape_cast %120 : vector<128x32xf32> to vector<2x8x8x32xf32>
    %122 = tpu.transpose %121, [1, 0, 2, 3] : vector<2x8x8x32xf32> -> vector<8x2x8x32xf32>
    %123 = vector.shape_cast %122 : vector<8x2x8x32xf32> to vector<128x32xf32>
    %124 = tpu.transpose %123, [1, 0] : vector<128x32xf32> -> vector<32x128xf32>
    %c0_43 = arith.constant 0 : index
    %c0_44 = arith.constant 0 : index
    %c0_45 = arith.constant 0 : index
    %125 = vector.load %arg8[%c0_43, %c0_44, %c0_45] : memref<1x32x128xf32, #tpu.memory_space<vmem>>, vector<1x32x128xf32>
    %126 = vector.shape_cast %125 : vector<1x32x128xf32> to vector<32x128xf32>
    %127 = vector.shape_cast %124 : vector<32x128xf32> to vector<1x32x128xf32>
    tpu.vector_store %arg8[%c0_43, %c0_44, %c0_45], %127 {strides = array<i32>} : memref<1x32x128xf32, #tpu.memory_space<vmem>>, vector<1x32x128xf32>,
    return
  }
  func.func @transform_0(%arg0: i32, %arg1: i32) -> (i32, i32, i32) {
    %c0_i32 = arith.constant 0 : i32
    %c0_i32_0 = arith.constant 0 : i32
    return %arg0, %c0_i32, %arg1 : i32, i32, i32
  }
  func.func @transform_1(%arg0: i32, %arg1: i32) -> (i32, i32) {
    %c0_i32 = arith.constant 0 : i32
    %c0_i32_0 = arith.constant 0 : i32
    %c0_i32_1 = arith.constant 0 : i32
    return %c0_i32, %c0_i32_0 : i32, i32
  }
  func.func @transform_2(%arg0: i32, %arg1: i32) -> (i32, i32) {
    %c0_i32 = arith.constant 0 : i32
    %c0_i32_0 = arith.constant 0 : i32
    %c0_i32_1 = arith.constant 0 : i32
    return %c0_i32, %c0_i32_0 : i32, i32
  }
  func.func @transform_3(%arg0: i32, %arg1: i32) -> (i32, i32) {
    %c0_i32 = arith.constant 0 : i32
    %c0_i32_0 = arith.constant 0 : i32
    %c0_i32_1 = arith.constant 0 : i32
    return %c0_i32, %c0_i32_0 : i32, i32
  }
  func.func @transform_4(%arg0: i32, %arg1: i32) -> (i32, i32) {
    %c0_i32 = arith.constant 0 : i32
    %c0_i32_0 = arith.constant 0 : i32
    %c0_i32_1 = arith.constant 0 : i32
    return %c0_i32, %c0_i32_0 : i32, i32
  }
  func.func @transform_5(%arg0: i32, %arg1: i32) -> (i32, i32, i32) {
    %c0_i32 = arith.constant 0 : i32
    %c0_i32_0 = arith.constant 0 : i32
    %c0_i32_1 = arith.constant 0 : i32
    %c0_i32_2 = arith.constant 0 : i32
    return %c0_i32, %c0_i32_0, %c0_i32_1 : i32, i32, i32
  }
  func.func @transform_6(%arg0: i32, %arg1: i32) -> (i32, i32, i32) {
    %c0_i32 = arith.constant 0 : i32
    %c0_i32_0 = arith.constant 0 : i32
    return %arg0, %c0_i32, %arg1 : i32, i32, i32
  }
}

</mosaic_0001>

<llo_original>
// kernel: attention_forward.1
$region0: #{attention_forward.1}
  #allocation0 [shape = 'u32[]', space=smem, size = 0x4, offset = 0x4, fixed_abs, tag = 'smem constant byte address 0x4 - core index']
  #allocation1 [shape = 'u32[72,128]{1,0:T(1,128)}', space=vmem, size = 0x9000, scoped, tag = 'internal scratch']
  %s0 = inlined_call_operand.vmem [shape: f32[2,32,256], index: 0, kind: input, shape index: {}]
  %s1 = inlined_call_operand.vmem [shape: bf16[32,96], index: 1, kind: input, shape index: {}]
  %s2 = inlined_call_operand.vmem [shape: f32[1,96], index: 2, kind: input, shape index: {}]
  %s3 = inlined_call_operand.vmem [shape: bf16[32,32], index: 3, kind: input, shape index: {}]
  %s4 = inlined_call_operand.vmem [shape: f32[1,32], index: 4, kind: input, shape index: {}]
  %s5 = inlined_call_operand.vmem [shape: f32[4,64,64], index: 5, kind: input, shape index: {}]
  %s6 = inlined_call_operand.vmem [shape: f32[2,32,256], index: 6, kind: output, shape index: {}]
  %s7 = sld [smem:[#allocation0]]
  $region129: #{attention_forward.1} parent=0
    _
  %s9 = ssub.s32 1, %s7
  %s10 = scalar_select 0, %s9, %s7
  $region1: #{attention_forward.1} parent=0
    #allocation2 [shape = 'u8[32768]{0}', space=vmem, size = 0x8000, scoped, tag = 'input window, operand 0']
    #allocation3 [shape = 'u8[32768]{0}', space=vmem, size = 0x8000, scoped, tag = 'output window, operand 0']
    loop: start=0, step=1, limit=6
    $region2: #{attention_forward.1} parent=1 // loop_pre_header
      _
    $region3: #{attention_forward.1} parent=1 // loop_header
      %s12 = sphi 0, %s16
      %p13 = scmp.ge.s32.totalorder %s12, 6
      %s19 = sphi 0, %s31
      %s20 = sphi 0, %s27
      %s21 = sphi 0, %s19
      %s22 = sphi 0, %s20
      %s23 = sphi 0, %s21
      %s24 = sphi 0, %s22
      %s36 = sphi 0, %s38
      %s39 = sphi 0, %s36
      %s40 = sphi 0, %s39
      %s56 = sphi 0, %s40
      %s60 = sphi 0, %s60
      %s62 = sphi 0, %s60
      %s63 = sphi 0, %s62
      %s77 = sphi 0, %s63
      %s81 = sphi 0, %s81
      %s83 = sphi 0, %s81
      %s84 = sphi 0, %s83
      %s98 = sphi 0, %s84
      %s102 = sphi 0, %s102
      %s104 = sphi 0, %s102
      %s105 = sphi 0, %s104
      %s119 = sphi 0, %s105
      %s123 = sphi 0, %s123
      %s125 = sphi 0, %s123
      %s126 = sphi 0, %s125
      %s140 = sphi 0, %s126
      %s144 = sphi 0, %s144
      %s146 = sphi 0, %s144
      %s147 = sphi 0, %s146
      %s161 = sphi 0, %s147
      %s169 = sphi 0, %s171
      %s172 = sphi 0, %s169
      %s173 = sphi 0, %s172
      %s189 = sphi 0, %s173
    $region4: #{attention_forward.1} parent=1 // loop_header_branch
      %15 = sbr.rel (%p13) target = $region8
    $region5: #{attention_forward.1} parent=1 // loop_body
      %s17 = ssub.s32 %s12, 1
      %s18 = ssub.s32 %s12, 2
      %s25 = sadd.s32 1, %s20
      %p26 = scmp.ge.s32.totalorder %s25, 2
      %s27 = scalar_select %p26, 0, %s25
      %s28 = sadd.s32 1, %s19
      %s29 = scalar_select %p26, %s28, %s19
      %p30 = scmp.ge.s32.totalorder %s29, 2
      %s31 = scalar_select %p30, 0, %s29
      %s32 = ssub.s32 %s19, %s31
      %s33 = ssub.s32 %s20, %s27
      %s34 = sor.u32 %s32, %s33
      %p35 = scmp.eq.s32.totalorder %s34, 0
      %s37 = sadd.s32 %s36, 1
      %s38 = scalar_select %p35, %s36, %s37
      %p41 = pneg %p35
      %p42 = scmp.eq.s32.totalorder %s12, 3
      %p43 = por %p41, %p42
      %p44 = scmp.ne.s32.totalorder %s36, %s39
      %p45 = scmp.eq.s32.totalorder %s12, 0
      %p46 = por %p44, %p45
      %p47 = scmp.ne.s32.totalorder %s36, %s39
      %p48 = scmp.eq.s32.totalorder %s17, 3
      %p49 = por %p47, %p48
      %p50 = scmp.ne.s32.totalorder %s39, %s40
      %p51 = scmp.eq.s32.totalorder %s17, 0
      %p52 = por %p50, %p51
      %p53 = scmp.ne.s32.totalorder %s39, %s40
      %p54 = scmp.eq.s32.totalorder %s18, 3
      %p55 = por %p53, %p54
      %p57 = scmp.ne.s32.totalorder %s40, %s56
      %p58 = scmp.eq.s32.totalorder %s18, 0
      %p59 = por %p57, %p58
      %s61 = sadd.s32 %s60, 1
      %p64 = scmp.eq.s32.totalorder %s12, 3
      %p65 = scmp.ne.s32.totalorder %s60, %s62
      %p66 = scmp.eq.s32.totalorder %s12, 0
      %p67 = por %p65, %p66
      %p68 = scmp.ne.s32.totalorder %s60, %s62
      %p69 = scmp.eq.s32.totalorder %s17, 3
      %p70 = por %p68, %p69
      %p71 = scmp.ne.s32.totalorder %s62, %s63
      %p72 = scmp.eq.s32.totalorder %s17, 0
      %p73 = por %p71, %p72
      %p74 = scmp.ne.s32.totalorder %s62, %s63
      %p75 = scmp.eq.s32.totalorder %s18, 3
      %p76 = por %p74, %p75
      %p78 = scmp.ne.s32.totalorder %s63, %s77
      %p79 = scmp.eq.s32.totalorder %s18, 0
      %p80 = por %p78, %p79
      %s82 = sadd.s32 %s81, 1
      %p85 = scmp.eq.s32.totalorder %s12, 3
      %p86 = scmp.ne.s32.totalorder %s81, %s83
      %p87 = scmp.eq.s32.totalorder %s12, 0
      %p88 = por %p86, %p87
      %p89 = scmp.ne.s32.totalorder %s81, %s83
      %p90 = scmp.eq.s32.totalorder %s17, 3
      %p91 = por %p89, %p90
      %p92 = scmp.ne.s32.totalorder %s83, %s84
      %p93 = scmp.eq.s32.totalorder %s17, 0
      %p94 = por %p92, %p93
      %p95 = scmp.ne.s32.totalorder %s83, %s84
      %p96 = scmp.eq.s32.totalorder %s18, 3
      %p97 = por %p95, %p96
      %p99 = scmp.ne.s32.totalorder %s84, %s98
      %p100 = scmp.eq.s32.totalorder %s18, 0
      %p101 = por %p99, %p100
      %s103 = sadd.s32 %s102, 1
      %p106 = scmp.eq.s32.totalorder %s12, 3
      %p107 = scmp.ne.s32.totalorder %s102, %s104
      %p108 = scmp.eq.s32.totalorder %s12, 0
      %p109 = por %p107, %p108
      %p110 = scmp.ne.s32.totalorder %s102, %s104
      %p111 = scmp.eq.s32.totalorder %s17, 3
      %p112 = por %p110, %p111
      %p113 = scmp.ne.s32.totalorder %s104, %s105
      %p114 = scmp.eq.s32.totalorder %s17, 0
      %p115 = por %p113, %p114
      %p116 = scmp.ne.s32.totalorder %s104, %s105
      %p117 = scmp.eq.s32.totalorder %s18, 3
      %p118 = por %p116, %p117
      %p120 = scmp.ne.s32.totalorder %s105, %s119
      %p121 = scmp.eq.s32.totalorder %s18, 0
      %p122 = por %p120, %p121
      %s124 = sadd.s32 %s123, 1
      %p127 = scmp.eq.s32.totalorder %s12, 3
      %p128 = scmp.ne.s32.totalorder %s123, %s125
      %p129 = scmp.eq.s32.totalorder %s12, 0
      %p130 = por %p128, %p129
      %p131 = scmp.ne.s32.totalorder %s123, %s125
      %p132 = scmp.eq.s32.totalorder %s17, 3
      %p133 = por %p131, %p132
      %p134 = scmp.ne.s32.totalorder %s125, %s126
      %p135 = scmp.eq.s32.totalorder %s17, 0
      %p136 = por %p134, %p135
      %p137 = scmp.ne.s32.totalorder %s125, %s126
      %p138 = scmp.eq.s32.totalorder %s18, 3
      %p139 = por %p137, %p138
      %p141 = scmp.ne.s32.totalorder %s126, %s140
      %p142 = scmp.eq.s32.totalorder %s18, 0
      %p143 = por %p141, %p142
      %s145 = sadd.s32 %s144, 1
      %p148 = scmp.eq.s32.totalorder %s12, 3
      %p149 = scmp.ne.s32.totalorder %s144, %s146
      %p150 = scmp.eq.s32.totalorder %s12, 0
      %p151 = por %p149, %p150
      %p152 = scmp.ne.s32.totalorder %s144, %s146
      %p153 = scmp.eq.s32.totalorder %s17, 3
      %p154 = por %p152, %p153
      %p155 = scmp.ne.s32.totalorder %s146, %s147
      %p156 = scmp.eq.s32.totalorder %s17, 0
      %p157 = por %p155, %p156
      %p158 = scmp.ne.s32.totalorder %s146, %s147
      %p159 = scmp.eq.s32.totalorder %s18, 3
      %p160 = por %p158, %p159
      %p162 = scmp.ne.s32.totalorder %s147, %s161
      %p163 = scmp.eq.s32.totalorder %s18, 0
      %p164 = por %p162, %p163
      %s165 = ssub.s32 %s19, %s31
      %s166 = ssub.s32 %s20, %s27
      %s167 = sor.u32 %s165, %s166
      %p168 = scmp.eq.s32.totalorder %s167, 0
      %s170 = sadd.s32 %s169, 1
      %s171 = scalar_select %p168, %s169, %s170
      %p174 = pneg %p168
      %p175 = scmp.eq.s32.totalorder %s12, 3
      %p176 = por %p174, %p175
      %p177 = scmp.ne.s32.totalorder %s169, %s172
      %p178 = scmp.eq.s32.totalorder %s12, 0
      %p179 = por %p177, %p178
      %p180 = scmp.ne.s32.totalorder %s169, %s172
      %p181 = scmp.eq.s32.totalorder %s17, 3
      %p182 = por %p180, %p181
      %p183 = scmp.ne.s32.totalorder %s172, %s173
      %p184 = scmp.eq.s32.totalorder %s17, 0
      %p185 = por %p183, %p184
      %p186 = scmp.ne.s32.totalorder %s172, %s173
      %p187 = scmp.eq.s32.totalorder %s18, 3
      %p188 = por %p186, %p187
      %p190 = scmp.ne.s32.totalorder %s173, %s189
      %p191 = scmp.eq.s32.totalorder %s18, 0
      %p192 = por %p190, %p191
      %p193 = scmp.le.s32.totalorder 1, %s12
      %p194 = scmp.lt.s32.totalorder %s12, 5
      %p195 = pnand %p193, %p194
      %p196 = pneg %p195
      // Predicated region
      $region9: #{attention_forward.1} parent=5 // pred_check
        _
      $region10: #{attention_forward.1} parent=5 // pred_check_branch
        %198 = sbr.rel (%p195) target = $region12
      $region11: #{attention_forward.1} parent=5 // pred_region
        %s199 = ssub.s32 %s12, 1
        // Predicated region
        $region13: #{attention_forward.1} parent=11 // pred_check
          %p200 = pneg %p73
        $region14: #{attention_forward.1} parent=11 // pred_check_branch
          %202 = sbr.rel (%p200) target = $region16
        $region15: #{attention_forward.1} parent=11 // pred_region
          _
        $region16: #{attention_forward.1} parent=11 // pred_fallthru
          _
        // Predicated region
        $region17: #{attention_forward.1} parent=11 // pred_check
          %p203 = pneg %p94
        $region18: #{attention_forward.1} parent=11 // pred_check_branch
          %205 = sbr.rel (%p203) target = $region20
        $region19: #{attention_forward.1} parent=11 // pred_region
          _
        $region20: #{attention_forward.1} parent=11 // pred_fallthru
          _
        // Predicated region
        $region21: #{attention_forward.1} parent=11 // pred_check
          %p206 = pneg %p115
        $region22: #{attention_forward.1} parent=11 // pred_check_branch
          %208 = sbr.rel (%p206) target = $region24
        $region23: #{attention_forward.1} parent=11 // pred_region
          _
        $region24: #{attention_forward.1} parent=11 // pred_fallthru
          _
        // Predicated region
        $region25: #{attention_forward.1} parent=11 // pred_check
          %p209 = pneg %p136
        $region26: #{attention_forward.1} parent=11 // pred_check_branch
          %211 = sbr.rel (%p209) target = $region28
        $region27: #{attention_forward.1} parent=11 // pred_region
          _
        $region28: #{attention_forward.1} parent=11 // pred_fallthru
          _
        // Predicated region
        $region29: #{attention_forward.1} parent=11 // pred_check
          %p212 = pneg %p157
        $region30: #{attention_forward.1} parent=11 // pred_check_branch
          %214 = sbr.rel (%p212) target = $region32
        $region31: #{attention_forward.1} parent=11 // pred_region
          _
        $region32: #{attention_forward.1} parent=11 // pred_fallthru
          _
      $region12: #{attention_forward.1} parent=5 // pred_fallthru
        _
      %p215 = scmp.lt.s32.totalorder %s12, 4
      // Predicated region
      $region33: #{attention_forward.1} parent=5 // pred_check
        %p216 = pneg %p215
      $region34: #{attention_forward.1} parent=5 // pred_check_branch
        %218 = sbr.rel (%p216) target = $region36
      $region35: #{attention_forward.1} parent=5 // pred_region
        // Predicated region
        $region37: #{attention_forward.1} parent=35 // pred_check
          %p219 = pneg %p46
        $region38: #{attention_forward.1} parent=35 // pred_check_branch
          %221 = sbr.rel (%p219) target = $region40
        $region39: #{attention_forward.1} parent=35 // pred_region
          %s222 = sand.u32 %s36, 1
          %s223 = sand.u32 %s36, 1
          %s224 = smul.addr %s223, 32
          %s225 = scalar_lea.vmem [#allocation2], %s224
          %s226 = smul.addr %s19, 8
          %s227 = sadd.s32 %s20, %s226
          %s228 = smul.addr %s227, 8
          %s229 = scalar_lea.vmem %s0, %s228
          // Predicated region
          $region41: #{attention_forward.1} parent=39 // pred_check
            _
          $region42: #{attention_forward.1} parent=39 // pred_check_branch
            %231 = sbr.rel (0) target = $region44
          $region43: #{attention_forward.1} parent=39 // pred_region
            // Predicated region
            $region45: #{attention_forward.1} parent=43 // pred_check
              _
            $region46: #{attention_forward.1} parent=43 // pred_check_branch
              %233 = sbr.rel (0) target = $region48
            $region47: #{attention_forward.1} parent=43 // pred_region
              // Predicated region
              $region60: #{attention_forward.1} parent=47 // pred_check
                _
              $region61: #{attention_forward.1} parent=47 // pred_check_branch
                %255 = sbr.rel (0) target = $region63
              $region62: #{attention_forward.1} parent=47 // pred_region
                loop: start=0, step=1, limit=1
                $region64: #{attention_forward.1} parent=62 // loop_pre_header
                  _
                $region65: #{attention_forward.1} parent=62 // loop_header
                  %s257 = sphi 0, %s261
                  %p258 = scmp.ge.s32.totalorder %s257, 1
                  %s262 = sphi %s229, %s229
                  %s263 = sphi %s225, %s225
                $region66: #{attention_forward.1} parent=62 // loop_header_branch
                  %260 = sbr.rel (%p258) target = $region70
                $region67: #{attention_forward.1} parent=62 // loop_body
                  %v264 = vld [vmem:[%s262] sm:$0xff]
                  %265 = vst [vmem:[%s263] sm:$0xff] %v264
                  %v266 = vld [vmem:[%s262 + $0x10] sm:$0xff]
                  %267 = vst [vmem:[%s263 + $0x8] sm:$0xff] %v266
                  %v268 = vld [vmem:[%s262 + $0x20] sm:$0xff]
                  %269 = vst [vmem:[%s263 + $0x10] sm:$0xff] %v268
                  %v270 = vld [vmem:[%s262 + $0x30] sm:$0xff]
                  %271 = vst [vmem:[%s263 + $0x18] sm:$0xff] %v270
                $region68: #{attention_forward.1} parent=62 // loop_footer
                  %s261 = sadd.s32 1, %s257
                $region69: #{attention_forward.1} parent=62 // loop_footer_branch
                  %256 = sbr.rel target = $region65
                $region70: #{attention_forward.1} parent=62 // loop_exit
                  _
              $region63: #{attention_forward.1} parent=47 // pred_fallthru
                _
              // Predicated region
              $region71: #{attention_forward.1} parent=47 // pred_check
                _
              $region72: #{attention_forward.1} parent=47 // pred_check_branch
                %273 = sbr.rel target = $region74
              $region73: #{attention_forward.1} parent=47 // pred_region
                _
              $region74: #{attention_forward.1} parent=47 // pred_fallthru
                _
            $region48: #{attention_forward.1} parent=43 // pred_fallthru
              _
            // Predicated region
            $region49: #{attention_forward.1} parent=43 // pred_check
              _
            $region50: #{attention_forward.1} parent=43 // pred_check_branch
              %235 = sbr.rel target = $region52
            $region51: #{attention_forward.1} parent=43 // pred_region
              %s237 = ssub.s32 256, 1
              loop: start=0, step=1, limit=1
              $region53: #{attention_forward.1} parent=51 // loop_pre_header
                _
              $region54: #{attention_forward.1} parent=51 // loop_header
                %s239 = sphi 0, %s243
                %p240 = scmp.ge.s32.totalorder %s239, 1
                %s244 = sphi %s229, %s229
                %s245 = sphi %s225, %s225
              $region55: #{attention_forward.1} parent=51 // loop_header_branch
                %242 = sbr.rel (%p240) target = $region59
              $region56: #{attention_forward.1} parent=51 // loop_body
                %v246 = vld [vmem:[%s244] sm:%s237]
                %247 = vst [vmem:[%s245] sm:%s237] %v246
                %v248 = vld [vmem:[%s244 + $0x10] sm:%s237]
                %249 = vst [vmem:[%s245 + $0x8] sm:%s237] %v248
                %v250 = vld [vmem:[%s244 + $0x20] sm:%s237]
                %251 = vst [vmem:[%s245 + $0x10] sm:%s237] %v250
                %v252 = vld [vmem:[%s244 + $0x30] sm:%s237]
                %253 = vst [vmem:[%s245 + $0x18] sm:%s237] %v252
              $region57: #{attention_forward.1} parent=51 // loop_footer
                %s243 = sadd.s32 1, %s239
              $region58: #{attention_forward.1} parent=51 // loop_footer_branch
                %238 = sbr.rel target = $region54
              $region59: #{attention_forward.1} parent=51 // loop_exit
                _
            $region52: #{attention_forward.1} parent=43 // pred_fallthru
              _
          $region44: #{attention_forward.1} parent=39 // pred_fallthru
            _
          %274 = vnop
        $region40: #{attention_forward.1} parent=35 // pred_fallthru
          _
      $region36: #{attention_forward.1} parent=5 // pred_fallthru
        _
      %p275 = scmp.le.s32.totalorder 1, %s12
      %p276 = scmp.lt.s32.totalorder %s12, 5
      %p277 = pnand %p275, %p276
      %p278 = pneg %p277
      // Predicated region
      $region75: #{attention_forward.1} parent=5 // pred_check
        _
      $region76: #{attention_forward.1} parent=5 // pred_check_branch
        %280 = sbr.rel (%p277) target = $region78
      $region77: #{attention_forward.1} parent=5 // pred_region
        %s281 = ssub.s32 %s12, 1
        %s282 = sand.u32 %s39, 1
        %s283 = sand.u32 %s39, 1
        %s284 = smul.addr %s283, 32
        %s285 = scalar_lea.vmem [#allocation2], %s284
        // Predicated region
        $region79: #{attention_forward.1} parent=77 // pred_check
          %p286 = pneg %p52
        $region80: #{attention_forward.1} parent=77 // pred_check_branch
          %288 = sbr.rel (%p286) target = $region82
        $region81: #{attention_forward.1} parent=77 // pred_region
          _
        $region82: #{attention_forward.1} parent=77 // pred_fallthru
          _
        %s289 = sand.u32 %s39, 1
        %s290 = sand.u32 %s39, 1
        %s291 = smul.addr %s290, 32
        %s292 = scalar_lea.vmem [#allocation2], %s291
        %p293 = pneg %p52
        %p294 = pneg %p49
        %p295 = pneg %p73
        %p296 = pneg %p70
        %p297 = pneg %p94
        %p298 = pneg %p91
        %p299 = pneg %p115
        %p300 = pneg %p112
        %p301 = pneg %p136
        %p302 = pneg %p133
        %p303 = pneg %p157
        %p304 = pneg %p154
        %p305 = pneg %p185
        %p306 = pneg %p182
        %s307 = sand.u32 %s172, 1
        %s308 = sand.u32 %s172, 1
        %s309 = smul.addr %s308, 32
        %s310 = scalar_lea.vmem [#allocation3], %s309
        %v312 = vld [vmem:[%s285] sm:$0xff]
        %v313 = vld [vmem:[%s285 + $0x8] sm:$0xff]
        %v314 = vld [vmem:[%s285 + $0x10] sm:$0xff]
        %v315 = vld [vmem:[%s285 + $0x18] sm:$0xff]
        %316 = vxpose.xlu0.b32.start [1/16] %v312, 128
        %317 = vxpose.xlu0.b32.cont [2/16] %v313, 128
        %318 = vxpose.xlu0.b32.cont [3/16] %v314, 128
        %319 = vxpose.xlu0.b32.cont [4/16] %v315, 128
        %320 = vxpose.xlu0.b32.cont [5/16] 0.0, 128
        %321 = vxpose.xlu0.b32.cont [6/16] 0.0, 128
        %322 = vxpose.xlu0.b32.cont [7/16] 0.0, 128
        %323 = vxpose.xlu0.b32.cont [8/16] 0.0, 128
        %324 = vxpose.xlu0.b32.cont [9/16] 0.0, 128
        %325 = vxpose.xlu0.b32.cont [10/16] 0.0, 128
        %326 = vxpose.xlu0.b32.cont [11/16] 0.0, 128
        %327 = vxpose.xlu0.b32.cont [12/16] 0.0, 128
        %328 = vxpose.xlu0.b32.cont [13/16] 0.0, 128
        %329 = vxpose.xlu0.b32.cont [14/16] 0.0, 128
        %330 = vxpose.xlu0.b32.cont [15/16] 0.0, 128
        %331 = vxpose.xlu0.b32.end [16/16] 0.0, 128
        %v332 = vpop.trf.xlu0
        %v333 = vpop.trf.xlu0
        %v334 = vpop.trf.xlu0
        %v335 = vpop.trf.xlu0
        %v336 = vpop.trf.xlu0
        %v337 = vpop.trf.xlu0
        %v338 = vpop.trf.xlu0
        %v339 = vpop.trf.xlu0
        %v340 = vpop.trf.xlu0
        %v341 = vpop.trf.xlu0
        %v342 = vpop.trf.xlu0
        %v343 = vpop.trf.xlu0
        %v344 = vpop.trf.xlu0
        %v345 = vpop.trf.xlu0
        %v346 = vpop.trf.xlu0
        %v347 = vpop.trf.xlu0
        %v348 = vpack.c.bf16 %v333, %v332
        %v349 = vpack.c.bf16 %v335, %v334
        %v350 = vpack.c.bf16 %v337, %v336
        %v351 = vpack.c.bf16 %v339, %v338
        %v352 = vpack.c.bf16 %v341, %v340
        %v353 = vpack.c.bf16 %v343, %v342
        %v354 = vpack.c.bf16 %v345, %v344
        %v355 = vpack.c.bf16 %v347, %v346
        %v356 = vld [vmem:[%s1] sm:$0xf]
        %v357 = vld [vmem:[%s1 + $0x4] sm:$0xf]
        %v358 = vld [vmem:[%s1 + $0x8] sm:$0xf]
        %v359 = vld [vmem:[%s1 + $0xc] sm:$0xf]
        %v360 = vld [vmem:[%s2] sm:$0x1]
        %v362 = vperm.slane %v360, 0
        %v368 = vunpack.c.l.b16 %v356
        %v369 = vunpack.c.l.b16 %v357
        %v370 = vunpack.c.l.b16 %v358
        %v371 = vunpack.c.l.b16 %v359
        %v372 = vpack.c.b16 %v369, %v368
        %v373 = vpack.c.b16 %v371, %v370
        %vm376 = vcmask 261120
        %v378 = vsel %vm376, %v348, 0
        %v381 = vsel %vm376, %v349, 0
        %v384 = vsel %vm376, %v350, 0
        %v387 = vsel %vm376, %v351, 0
        %v390 = vsel %vm376, %v352, 0
        %v393 = vsel %vm376, %v353, 0
        %v396 = vsel %vm376, %v354, 0
        %v399 = vsel %vm376, %v355, 0
        %401 = vmatpush.bf16.msra.mxu0 0
        %402 = vmatpush.bf16.msra.mxu0 0
        %403 = vmatpush.bf16.msra.mxu0 0
        %404 = vmatpush.bf16.msra.mxu0 0
        %405 = vmatpush.bf16.msra.mxu0 0
        %406 = vmatpush.bf16.msra.mxu0 0
        %407 = vmatpush.bf16.msra.mxu0 %v373
        %408 = vmatpush.bf16.msra.mxu0 %v372
        %409 = vmatmul.bf16.gmra.mxu0 %v378
        %v410 = vpop.f32.mrf.mxu0
        %v411 = vadd.f32 %v362, %v410
        %v412 = vpop.f32.mrf.mxu0
        %v413 = vadd.f32 %v362, %v412
        %414 = vmatmul.bf16.gmra.mxu0 %v381
        %v415 = vpop.f32.mrf.mxu0
        %v416 = vadd.f32 %v362, %v415
        %v417 = vpop.f32.mrf.mxu0
        %v418 = vadd.f32 %v362, %v417
        %419 = vmatmul.bf16.gmra.mxu0 %v384
        %v420 = vpop.f32.mrf.mxu0
        %v421 = vadd.f32 %v362, %v420
        %v422 = vpop.f32.mrf.mxu0
        %v423 = vadd.f32 %v362, %v422
        %424 = vmatmul.bf16.gmra.mxu0 %v387
        %v425 = vpop.f32.mrf.mxu0
        %v426 = vadd.f32 %v362, %v425
        %v427 = vpop.f32.mrf.mxu0
        %v428 = vadd.f32 %v362, %v427
        %429 = vmatmul.bf16.gmra.mxu0 %v390
        %v430 = vpop.f32.mrf.mxu0
        %v431 = vadd.f32 %v362, %v430
        %v432 = vpop.f32.mrf.mxu0
        %v433 = vadd.f32 %v362, %v432
        %434 = vmatmul.bf16.gmra.mxu0 %v393
        %v435 = vpop.f32.mrf.mxu0
        %v436 = vadd.f32 %v362, %v435
        %v437 = vpop.f32.mrf.mxu0
        %v438 = vadd.f32 %v362, %v437
        %439 = vmatmul.bf16.gmra.mxu0 %v396
        %v440 = vpop.f32.mrf.mxu0
        %v441 = vadd.f32 %v362, %v440
        %v442 = vpop.f32.mrf.mxu0
        %v443 = vadd.f32 %v362, %v442
        %444 = vmatmul.bf16.gmra.mxu0 %v399
        %v445 = vpop.f32.mrf.mxu0
        %v446 = vadd.f32 %v362, %v445
        %v447 = vpop.f32.mrf.mxu0
        %v448 = vadd.f32 %v362, %v447
        %449 = vdwg.mxu0
        %v450 = vpack.c.bf16 %v411, %v411
        %v451 = vpack.c.bf16 %v413, %v413
        %v452 = vpack.c.bf16 %v416, %v416
        %v453 = vpack.c.bf16 %v418, %v418
        %v454 = vpack.c.bf16 %v421, %v421
        %v455 = vpack.c.bf16 %v423, %v423
        %v456 = vpack.c.bf16 %v426, %v426
        %v457 = vpack.c.bf16 %v428, %v428
        %v458 = vpack.c.bf16 %v431, %v431
        %v459 = vpack.c.bf16 %v433, %v433
        %v460 = vpack.c.bf16 %v436, %v436
        %v461 = vpack.c.bf16 %v438, %v438
        %v462 = vpack.c.bf16 %v441, %v441
        %v463 = vpack.c.bf16 %v443, %v443
        %v464 = vpack.c.bf16 %v446, %v446
        %v465 = vpack.c.bf16 %v448, %v448
        %v466 = vld [vmem:[%s5] sm:$0xff]
        %v467 = vld [vmem:[%s5 + $0x8] sm:$0xff]
        %v468 = vld [vmem:[%s5 + $0x10] sm:$0xff]
        %v469 = vld [vmem:[%s5 + $0x18] sm:$0xff]
        %v470 = vld [vmem:[%s5 + $0x20] sm:$0xff]
        %v471 = vld [vmem:[%s5 + $0x28] sm:$0xff]
        %v472 = vld [vmem:[%s5 + $0x30] sm:$0xff]
        %v473 = vld [vmem:[%s5 + $0x38] sm:$0xff]
        %v482 = vunpack.c.l.b16 %v450
        %v483 = vunpack.c.l.b16 %v452
        %v484 = vunpack.c.l.b16 %v454
        %v485 = vunpack.c.l.b16 %v456
        %v486 = vunpack.c.l.b16 %v458
        %v487 = vunpack.c.l.b16 %v460
        %v488 = vunpack.c.l.b16 %v462
        %v489 = vunpack.c.l.b16 %v464
        %v490 = vpack.c.b16 %v483, %v482
        %v491 = vpack.c.b16 %v485, %v484
        %v492 = vpack.c.b16 %v487, %v486
        %v493 = vpack.c.b16 %v489, %v488
        %494 = vrot.lane.b32.xlu0 %v490, 96
        %v495 = vpop.permute.xlu0 %494
        %496 = vrot.lane.b32.xlu0 %v491, 96
        %v497 = vpop.permute.xlu0 %496
        %498 = vrot.lane.b32.xlu0 %v492, 96
        %v499 = vpop.permute.xlu0 %498
        %500 = vrot.lane.b32.xlu0 %v493, 96
        %v501 = vpop.permute.xlu0 %500
        %vm502 = vcmask 64512
        %v504 = vsel %vm502, %v490, 0
        %v507 = vsel %vm502, %v491, 0
        %v510 = vsel %vm502, %v492, 0
        %v513 = vsel %vm502, %v493, 0
        %v516 = vsel %vm502, %v495, 0
        %v519 = vsel %vm502, %v497, 0
        %v522 = vsel %vm502, %v499, 0
        %v525 = vsel %vm502, %v501, 0
        %527 = vmatpush.bf16.xpose.msra.mxu0 0
        %528 = vmatpush.bf16.xpose.msra.mxu0 0
        %529 = vmatpush.bf16.xpose.msra.mxu0 0
        %530 = vmatpush.bf16.xpose.msra.mxu0 0
        %531 = vmatpush.bf16.xpose.msra.mxu0 %v525
        %532 = vmatpush.bf16.xpose.msra.mxu0 %v522
        %533 = vmatpush.bf16.xpose.msra.mxu0 %v519
        %534 = vmatpush.bf16.xpose.msra.mxu0 %v516
        %535 = vmatmul.bf16.gmra.mxu0 %v504
        %v536 = vpop.f32.mrf.mxu0
        %v537 = vadd.f32 %v466, %v536
        %v538 = vpop.f32.mrf.mxu0
        %v539 = vadd.f32 %v467, %v538
        %540 = vmatmul.bf16.gmra.mxu0 %v507
        %v541 = vpop.f32.mrf.mxu0
        %v542 = vadd.f32 %v468, %v541
        %v543 = vpop.f32.mrf.mxu0
        %v544 = vadd.f32 %v469, %v543
        %545 = vmatmul.bf16.gmra.mxu0 %v510
        %v546 = vpop.f32.mrf.mxu0
        %v547 = vadd.f32 %v470, %v546
        %v548 = vpop.f32.mrf.mxu0
        %v549 = vadd.f32 %v471, %v548
        %550 = vmatmul.bf16.gmra.mxu0 %v513
        %v551 = vpop.f32.mrf.mxu0
        %v552 = vadd.f32 %v472, %v551
        %v553 = vpop.f32.mrf.mxu0
        %v554 = vadd.f32 %v473, %v553
        %555 = vdwg.mxu0
        %v564 = vunpack.c.l.b16 %v451
        %v565 = vunpack.c.l.b16 %v453
        %v566 = vunpack.c.l.b16 %v455
        %v567 = vunpack.c.l.b16 %v457
        %v568 = vunpack.c.l.b16 %v459
        %v569 = vunpack.c.l.b16 %v461
        %v570 = vunpack.c.l.b16 %v463
        %v571 = vunpack.c.l.b16 %v465
        %v572 = vpack.c.b16 %v565, %v564
        %v573 = vpack.c.b16 %v567, %v566
        %v574 = vpack.c.b16 %v569, %v568
        %v575 = vpack.c.b16 %v571, %v570
        %576 = vrot.lane.b32.xlu0 %v572, 96
        %v577 = vpop.permute.xlu0 %576
        %578 = vrot.lane.b32.xlu0 %v573, 96
        %v579 = vpop.permute.xlu0 %578
        %580 = vrot.lane.b32.xlu0 %v574, 96
        %v581 = vpop.permute.xlu0 %580
        %582 = vrot.lane.b32.xlu0 %v575, 96
        %v583 = vpop.permute.xlu0 %582
        %v585 = vsel %vm502, %v572, 0
        %v588 = vsel %vm502, %v573, 0
        %v591 = vsel %vm502, %v574, 0
        %v594 = vsel %vm502, %v575, 0
        %v597 = vsel %vm502, %v577, 0
        %v600 = vsel %vm502, %v579, 0
        %v603 = vsel %vm502, %v581, 0
        %v606 = vsel %vm502, %v583, 0
        %608 = vmatpush.bf16.xpose.msra.mxu0 0
        %609 = vmatpush.bf16.xpose.msra.mxu0 0
        %610 = vmatpush.bf16.xpose.msra.mxu0 0
        %611 = vmatpush.bf16.xpose.msra.mxu0 0
        %612 = vmatpush.bf16.xpose.msra.mxu0 %v606
        %613 = vmatpush.bf16.xpose.msra.mxu0 %v603
        %614 = vmatpush.bf16.xpose.msra.mxu0 %v600
        %615 = vmatpush.bf16.xpose.msra.mxu0 %v597
        %616 = vmatmul.bf16.gmra.mxu0 %v585
        %v617 = vpop.f32.mrf.mxu0
        %v618 = vadd.f32 %v466, %v617
        %v619 = vpop.f32.mrf.mxu0
        %v620 = vadd.f32 %v467, %v619
        %621 = vmatmul.bf16.gmra.mxu0 %v588
        %v622 = vpop.f32.mrf.mxu0
        %v623 = vadd.f32 %v468, %v622
        %v624 = vpop.f32.mrf.mxu0
        %v625 = vadd.f32 %v469, %v624
        %626 = vmatmul.bf16.gmra.mxu0 %v591
        %v627 = vpop.f32.mrf.mxu0
        %v628 = vadd.f32 %v470, %v627
        %v629 = vpop.f32.mrf.mxu0
        %v630 = vadd.f32 %v471, %v629
        %631 = vmatmul.bf16.gmra.mxu0 %v594
        %v632 = vpop.f32.mrf.mxu0
        %v633 = vadd.f32 %v472, %v632
        %v634 = vpop.f32.mrf.mxu0
        %v635 = vadd.f32 %v473, %v634
        %636 = vdwg.mxu0
        %vm637 = vcmask 523264
        %v638 = vsel %vm637, %v537, -inf
        %639 = vmax.xlane.f32.xlu0 %v638
        %v640 = vpop.xlane.xlu0 %639
        %v641 = vsel %vm637, %v539, -inf
        %642 = vmax.xlane.f32.xlu0 %v641
        %v643 = vpop.xlane.xlu0 %642
        %v644 = vsel %vm637, %v542, -inf
        %645 = vmax.xlane.f32.xlu0 %v644
        %v646 = vpop.xlane.xlu0 %645
        %v647 = vsel %vm637, %v544, -inf
        %648 = vmax.xlane.f32.xlu0 %v647
        %v649 = vpop.xlane.xlu0 %648
        %v650 = vsel %vm637, %v547, -inf
        %651 = vmax.xlane.f32.xlu0 %v650
        %v652 = vpop.xlane.xlu0 %651
        %v653 = vsel %vm637, %v549, -inf
        %654 = vmax.xlane.f32.xlu0 %v653
        %v655 = vpop.xlane.xlu0 %654
        %v656 = vsel %vm637, %v552, -inf
        %657 = vmax.xlane.f32.xlu0 %v656
        %v658 = vpop.xlane.xlu0 %657
        %v659 = vsel %vm637, %v554, -inf
        %660 = vmax.xlane.f32.xlu0 %v659
        %v661 = vpop.xlane.xlu0 %660
        %v662 = vsel %vm637, %v618, -inf
        %663 = vmax.xlane.f32.xlu0 %v662
        %v664 = vpop.xlane.xlu0 %663
        %v665 = vsel %vm637, %v620, -inf
        %666 = vmax.xlane.f32.xlu0 %v665
        %v667 = vpop.xlane.xlu0 %666
        %v668 = vsel %vm637, %v623, -inf
        %669 = vmax.xlane.f32.xlu0 %v668
        %v670 = vpop.xlane.xlu0 %669
        %v671 = vsel %vm637, %v625, -inf
        %672 = vmax.xlane.f32.xlu0 %v671
        %v673 = vpop.xlane.xlu0 %672
        %v674 = vsel %vm637, %v628, -inf
        %675 = vmax.xlane.f32.xlu0 %v674
        %v676 = vpop.xlane.xlu0 %675
        %v677 = vsel %vm637, %v630, -inf
        %678 = vmax.xlane.f32.xlu0 %v677
        %v679 = vpop.xlane.xlu0 %678
        %v680 = vsel %vm637, %v633, -inf
        %681 = vmax.xlane.f32.xlu0 %v680
        %v682 = vpop.xlane.xlu0 %681
        %v683 = vsel %vm637, %v635, -inf
        %684 = vmax.xlane.f32.xlu0 %v683
        %v685 = vpop.xlane.xlu0 %684
        %v686 = vsub.f32 %v537, %v640
        %v687 = vsub.f32 %v539, %v643
        %v688 = vsub.f32 %v542, %v646
        %v689 = vsub.f32 %v544, %v649
        %v690 = vsub.f32 %v547, %v652
        %v691 = vsub.f32 %v549, %v655
        %v692 = vsub.f32 %v552, %v658
        %v693 = vsub.f32 %v554, %v661
        %v694 = vsub.f32 %v618, %v664
        %v695 = vsub.f32 %v620, %v667
        %v696 = vsub.f32 %v623, %v670
        %v697 = vsub.f32 %v625, %v673
        %v698 = vsub.f32 %v628, %v676
        %v699 = vsub.f32 %v630, %v679
        %v700 = vsub.f32 %v633, %v682
        %v701 = vsub.f32 %v635, %v685
        %v702 = vmul.f32 %v686, 1.442695
        %v703 = vpow.pop %v702
        %v704 = vmul.f32 %v687, 1.442695
        %v705 = vpow.pop %v704
        %v706 = vmul.f32 %v688, 1.442695
        %v707 = vpow.pop %v706
        %v708 = vmul.f32 %v689, 1.442695
        %v709 = vpow.pop %v708
        %v710 = vmul.f32 %v690, 1.442695
        %v711 = vpow.pop %v710
        %v712 = vmul.f32 %v691, 1.442695
        %v713 = vpow.pop %v712
        %v714 = vmul.f32 %v692, 1.442695
        %v715 = vpow.pop %v714
        %v716 = vmul.f32 %v693, 1.442695
        %v717 = vpow.pop %v716
        %v718 = vmul.f32 %v694, 1.442695
        %v719 = vpow.pop %v718
        %v720 = vmul.f32 %v695, 1.442695
        %v721 = vpow.pop %v720
        %v722 = vmul.f32 %v696, 1.442695
        %v723 = vpow.pop %v722
        %v724 = vmul.f32 %v697, 1.442695
        %v725 = vpow.pop %v724
        %v726 = vmul.f32 %v698, 1.442695
        %v727 = vpow.pop %v726
        %v728 = vmul.f32 %v699, 1.442695
        %v729 = vpow.pop %v728
        %v730 = vmul.f32 %v700, 1.442695
        %v731 = vpow.pop %v730
        %v732 = vmul.f32 %v701, 1.442695
        %v733 = vpow.pop %v732
        %v734 = vsel %vm637, %v703, 0.0
        %735 = vadd.xlane.f32.xlu0 %v734
        %v736 = vpop.xlane.xlu0 %735
        %v737 = vsel %vm637, %v705, 0.0
        %738 = vadd.xlane.f32.xlu0 %v737
        %v739 = vpop.xlane.xlu0 %738
        %v740 = vsel %vm637, %v707, 0.0
        %741 = vadd.xlane.f32.xlu0 %v740
        %v742 = vpop.xlane.xlu0 %741
        %v743 = vsel %vm637, %v709, 0.0
        %744 = vadd.xlane.f32.xlu0 %v743
        %v745 = vpop.xlane.xlu0 %744
        %v746 = vsel %vm637, %v711, 0.0
        %747 = vadd.xlane.f32.xlu0 %v746
        %v748 = vpop.xlane.xlu0 %747
        %v749 = vsel %vm637, %v713, 0.0
        %750 = vadd.xlane.f32.xlu0 %v749
        %v751 = vpop.xlane.xlu0 %750
        %v752 = vsel %vm637, %v715, 0.0
        %753 = vadd.xlane.f32.xlu0 %v752
        %v754 = vpop.xlane.xlu0 %753
        %v755 = vsel %vm637, %v717, 0.0
        %756 = vadd.xlane.f32.xlu0 %v755
        %v757 = vpop.xlane.xlu0 %756
        %v758 = vsel %vm637, %v719, 0.0
        %759 = vadd.xlane.f32.xlu0 %v758
        %v760 = vpop.xlane.xlu0 %759
        %v761 = vsel %vm637, %v721, 0.0
        %762 = vadd.xlane.f32.xlu0 %v761
        %v763 = vpop.xlane.xlu0 %762
        %v764 = vsel %vm637, %v723, 0.0
        %765 = vadd.xlane.f32.xlu0 %v764
        %v766 = vpop.xlane.xlu0 %765
        %v767 = vsel %vm637, %v725, 0.0
        %768 = vadd.xlane.f32.xlu0 %v767
        %v769 = vpop.xlane.xlu0 %768
        %v770 = vsel %vm637, %v727, 0.0
        %771 = vadd.xlane.f32.xlu0 %v770
        %v772 = vpop.xlane.xlu0 %771
        %v773 = vsel %vm637, %v729, 0.0
        %774 = vadd.xlane.f32.xlu0 %v773
        %v775 = vpop.xlane.xlu0 %774
        %v776 = vsel %vm637, %v731, 0.0
        %777 = vadd.xlane.f32.xlu0 %v776
        %v778 = vpop.xlane.xlu0 %777
        %v779 = vsel %vm637, %v733, 0.0
        %780 = vadd.xlane.f32.xlu0 %v779
        %v781 = vpop.xlane.xlu0 %780
        %v782 = vrcp.pop %v736
        %v783 = vmul.f32 %v736, %v782
        %v784 = vsub.f32 1.0, %v783
        %v785 = vmul.f32 %v782, %v784
        %v786 = vadd.f32 %v782, %v785
        %vm787 = vweird.f32 %v736
        %vm788 = vweird.f32 %v782
        %vm789 = vmor %vm787, %vm788
        %v790 = vsel %vm789, %v782, %v786
        %v791 = vand.u32 2147483647, %v736
        %vm792 = vcmp.eq.f32.partialorder %v791, 8.507059e+37
        %v793 = vand.u32 %v736, 2147483648
        %v794 = vor.u32 1.1754944e-38, %v793
        %v795 = vsel %vm792, %v794, %v790
        %v796 = vrcp.pop %v739
        %v797 = vmul.f32 %v739, %v796
        %v798 = vsub.f32 1.0, %v797
        %v799 = vmul.f32 %v796, %v798
        %v800 = vadd.f32 %v796, %v799
        %vm801 = vweird.f32 %v739
        %vm802 = vweird.f32 %v796
        %vm803 = vmor %vm801, %vm802
        %v804 = vsel %vm803, %v796, %v800
        %v805 = vand.u32 2147483647, %v739
        %vm806 = vcmp.eq.f32.partialorder %v805, 8.507059e+37
        %v807 = vand.u32 %v739, 2147483648
        %v808 = vor.u32 1.1754944e-38, %v807
        %v809 = vsel %vm806, %v808, %v804
        %v810 = vrcp.pop %v742
        %v811 = vmul.f32 %v742, %v810
        %v812 = vsub.f32 1.0, %v811
        %v813 = vmul.f32 %v810, %v812
        %v814 = vadd.f32 %v810, %v813
        %vm815 = vweird.f32 %v742
        %vm816 = vweird.f32 %v810
        %vm817 = vmor %vm815, %vm816
        %v818 = vsel %vm817, %v810, %v814
        %v819 = vand.u32 2147483647, %v742
        %vm820 = vcmp.eq.f32.partialorder %v819, 8.507059e+37
        %v821 = vand.u32 %v742, 2147483648
        %v822 = vor.u32 1.1754944e-38, %v821
        %v823 = vsel %vm820, %v822, %v818
        %v824 = vrcp.pop %v745
        %v825 = vmul.f32 %v745, %v824
        %v826 = vsub.f32 1.0, %v825
        %v827 = vmul.f32 %v824, %v826
        %v828 = vadd.f32 %v824, %v827
        %vm829 = vweird.f32 %v745
        %vm830 = vweird.f32 %v824
        %vm831 = vmor %vm829, %vm830
        %v832 = vsel %vm831, %v824, %v828
        %v833 = vand.u32 2147483647, %v745
        %vm834 = vcmp.eq.f32.partialorder %v833, 8.507059e+37
        %v835 = vand.u32 %v745, 2147483648
        %v836 = vor.u32 1.1754944e-38, %v835
        %v837 = vsel %vm834, %v836, %v832
        %v838 = vrcp.pop %v748
        %v839 = vmul.f32 %v748, %v838
        %v840 = vsub.f32 1.0, %v839
        %v841 = vmul.f32 %v838, %v840
        %v842 = vadd.f32 %v838, %v841
        %vm843 = vweird.f32 %v748
        %vm844 = vweird.f32 %v838
        %vm845 = vmor %vm843, %vm844
        %v846 = vsel %vm845, %v838, %v842
        %v847 = vand.u32 2147483647, %v748
        %vm848 = vcmp.eq.f32.partialorder %v847, 8.507059e+37
        %v849 = vand.u32 %v748, 2147483648
        %v850 = vor.u32 1.1754944e-38, %v849
        %v851 = vsel %vm848, %v850, %v846
        %v852 = vrcp.pop %v751
        %v853 = vmul.f32 %v751, %v852
        %v854 = vsub.f32 1.0, %v853
        %v855 = vmul.f32 %v852, %v854
        %v856 = vadd.f32 %v852, %v855
        %vm857 = vweird.f32 %v751
        %vm858 = vweird.f32 %v852
        %vm859 = vmor %vm857, %vm858
        %v860 = vsel %vm859, %v852, %v856
        %v861 = vand.u32 2147483647, %v751
        %vm862 = vcmp.eq.f32.partialorder %v861, 8.507059e+37
        %v863 = vand.u32 %v751, 2147483648
        %v864 = vor.u32 1.1754944e-38, %v863
        %v865 = vsel %vm862, %v864, %v860
        %v866 = vrcp.pop %v754
        %v867 = vmul.f32 %v754, %v866
        %v868 = vsub.f32 1.0, %v867
        %v869 = vmul.f32 %v866, %v868
        %v870 = vadd.f32 %v866, %v869
        %vm871 = vweird.f32 %v754
        %vm872 = vweird.f32 %v866
        %vm873 = vmor %vm871, %vm872
        %v874 = vsel %vm873, %v866, %v870
        %v875 = vand.u32 2147483647, %v754
        %vm876 = vcmp.eq.f32.partialorder %v875, 8.507059e+37
        %v877 = vand.u32 %v754, 2147483648
        %v878 = vor.u32 1.1754944e-38, %v877
        %v879 = vsel %vm876, %v878, %v874
        %v880 = vrcp.pop %v757
        %v881 = vmul.f32 %v757, %v880
        %v882 = vsub.f32 1.0, %v881
        %v883 = vmul.f32 %v880, %v882
        %v884 = vadd.f32 %v880, %v883
        %vm885 = vweird.f32 %v757
        %vm886 = vweird.f32 %v880
        %vm887 = vmor %vm885, %vm886
        %v888 = vsel %vm887, %v880, %v884
        %v889 = vand.u32 2147483647, %v757
        %vm890 = vcmp.eq.f32.partialorder %v889, 8.507059e+37
        %v891 = vand.u32 %v757, 2147483648
        %v892 = vor.u32 1.1754944e-38, %v891
        %v893 = vsel %vm890, %v892, %v888
        %v894 = vrcp.pop %v760
        %v895 = vmul.f32 %v760, %v894
        %v896 = vsub.f32 1.0, %v895
        %v897 = vmul.f32 %v894, %v896
        %v898 = vadd.f32 %v894, %v897
        %vm899 = vweird.f32 %v760
        %vm900 = vweird.f32 %v894
        %vm901 = vmor %vm899, %vm900
        %v902 = vsel %vm901, %v894, %v898
        %v903 = vand.u32 2147483647, %v760
        %vm904 = vcmp.eq.f32.partialorder %v903, 8.507059e+37
        %v905 = vand.u32 %v760, 2147483648
        %v906 = vor.u32 1.1754944e-38, %v905
        %v907 = vsel %vm904, %v906, %v902
        %v908 = vrcp.pop %v763
        %v909 = vmul.f32 %v763, %v908
        %v910 = vsub.f32 1.0, %v909
        %v911 = vmul.f32 %v908, %v910
        %v912 = vadd.f32 %v908, %v911
        %vm913 = vweird.f32 %v763
        %vm914 = vweird.f32 %v908
        %vm915 = vmor %vm913, %vm914
        %v916 = vsel %vm915, %v908, %v912
        %v917 = vand.u32 2147483647, %v763
        %vm918 = vcmp.eq.f32.partialorder %v917, 8.507059e+37
        %v919 = vand.u32 %v763, 2147483648
        %v920 = vor.u32 1.1754944e-38, %v919
        %v921 = vsel %vm918, %v920, %v916
        %v922 = vrcp.pop %v766
        %v923 = vmul.f32 %v766, %v922
        %v924 = vsub.f32 1.0, %v923
        %v925 = vmul.f32 %v922, %v924
        %v926 = vadd.f32 %v922, %v925
        %vm927 = vweird.f32 %v766
        %vm928 = vweird.f32 %v922
        %vm929 = vmor %vm927, %vm928
        %v930 = vsel %vm929, %v922, %v926
        %v931 = vand.u32 2147483647, %v766
        %vm932 = vcmp.eq.f32.partialorder %v931, 8.507059e+37
        %v933 = vand.u32 %v766, 2147483648
        %v934 = vor.u32 1.1754944e-38, %v933
        %v935 = vsel %vm932, %v934, %v930
        %v936 = vrcp.pop %v769
        %v937 = vmul.f32 %v769, %v936
        %v938 = vsub.f32 1.0, %v937
        %v939 = vmul.f32 %v936, %v938
        %v940 = vadd.f32 %v936, %v939
        %vm941 = vweird.f32 %v769
        %vm942 = vweird.f32 %v936
        %vm943 = vmor %vm941, %vm942
        %v944 = vsel %vm943, %v936, %v940
        %v945 = vand.u32 2147483647, %v769
        %vm946 = vcmp.eq.f32.partialorder %v945, 8.507059e+37
        %v947 = vand.u32 %v769, 2147483648
        %v948 = vor.u32 1.1754944e-38, %v947
        %v949 = vsel %vm946, %v948, %v944
        %v950 = vrcp.pop %v772
        %v951 = vmul.f32 %v772, %v950
        %v952 = vsub.f32 1.0, %v951
        %v953 = vmul.f32 %v950, %v952
        %v954 = vadd.f32 %v950, %v953
        %vm955 = vweird.f32 %v772
        %vm956 = vweird.f32 %v950
        %vm957 = vmor %vm955, %vm956
        %v958 = vsel %vm957, %v950, %v954
        %v959 = vand.u32 2147483647, %v772
        %vm960 = vcmp.eq.f32.partialorder %v959, 8.507059e+37
        %v961 = vand.u32 %v772, 2147483648
        %v962 = vor.u32 1.1754944e-38, %v961
        %v963 = vsel %vm960, %v962, %v958
        %v964 = vrcp.pop %v775
        %v965 = vmul.f32 %v775, %v964
        %v966 = vsub.f32 1.0, %v965
        %v967 = vmul.f32 %v964, %v966
        %v968 = vadd.f32 %v964, %v967
        %vm969 = vweird.f32 %v775
        %vm970 = vweird.f32 %v964
        %vm971 = vmor %vm969, %vm970
        %v972 = vsel %vm971, %v964, %v968
        %v973 = vand.u32 2147483647, %v775
        %vm974 = vcmp.eq.f32.partialorder %v973, 8.507059e+37
        %v975 = vand.u32 %v775, 2147483648
        %v976 = vor.u32 1.1754944e-38, %v975
        %v977 = vsel %vm974, %v976, %v972
        %v978 = vrcp.pop %v778
        %v979 = vmul.f32 %v778, %v978
        %v980 = vsub.f32 1.0, %v979
        %v981 = vmul.f32 %v978, %v980
        %v982 = vadd.f32 %v978, %v981
        %vm983 = vweird.f32 %v778
        %vm984 = vweird.f32 %v978
        %vm985 = vmor %vm983, %vm984
        %v986 = vsel %vm985, %v978, %v982
        %v987 = vand.u32 2147483647, %v778
        %vm988 = vcmp.eq.f32.partialorder %v987, 8.507059e+37
        %v989 = vand.u32 %v778, 2147483648
        %v990 = vor.u32 1.1754944e-38, %v989
        %v991 = vsel %vm988, %v990, %v986
        %v992 = vrcp.pop %v781
        %v993 = vmul.f32 %v781, %v992
        %v994 = vsub.f32 1.0, %v993
        %v995 = vmul.f32 %v992, %v994
        %v996 = vadd.f32 %v992, %v995
        %vm997 = vweird.f32 %v781
        %vm998 = vweird.f32 %v992
        %vm999 = vmor %vm997, %vm998
        %v1000 = vsel %vm999, %v992, %v996
        %v1001 = vand.u32 2147483647, %v781
        %vm1002 = vcmp.eq.f32.partialorder %v1001, 8.507059e+37
        %v1003 = vand.u32 %v781, 2147483648
        %v1004 = vor.u32 1.1754944e-38, %v1003
        %v1005 = vsel %vm1002, %v1004, %v1000
        %v1006 = vmul.f32 %v703, %v795
        %v1007 = vmul.f32 %v705, %v809
        %v1008 = vmul.f32 %v707, %v823
        %v1009 = vmul.f32 %v709, %v837
        %v1010 = vmul.f32 %v711, %v851
        %v1011 = vmul.f32 %v713, %v865
        %v1012 = vmul.f32 %v715, %v879
        %v1013 = vmul.f32 %v717, %v893
        %v1014 = vmul.f32 %v719, %v907
        %v1015 = vmul.f32 %v721, %v921
        %v1016 = vmul.f32 %v723, %v935
        %v1017 = vmul.f32 %v725, %v949
        %v1018 = vmul.f32 %v727, %v963
        %v1019 = vmul.f32 %v729, %v977
        %v1020 = vmul.f32 %v731, %v991
        %v1021 = vmul.f32 %v733, %v1005
        %v1022 = vpack.c.bf16 %v1006, %v1006
        %v1023 = vpack.c.bf16 %v1007, %v1007
        %v1024 = vpack.c.bf16 %v1008, %v1008
        %v1025 = vpack.c.bf16 %v1009, %v1009
        %v1026 = vpack.c.bf16 %v1010, %v1010
        %v1027 = vpack.c.bf16 %v1011, %v1011
        %v1028 = vpack.c.bf16 %v1012, %v1012
        %v1029 = vpack.c.bf16 %v1013, %v1013
        %v1030 = vpack.c.bf16 %v1014, %v1014
        %v1031 = vpack.c.bf16 %v1015, %v1015
        %v1032 = vpack.c.bf16 %v1016, %v1016
        %v1033 = vpack.c.bf16 %v1017, %v1017
        %v1034 = vpack.c.bf16 %v1018, %v1018
        %v1035 = vpack.c.bf16 %v1019, %v1019
        %v1036 = vpack.c.bf16 %v1020, %v1020
        %v1037 = vpack.c.bf16 %v1021, %v1021
        %v1046 = vunpack.c.l.b16 %v1022
        %v1047 = vunpack.c.l.b16 %v1023
        %v1048 = vunpack.c.l.b16 %v1024
        %v1049 = vunpack.c.l.b16 %v1025
        %v1050 = vunpack.c.l.b16 %v1026
        %v1051 = vunpack.c.l.b16 %v1027
        %v1052 = vunpack.c.l.b16 %v1028
        %v1053 = vunpack.c.l.b16 %v1029
        %v1054 = vpack.c.b16 %v1047, %v1046
        %v1055 = vpack.c.b16 %v1049, %v1048
        %v1056 = vpack.c.b16 %v1051, %v1050
        %v1057 = vpack.c.b16 %v1053, %v1052
        %1058 = vrot.lane.b32.xlu0 %v490, 64
        %v1059 = vpop.permute.xlu0 %1058
        %1060 = vrot.lane.b32.xlu0 %v491, 64
        %v1061 = vpop.permute.xlu0 %1060
        %1062 = vrot.lane.b32.xlu0 %v492, 64
        %v1063 = vpop.permute.xlu0 %1062
        %1064 = vrot.lane.b32.xlu0 %v493, 64
        %v1065 = vpop.permute.xlu0 %1064
        %v1071 = vsel %vm637, %v1054, 0
        %v1074 = vsel %vm637, %v1055, 0
        %v1077 = vsel %vm637, %v1056, 0
        %v1080 = vsel %vm637, %v1057, 0
        %1082 = vmatpush.bf16.msra.mxu0 0
        %1083 = vmatpush.bf16.msra.mxu0 0
        %1084 = vmatpush.bf16.msra.mxu0 0
        %1085 = vmatpush.bf16.msra.mxu0 0
        %1086 = vmatpush.bf16.msra.mxu0 %v1065
        %1087 = vmatpush.bf16.msra.mxu0 %v1063
        %1088 = vmatpush.bf16.msra.mxu0 %v1061
        %1089 = vmatpush.bf16.msra.mxu0 %v1059
        %1090 = vmatmul.bf16.gmra.mxu0 %v1071
        %v1091 = vpop.f32.mrf.mxu0
        %v1092 = vadd.f32 0.0, %v1091
        %v1093 = vpop.f32.mrf.mxu0
        %v1094 = vadd.f32 0.0, %v1093
        %1095 = vmatmul.bf16.gmra.mxu0 %v1074
        %v1096 = vpop.f32.mrf.mxu0
        %v1097 = vadd.f32 0.0, %v1096
        %v1098 = vpop.f32.mrf.mxu0
        %v1099 = vadd.f32 0.0, %v1098
        %1100 = vmatmul.bf16.gmra.mxu0 %v1077
        %v1101 = vpop.f32.mrf.mxu0
        %v1102 = vadd.f32 0.0, %v1101
        %v1103 = vpop.f32.mrf.mxu0
        %v1104 = vadd.f32 0.0, %v1103
        %1105 = vmatmul.bf16.gmra.mxu0 %v1080
        %v1106 = vpop.f32.mrf.mxu0
        %v1107 = vadd.f32 0.0, %v1106
        %v1108 = vpop.f32.mrf.mxu0
        %v1109 = vadd.f32 0.0, %v1108
        %1110 = vdwg.mxu0
        %v1119 = vunpack.c.l.b16 %v1030
        %v1120 = vunpack.c.l.b16 %v1031
        %v1121 = vunpack.c.l.b16 %v1032
        %v1122 = vunpack.c.l.b16 %v1033
        %v1123 = vunpack.c.l.b16 %v1034
        %v1124 = vunpack.c.l.b16 %v1035
        %v1125 = vunpack.c.l.b16 %v1036
        %v1126 = vunpack.c.l.b16 %v1037
        %v1127 = vpack.c.b16 %v1120, %v1119
        %v1128 = vpack.c.b16 %v1122, %v1121
        %v1129 = vpack.c.b16 %v1124, %v1123
        %v1130 = vpack.c.b16 %v1126, %v1125
        %1131 = vrot.lane.b32.xlu0 %v572, 64
        %v1132 = vpop.permute.xlu0 %1131
        %1133 = vrot.lane.b32.xlu0 %v573, 64
        %v1134 = vpop.permute.xlu0 %1133
        %1135 = vrot.lane.b32.xlu0 %v574, 64
        %v1136 = vpop.permute.xlu0 %1135
        %1137 = vrot.lane.b32.xlu0 %v575, 64
        %v1138 = vpop.permute.xlu0 %1137
        %v1144 = vsel %vm637, %v1127, 0
        %v1147 = vsel %vm637, %v1128, 0
        %v1150 = vsel %vm637, %v1129, 0
        %v1153 = vsel %vm637, %v1130, 0
        %1155 = vmatpush.bf16.msra.mxu0 0
        %1156 = vmatpush.bf16.msra.mxu0 0
        %1157 = vmatpush.bf16.msra.mxu0 0
        %1158 = vmatpush.bf16.msra.mxu0 0
        %1159 = vmatpush.bf16.msra.mxu0 %v1138
        %1160 = vmatpush.bf16.msra.mxu0 %v1136
        %1161 = vmatpush.bf16.msra.mxu0 %v1134
        %1162 = vmatpush.bf16.msra.mxu0 %v1132
        %1163 = vmatmul.bf16.gmra.mxu0 %v1144
        %v1164 = vpop.f32.mrf.mxu0
        %v1165 = vadd.f32 0.0, %v1164
        %v1166 = vpop.f32.mrf.mxu0
        %v1167 = vadd.f32 0.0, %v1166
        %1168 = vmatmul.bf16.gmra.mxu0 %v1147
        %v1169 = vpop.f32.mrf.mxu0
        %v1170 = vadd.f32 0.0, %v1169
        %v1171 = vpop.f32.mrf.mxu0
        %v1172 = vadd.f32 0.0, %v1171
        %1173 = vmatmul.bf16.gmra.mxu0 %v1150
        %v1174 = vpop.f32.mrf.mxu0
        %v1175 = vadd.f32 0.0, %v1174
        %v1176 = vpop.f32.mrf.mxu0
        %v1177 = vadd.f32 0.0, %v1176
        %1178 = vmatmul.bf16.gmra.mxu0 %v1153
        %v1179 = vpop.f32.mrf.mxu0
        %v1180 = vadd.f32 0.0, %v1179
        %v1181 = vpop.f32.mrf.mxu0
        %v1182 = vadd.f32 0.0, %v1181
        %1183 = vdwg.mxu0
        %v1184 = vpack.c.bf16 %v1094, %v1092
        %v1185 = vpack.c.bf16 %v1099, %v1097
        %v1186 = vpack.c.bf16 %v1104, %v1102
        %v1187 = vpack.c.bf16 %v1109, %v1107
        %v1188 = vpack.c.bf16 %v1167, %v1165
        %v1189 = vpack.c.bf16 %v1172, %v1170
        %v1190 = vpack.c.bf16 %v1177, %v1175
        %v1191 = vpack.c.bf16 %v1182, %v1180
        %v1192 = vld [vmem:[%s3] sm:$0xf]
        %s1193 = scalar_lea.vmem %s5, 64
        %v1194 = vld [vmem:[%s1193] sm:$0xff]
        %v1195 = vld [vmem:[%s1193 + $0x8] sm:$0xff]
        %v1196 = vld [vmem:[%s1193 + $0x10] sm:$0xff]
        %v1197 = vld [vmem:[%s1193 + $0x18] sm:$0xff]
        %v1198 = vld [vmem:[%s1193 + $0x20] sm:$0xff]
        %v1199 = vld [vmem:[%s1193 + $0x28] sm:$0xff]
        %v1200 = vld [vmem:[%s1193 + $0x30] sm:$0xff]
        %v1201 = vld [vmem:[%s1193 + $0x38] sm:$0xff]
        %1202 = vrot.lane.b32.xlu0 %v490, 120
        %v1203 = vpop.permute.xlu0 %1202
        %1204 = vrot.lane.b32.xlu0 %v491, 120
        %v1205 = vpop.permute.xlu0 %1204
        %1206 = vrot.lane.b32.xlu0 %v492, 120
        %v1207 = vpop.permute.xlu0 %1206
        %1208 = vrot.lane.b32.xlu0 %v493, 120
        %v1209 = vpop.permute.xlu0 %1208
        %1210 = vrot.lane.b32.xlu0 %v490, 88
        %v1211 = vpop.permute.xlu0 %1210
        %1212 = vrot.lane.b32.xlu0 %v491, 88
        %v1213 = vpop.permute.xlu0 %1212
        %1214 = vrot.lane.b32.xlu0 %v492, 88
        %v1215 = vpop.permute.xlu0 %1214
        %1216 = vrot.lane.b32.xlu0 %v493, 88
        %v1217 = vpop.permute.xlu0 %1216
        %v1219 = vsel %vm502, %v1203, 0
        %v1222 = vsel %vm502, %v1205, 0
        %v1225 = vsel %vm502, %v1207, 0
        %v1228 = vsel %vm502, %v1209, 0
        %v1231 = vsel %vm502, %v1211, 0
        %v1234 = vsel %vm502, %v1213, 0
        %v1237 = vsel %vm502, %v1215, 0
        %v1240 = vsel %vm502, %v1217, 0
        %1242 = vmatpush.bf16.xpose.msra.mxu0 0
        %1243 = vmatpush.bf16.xpose.msra.mxu0 0
        %1244 = vmatpush.bf16.xpose.msra.mxu0 0
        %1245 = vmatpush.bf16.xpose.msra.mxu0 0
        %1246 = vmatpush.bf16.xpose.msra.mxu0 %v1240
        %1247 = vmatpush.bf16.xpose.msra.mxu0 %v1237
        %1248 = vmatpush.bf16.xpose.msra.mxu0 %v1234
        %1249 = vmatpush.bf16.xpose.msra.mxu0 %v1231
        %1250 = vmatmul.bf16.gmra.mxu0 %v1219
        %v1251 = vpop.f32.mrf.mxu0
        %v1252 = vadd.f32 %v1194, %v1251
        %v1253 = vpop.f32.mrf.mxu0
        %v1254 = vadd.f32 %v1195, %v1253
        %1255 = vmatmul.bf16.gmra.mxu0 %v1222
        %v1256 = vpop.f32.mrf.mxu0
        %v1257 = vadd.f32 %v1196, %v1256
        %v1258 = vpop.f32.mrf.mxu0
        %v1259 = vadd.f32 %v1197, %v1258
        %1260 = vmatmul.bf16.gmra.mxu0 %v1225
        %v1261 = vpop.f32.mrf.mxu0
        %v1262 = vadd.f32 %v1198, %v1261
        %v1263 = vpop.f32.mrf.mxu0
        %v1264 = vadd.f32 %v1199, %v1263
        %1265 = vmatmul.bf16.gmra.mxu0 %v1228
        %v1266 = vpop.f32.mrf.mxu0
        %v1267 = vadd.f32 %v1200, %v1266
        %v1268 = vpop.f32.mrf.mxu0
        %v1269 = vadd.f32 %v1201, %v1268
        %1270 = vdwg.mxu0
        %1271 = vrot.lane.b32.xlu0 %v572, 120
        %v1272 = vpop.permute.xlu0 %1271
        %1273 = vrot.lane.b32.xlu0 %v573, 120
        %v1274 = vpop.permute.xlu0 %1273
        %1275 = vrot.lane.b32.xlu0 %v574, 120
        %v1276 = vpop.permute.xlu0 %1275
        %1277 = vrot.lane.b32.xlu0 %v575, 120
        %v1278 = vpop.permute.xlu0 %1277
        %1279 = vrot.lane.b32.xlu0 %v572, 88
        %v1280 = vpop.permute.xlu0 %1279
        %1281 = vrot.lane.b32.xlu0 %v573, 88
        %v1282 = vpop.permute.xlu0 %1281
        %1283 = vrot.lane.b32.xlu0 %v574, 88
        %v1284 = vpop.permute.xlu0 %1283
        %1285 = vrot.lane.b32.xlu0 %v575, 88
        %v1286 = vpop.permute.xlu0 %1285
        %v1288 = vsel %vm502, %v1272, 0
        %v1291 = vsel %vm502, %v1274, 0
        %v1294 = vsel %vm502, %v1276, 0
        %v1297 = vsel %vm502, %v1278, 0
        %v1300 = vsel %vm502, %v1280, 0
        %v1303 = vsel %vm502, %v1282, 0
        %v1306 = vsel %vm502, %v1284, 0
        %v1309 = vsel %vm502, %v1286, 0
        %1311 = vmatpush.bf16.xpose.msra.mxu0 0
        %1312 = vmatpush.bf16.xpose.msra.mxu0 0
        %1313 = vmatpush.bf16.xpose.msra.mxu0 0
        %1314 = vmatpush.bf16.xpose.msra.mxu0 0
        %1315 = vmatpush.bf16.xpose.msra.mxu0 %v1309
        %1316 = vmatpush.bf16.xpose.msra.mxu0 %v1306
        %1317 = vmatpush.bf16.xpose.msra.mxu0 %v1303
        %1318 = vmatpush.bf16.xpose.msra.mxu0 %v1300
        %1319 = vmatmul.bf16.gmra.mxu0 %v1288
        %v1320 = vpop.f32.mrf.mxu0
        %v1321 = vadd.f32 %v1194, %v1320
        %v1322 = vpop.f32.mrf.mxu0
        %v1323 = vadd.f32 %v1195, %v1322
        %1324 = vmatmul.bf16.gmra.mxu0 %v1291
        %v1325 = vpop.f32.mrf.mxu0
        %v1326 = vadd.f32 %v1196, %v1325
        %v1327 = vpop.f32.mrf.mxu0
        %v1328 = vadd.f32 %v1197, %v1327
        %1329 = vmatmul.bf16.gmra.mxu0 %v1294
        %v1330 = vpop.f32.mrf.mxu0
        %v1331 = vadd.f32 %v1198, %v1330
        %v1332 = vpop.f32.mrf.mxu0
        %v1333 = vadd.f32 %v1199, %v1332
        %1334 = vmatmul.bf16.gmra.mxu0 %v1297
        %v1335 = vpop.f32.mrf.mxu0
        %v1336 = vadd.f32 %v1200, %v1335
        %v1337 = vpop.f32.mrf.mxu0
        %v1338 = vadd.f32 %v1201, %v1337
        %1339 = vdwg.mxu0
        %v1340 = vsel %vm637, %v1252, -inf
        %1341 = vmax.xlane.f32.xlu0 %v1340
        %v1342 = vpop.xlane.xlu0 %1341
        %v1343 = vsel %vm637, %v1254, -inf
        %1344 = vmax.xlane.f32.xlu0 %v1343
        %v1345 = vpop.xlane.xlu0 %1344
        %v1346 = vsel %vm637, %v1257, -inf
        %1347 = vmax.xlane.f32.xlu0 %v1346
        %v1348 = vpop.xlane.xlu0 %1347
        %v1349 = vsel %vm637, %v1259, -inf
        %1350 = vmax.xlane.f32.xlu0 %v1349
        %v1351 = vpop.xlane.xlu0 %1350
        %v1352 = vsel %vm637, %v1262, -inf
        %1353 = vmax.xlane.f32.xlu0 %v1352
        %v1354 = vpop.xlane.xlu0 %1353
        %v1355 = vsel %vm637, %v1264, -inf
        %1356 = vmax.xlane.f32.xlu0 %v1355
        %v1357 = vpop.xlane.xlu0 %1356
        %v1358 = vsel %vm637, %v1267, -inf
        %1359 = vmax.xlane.f32.xlu0 %v1358
        %v1360 = vpop.xlane.xlu0 %1359
        %v1361 = vsel %vm637, %v1269, -inf
        %1362 = vmax.xlane.f32.xlu0 %v1361
        %v1363 = vpop.xlane.xlu0 %1362
        %v1364 = vsel %vm637, %v1321, -inf
        %1365 = vmax.xlane.f32.xlu0 %v1364
        %v1366 = vpop.xlane.xlu0 %1365
        %v1367 = vsel %vm637, %v1323, -inf
        %1368 = vmax.xlane.f32.xlu0 %v1367
        %v1369 = vpop.xlane.xlu0 %1368
        %v1370 = vsel %vm637, %v1326, -inf
        %1371 = vmax.xlane.f32.xlu0 %v1370
        %v1372 = vpop.xlane.xlu0 %1371
        %v1373 = vsel %vm637, %v1328, -inf
        %1374 = vmax.xlane.f32.xlu0 %v1373
        %v1375 = vpop.xlane.xlu0 %1374
        %v1376 = vsel %vm637, %v1331, -inf
        %1377 = vmax.xlane.f32.xlu0 %v1376
        %v1378 = vpop.xlane.xlu0 %1377
        %v1379 = vsel %vm637, %v1333, -inf
        %1380 = vmax.xlane.f32.xlu0 %v1379
        %v1381 = vpop.xlane.xlu0 %1380
        %v1382 = vsel %vm637, %v1336, -inf
        %1383 = vmax.xlane.f32.xlu0 %v1382
        %v1384 = vpop.xlane.xlu0 %1383
        %v1385 = vsel %vm637, %v1338, -inf
        %1386 = vmax.xlane.f32.xlu0 %v1385
        %v1387 = vpop.xlane.xlu0 %1386
        %v1388 = vsub.f32 %v1252, %v1342
        %v1389 = vsub.f32 %v1254, %v1345
        %v1390 = vsub.f32 %v1257, %v1348
        %v1391 = vsub.f32 %v1259, %v1351
        %v1392 = vsub.f32 %v1262, %v1354
        %v1393 = vsub.f32 %v1264, %v1357
        %v1394 = vsub.f32 %v1267, %v1360
        %v1395 = vsub.f32 %v1269, %v1363
        %v1396 = vsub.f32 %v1321, %v1366
        %v1397 = vsub.f32 %v1323, %v1369
        %v1398 = vsub.f32 %v1326, %v1372
        %v1399 = vsub.f32 %v1328, %v1375
        %v1400 = vsub.f32 %v1331, %v1378
        %v1401 = vsub.f32 %v1333, %v1381
        %v1402 = vsub.f32 %v1336, %v1384
        %v1403 = vsub.f32 %v1338, %v1387
        %v1404 = vmul.f32 %v1388, 1.442695
        %v1405 = vpow.pop %v1404
        %v1406 = vmul.f32 %v1389, 1.442695
        %v1407 = vpow.pop %v1406
        %v1408 = vmul.f32 %v1390, 1.442695
        %v1409 = vpow.pop %v1408
        %v1410 = vmul.f32 %v1391, 1.442695
        %v1411 = vpow.pop %v1410
        %v1412 = vmul.f32 %v1392, 1.442695
        %v1413 = vpow.pop %v1412
        %v1414 = vmul.f32 %v1393, 1.442695
        %v1415 = vpow.pop %v1414
        %v1416 = vmul.f32 %v1394, 1.442695
        %v1417 = vpow.pop %v1416
        %v1418 = vmul.f32 %v1395, 1.442695
        %v1419 = vpow.pop %v1418
        %v1420 = vmul.f32 %v1396, 1.442695
        %v1421 = vpow.pop %v1420
        %v1422 = vmul.f32 %v1397, 1.442695
        %v1423 = vpow.pop %v1422
        %v1424 = vmul.f32 %v1398, 1.442695
        %v1425 = vpow.pop %v1424
        %v1426 = vmul.f32 %v1399, 1.442695
        %v1427 = vpow.pop %v1426
        %v1428 = vmul.f32 %v1400, 1.442695
        %v1429 = vpow.pop %v1428
        %v1430 = vmul.f32 %v1401, 1.442695
        %v1431 = vpow.pop %v1430
        %v1432 = vmul.f32 %v1402, 1.442695
        %v1433 = vpow.pop %v1432
        %v1434 = vmul.f32 %v1403, 1.442695
        %v1435 = vpow.pop %v1434
        %v1436 = vsel %vm637, %v1405, 0.0
        %1437 = vadd.xlane.f32.xlu0 %v1436
        %v1438 = vpop.xlane.xlu0 %1437
        %v1439 = vsel %vm637, %v1407, 0.0
        %1440 = vadd.xlane.f32.xlu0 %v1439
        %v1441 = vpop.xlane.xlu0 %1440
        %v1442 = vsel %vm637, %v1409, 0.0
        %1443 = vadd.xlane.f32.xlu0 %v1442
        %v1444 = vpop.xlane.xlu0 %1443
        %v1445 = vsel %vm637, %v1411, 0.0
        %1446 = vadd.xlane.f32.xlu0 %v1445
        %v1447 = vpop.xlane.xlu0 %1446
        %v1448 = vsel %vm637, %v1413, 0.0
        %1449 = vadd.xlane.f32.xlu0 %v1448
        %v1450 = vpop.xlane.xlu0 %1449
        %v1451 = vsel %vm637, %v1415, 0.0
        %1452 = vadd.xlane.f32.xlu0 %v1451
        %v1453 = vpop.xlane.xlu0 %1452
        %v1454 = vsel %vm637, %v1417, 0.0
        %1455 = vadd.xlane.f32.xlu0 %v1454
        %v1456 = vpop.xlane.xlu0 %1455
        %v1457 = vsel %vm637, %v1419, 0.0
        %1458 = vadd.xlane.f32.xlu0 %v1457
        %v1459 = vpop.xlane.xlu0 %1458
        %v1460 = vsel %vm637, %v1421, 0.0
        %1461 = vadd.xlane.f32.xlu0 %v1460
        %v1462 = vpop.xlane.xlu0 %1461
        %v1463 = vsel %vm637, %v1423, 0.0
        %1464 = vadd.xlane.f32.xlu0 %v1463
        %v1465 = vpop.xlane.xlu0 %1464
        %v1466 = vsel %vm637, %v1425, 0.0
        %1467 = vadd.xlane.f32.xlu0 %v1466
        %v1468 = vpop.xlane.xlu0 %1467
        %v1469 = vsel %vm637, %v1427, 0.0
        %1470 = vadd.xlane.f32.xlu0 %v1469
        %v1471 = vpop.xlane.xlu0 %1470
        %v1472 = vsel %vm637, %v1429, 0.0
        %1473 = vadd.xlane.f32.xlu0 %v1472
        %v1474 = vpop.xlane.xlu0 %1473
        %v1475 = vsel %vm637, %v1431, 0.0
        %1476 = vadd.xlane.f32.xlu0 %v1475
        %v1477 = vpop.xlane.xlu0 %1476
        %v1478 = vsel %vm637, %v1433, 0.0
        %1479 = vadd.xlane.f32.xlu0 %v1478
        %v1480 = vpop.xlane.xlu0 %1479
        %v1481 = vsel %vm637, %v1435, 0.0
        %1482 = vadd.xlane.f32.xlu0 %v1481
        %v1483 = vpop.xlane.xlu0 %1482
        %v1484 = vrcp.pop %v1438
        %v1485 = vmul.f32 %v1438, %v1484
        %v1486 = vsub.f32 1.0, %v1485
        %v1487 = vmul.f32 %v1484, %v1486
        %v1488 = vadd.f32 %v1484, %v1487
        %vm1489 = vweird.f32 %v1438
        %vm1490 = vweird.f32 %v1484
        %vm1491 = vmor %vm1489, %vm1490
        %v1492 = vsel %vm1491, %v1484, %v1488
        %v1493 = vand.u32 2147483647, %v1438
        %vm1494 = vcmp.eq.f32.partialorder %v1493, 8.507059e+37
        %v1495 = vand.u32 %v1438, 2147483648
        %v1496 = vor.u32 1.1754944e-38, %v1495
        %v1497 = vsel %vm1494, %v1496, %v1492
        %v1498 = vrcp.pop %v1441
        %v1499 = vmul.f32 %v1441, %v1498
        %v1500 = vsub.f32 1.0, %v1499
        %v1501 = vmul.f32 %v1498, %v1500
        %v1502 = vadd.f32 %v1498, %v1501
        %vm1503 = vweird.f32 %v1441
        %vm1504 = vweird.f32 %v1498
        %vm1505 = vmor %vm1503, %vm1504
        %v1506 = vsel %vm1505, %v1498, %v1502
        %v1507 = vand.u32 2147483647, %v1441
        %vm1508 = vcmp.eq.f32.partialorder %v1507, 8.507059e+37
        %v1509 = vand.u32 %v1441, 2147483648
        %v1510 = vor.u32 1.1754944e-38, %v1509
        %v1511 = vsel %vm1508, %v1510, %v1506
        %v1512 = vrcp.pop %v1444
        %v1513 = vmul.f32 %v1444, %v1512
        %v1514 = vsub.f32 1.0, %v1513
        %v1515 = vmul.f32 %v1512, %v1514
        %v1516 = vadd.f32 %v1512, %v1515
        %vm1517 = vweird.f32 %v1444
        %vm1518 = vweird.f32 %v1512
        %vm1519 = vmor %vm1517, %vm1518
        %v1520 = vsel %vm1519, %v1512, %v1516
        %v1521 = vand.u32 2147483647, %v1444
        %vm1522 = vcmp.eq.f32.partialorder %v1521, 8.507059e+37
        %v1523 = vand.u32 %v1444, 2147483648
        %v1524 = vor.u32 1.1754944e-38, %v1523
        %v1525 = vsel %vm1522, %v1524, %v1520
        %v1526 = vrcp.pop %v1447
        %v1527 = vmul.f32 %v1447, %v1526
        %v1528 = vsub.f32 1.0, %v1527
        %v1529 = vmul.f32 %v1526, %v1528
        %v1530 = vadd.f32 %v1526, %v1529
        %vm1531 = vweird.f32 %v1447
        %vm1532 = vweird.f32 %v1526
        %vm1533 = vmor %vm1531, %vm1532
        %v1534 = vsel %vm1533, %v1526, %v1530
        %v1535 = vand.u32 2147483647, %v1447
        %vm1536 = vcmp.eq.f32.partialorder %v1535, 8.507059e+37
        %v1537 = vand.u32 %v1447, 2147483648
        %v1538 = vor.u32 1.1754944e-38, %v1537
        %v1539 = vsel %vm1536, %v1538, %v1534
        %v1540 = vrcp.pop %v1450
        %v1541 = vmul.f32 %v1450, %v1540
        %v1542 = vsub.f32 1.0, %v1541
        %v1543 = vmul.f32 %v1540, %v1542
        %v1544 = vadd.f32 %v1540, %v1543
        %vm1545 = vweird.f32 %v1450
        %vm1546 = vweird.f32 %v1540
        %vm1547 = vmor %vm1545, %vm1546
        %v1548 = vsel %vm1547, %v1540, %v1544
        %v1549 = vand.u32 2147483647, %v1450
        %vm1550 = vcmp.eq.f32.partialorder %v1549, 8.507059e+37
        %v1551 = vand.u32 %v1450, 2147483648
        %v1552 = vor.u32 1.1754944e-38, %v1551
        %v1553 = vsel %vm1550, %v1552, %v1548
        %v1554 = vrcp.pop %v1453
        %v1555 = vmul.f32 %v1453, %v1554
        %v1556 = vsub.f32 1.0, %v1555
        %v1557 = vmul.f32 %v1554, %v1556
        %v1558 = vadd.f32 %v1554, %v1557
        %vm1559 = vweird.f32 %v1453
        %vm1560 = vweird.f32 %v1554
        %vm1561 = vmor %vm1559, %vm1560
        %v1562 = vsel %vm1561, %v1554, %v1558
        %v1563 = vand.u32 2147483647, %v1453
        %vm1564 = vcmp.eq.f32.partialorder %v1563, 8.507059e+37
        %v1565 = vand.u32 %v1453, 2147483648
        %v1566 = vor.u32 1.1754944e-38, %v1565
        %v1567 = vsel %vm1564, %v1566, %v1562
        %v1568 = vrcp.pop %v1456
        %v1569 = vmul.f32 %v1456, %v1568
        %v1570 = vsub.f32 1.0, %v1569
        %v1571 = vmul.f32 %v1568, %v1570
        %v1572 = vadd.f32 %v1568, %v1571
        %vm1573 = vweird.f32 %v1456
        %vm1574 = vweird.f32 %v1568
        %vm1575 = vmor %vm1573, %vm1574
        %v1576 = vsel %vm1575, %v1568, %v1572
        %v1577 = vand.u32 2147483647, %v1456
        %vm1578 = vcmp.eq.f32.partialorder %v1577, 8.507059e+37
        %v1579 = vand.u32 %v1456, 2147483648
        %v1580 = vor.u32 1.1754944e-38, %v1579
        %v1581 = vsel %vm1578, %v1580, %v1576
        %v1582 = vrcp.pop %v1459
        %v1583 = vmul.f32 %v1459, %v1582
        %v1584 = vsub.f32 1.0, %v1583
        %v1585 = vmul.f32 %v1582, %v1584
        %v1586 = vadd.f32 %v1582, %v1585
        %vm1587 = vweird.f32 %v1459
        %vm1588 = vweird.f32 %v1582
        %vm1589 = vmor %vm1587, %vm1588
        %v1590 = vsel %vm1589, %v1582, %v1586
        %v1591 = vand.u32 2147483647, %v1459
        %vm1592 = vcmp.eq.f32.partialorder %v1591, 8.507059e+37
        %v1593 = vand.u32 %v1459, 2147483648
        %v1594 = vor.u32 1.1754944e-38, %v1593
        %v1595 = vsel %vm1592, %v1594, %v1590
        %v1596 = vrcp.pop %v1462
        %v1597 = vmul.f32 %v1462, %v1596
        %v1598 = vsub.f32 1.0, %v1597
        %v1599 = vmul.f32 %v1596, %v1598
        %v1600 = vadd.f32 %v1596, %v1599
        %vm1601 = vweird.f32 %v1462
        %vm1602 = vweird.f32 %v1596
        %vm1603 = vmor %vm1601, %vm1602
        %v1604 = vsel %vm1603, %v1596, %v1600
        %v1605 = vand.u32 2147483647, %v1462
        %vm1606 = vcmp.eq.f32.partialorder %v1605, 8.507059e+37
        %v1607 = vand.u32 %v1462, 2147483648
        %v1608 = vor.u32 1.1754944e-38, %v1607
        %v1609 = vsel %vm1606, %v1608, %v1604
        %v1610 = vrcp.pop %v1465
        %v1611 = vmul.f32 %v1465, %v1610
        %v1612 = vsub.f32 1.0, %v1611
        %v1613 = vmul.f32 %v1610, %v1612
        %v1614 = vadd.f32 %v1610, %v1613
        %vm1615 = vweird.f32 %v1465
        %vm1616 = vweird.f32 %v1610
        %vm1617 = vmor %vm1615, %vm1616
        %v1618 = vsel %vm1617, %v1610, %v1614
        %v1619 = vand.u32 2147483647, %v1465
        %vm1620 = vcmp.eq.f32.partialorder %v1619, 8.507059e+37
        %v1621 = vand.u32 %v1465, 2147483648
        %v1622 = vor.u32 1.1754944e-38, %v1621
        %v1623 = vsel %vm1620, %v1622, %v1618
        %v1624 = vrcp.pop %v1468
        %v1625 = vmul.f32 %v1468, %v1624
        %v1626 = vsub.f32 1.0, %v1625
        %v1627 = vmul.f32 %v1624, %v1626
        %v1628 = vadd.f32 %v1624, %v1627
        %vm1629 = vweird.f32 %v1468
        %vm1630 = vweird.f32 %v1624
        %vm1631 = vmor %vm1629, %vm1630
        %v1632 = vsel %vm1631, %v1624, %v1628
        %v1633 = vand.u32 2147483647, %v1468
        %vm1634 = vcmp.eq.f32.partialorder %v1633, 8.507059e+37
        %v1635 = vand.u32 %v1468, 2147483648
        %v1636 = vor.u32 1.1754944e-38, %v1635
        %v1637 = vsel %vm1634, %v1636, %v1632
        %v1638 = vrcp.pop %v1471
        %v1639 = vmul.f32 %v1471, %v1638
        %v1640 = vsub.f32 1.0, %v1639
        %v1641 = vmul.f32 %v1638, %v1640
        %v1642 = vadd.f32 %v1638, %v1641
        %vm1643 = vweird.f32 %v1471
        %vm1644 = vweird.f32 %v1638
        %vm1645 = vmor %vm1643, %vm1644
        %v1646 = vsel %vm1645, %v1638, %v1642
        %v1647 = vand.u32 2147483647, %v1471
        %vm1648 = vcmp.eq.f32.partialorder %v1647, 8.507059e+37
        %v1649 = vand.u32 %v1471, 2147483648
        %v1650 = vor.u32 1.1754944e-38, %v1649
        %v1651 = vsel %vm1648, %v1650, %v1646
        %v1652 = vrcp.pop %v1474
        %v1653 = vmul.f32 %v1474, %v1652
        %v1654 = vsub.f32 1.0, %v1653
        %v1655 = vmul.f32 %v1652, %v1654
        %v1656 = vadd.f32 %v1652, %v1655
        %vm1657 = vweird.f32 %v1474
        %vm1658 = vweird.f32 %v1652
        %vm1659 = vmor %vm1657, %vm1658
        %v1660 = vsel %vm1659, %v1652, %v1656
        %v1661 = vand.u32 2147483647, %v1474
        %vm1662 = vcmp.eq.f32.partialorder %v1661, 8.507059e+37
        %v1663 = vand.u32 %v1474, 2147483648
        %v1664 = vor.u32 1.1754944e-38, %v1663
        %v1665 = vsel %vm1662, %v1664, %v1660
        %v1666 = vrcp.pop %v1477
        %v1667 = vmul.f32 %v1477, %v1666
        %v1668 = vsub.f32 1.0, %v1667
        %v1669 = vmul.f32 %v1666, %v1668
        %v1670 = vadd.f32 %v1666, %v1669
        %vm1671 = vweird.f32 %v1477
        %vm1672 = vweird.f32 %v1666
        %vm1673 = vmor %vm1671, %vm1672
        %v1674 = vsel %vm1673, %v1666, %v1670
        %v1675 = vand.u32 2147483647, %v1477
        %vm1676 = vcmp.eq.f32.partialorder %v1675, 8.507059e+37
        %v1677 = vand.u32 %v1477, 2147483648
        %v1678 = vor.u32 1.1754944e-38, %v1677
        %v1679 = vsel %vm1676, %v1678, %v1674
        %v1680 = vrcp.pop %v1480
        %v1681 = vmul.f32 %v1480, %v1680
        %v1682 = vsub.f32 1.0, %v1681
        %v1683 = vmul.f32 %v1680, %v1682
        %v1684 = vadd.f32 %v1680, %v1683
        %vm1685 = vweird.f32 %v1480
        %vm1686 = vweird.f32 %v1680
        %vm1687 = vmor %vm1685, %vm1686
        %v1688 = vsel %vm1687, %v1680, %v1684
        %v1689 = vand.u32 2147483647, %v1480
        %vm1690 = vcmp.eq.f32.partialorder %v1689, 8.507059e+37
        %v1691 = vand.u32 %v1480, 2147483648
        %v1692 = vor.u32 1.1754944e-38, %v1691
        %v1693 = vsel %vm1690, %v1692, %v1688
        %v1694 = vrcp.pop %v1483
        %v1695 = vmul.f32 %v1483, %v1694
        %v1696 = vsub.f32 1.0, %v1695
        %v1697 = vmul.f32 %v1694, %v1696
        %v1698 = vadd.f32 %v1694, %v1697
        %vm1699 = vweird.f32 %v1483
        %vm1700 = vweird.f32 %v1694
        %vm1701 = vmor %vm1699, %vm1700
        %v1702 = vsel %vm1701, %v1694, %v1698
        %v1703 = vand.u32 2147483647, %v1483
        %vm1704 = vcmp.eq.f32.partialorder %v1703, 8.507059e+37
        %v1705 = vand.u32 %v1483, 2147483648
        %v1706 = vor.u32 1.1754944e-38, %v1705
        %v1707 = vsel %vm1704, %v1706, %v1702
        %v1708 = vmul.f32 %v1405, %v1497
        %v1709 = vmul.f32 %v1407, %v1511
        %v1710 = vmul.f32 %v1409, %v1525
        %v1711 = vmul.f32 %v1411, %v1539
        %v1712 = vmul.f32 %v1413, %v1553
        %v1713 = vmul.f32 %v1415, %v1567
        %v1714 = vmul.f32 %v1417, %v1581
        %v1715 = vmul.f32 %v1419, %v1595
        %v1716 = vmul.f32 %v1421, %v1609
        %v1717 = vmul.f32 %v1423, %v1623
        %v1718 = vmul.f32 %v1425, %v1637
        %v1719 = vmul.f32 %v1427, %v1651
        %v1720 = vmul.f32 %v1429, %v1665
        %v1721 = vmul.f32 %v1431, %v1679
        %v1722 = vmul.f32 %v1433, %v1693
        %v1723 = vmul.f32 %v1435, %v1707
        %v1724 = vpack.c.bf16 %v1708, %v1708
        %v1725 = vpack.c.bf16 %v1709, %v1709
        %v1726 = vpack.c.bf16 %v1710, %v1710
        %v1727 = vpack.c.bf16 %v1711, %v1711
        %v1728 = vpack.c.bf16 %v1712, %v1712
        %v1729 = vpack.c.bf16 %v1713, %v1713
        %v1730 = vpack.c.bf16 %v1714, %v1714
        %v1731 = vpack.c.bf16 %v1715, %v1715
        %v1732 = vpack.c.bf16 %v1716, %v1716
        %v1733 = vpack.c.bf16 %v1717, %v1717
        %v1734 = vpack.c.bf16 %v1718, %v1718
        %v1735 = vpack.c.bf16 %v1719, %v1719
        %v1736 = vpack.c.bf16 %v1720, %v1720
        %v1737 = vpack.c.bf16 %v1721, %v1721
        %v1738 = vpack.c.bf16 %v1722, %v1722
        %v1739 = vpack.c.bf16 %v1723, %v1723
        %v1748 = vunpack.c.l.b16 %v1724
        %v1749 = vunpack.c.l.b16 %v1725
        %v1750 = vunpack.c.l.b16 %v1726
        %v1751 = vunpack.c.l.b16 %v1727
        %v1752 = vunpack.c.l.b16 %v1728
        %v1753 = vunpack.c.l.b16 %v1729
        %v1754 = vunpack.c.l.b16 %v1730
        %v1755 = vunpack.c.l.b16 %v1731
        %v1756 = vpack.c.b16 %v1749, %v1748
        %v1757 = vpack.c.b16 %v1751, %v1750
        %v1758 = vpack.c.b16 %v1753, %v1752
        %v1759 = vpack.c.b16 %v1755, %v1754
        %1760 = vrot.lane.b32.xlu0 %v490, 56
        %v1761 = vpop.permute.xlu0 %1760
        %1762 = vrot.lane.b32.xlu0 %v491, 56
        %v1763 = vpop.permute.xlu0 %1762
        %1764 = vrot.lane.b32.xlu0 %v492, 56
        %v1765 = vpop.permute.xlu0 %1764
        %1766 = vrot.lane.b32.xlu0 %v493, 56
        %v1767 = vpop.permute.xlu0 %1766
        %v1773 = vsel %vm637, %v1756, 0
        %v1776 = vsel %vm637, %v1757, 0
        %v1779 = vsel %vm637, %v1758, 0
        %v1782 = vsel %vm637, %v1759, 0
        %1784 = vmatpush.bf16.msra.mxu0 0
        %1785 = vmatpush.bf16.msra.mxu0 0
        %1786 = vmatpush.bf16.msra.mxu0 0
        %1787 = vmatpush.bf16.msra.mxu0 0
        %1788 = vmatpush.bf16.msra.mxu0 %v1767
        %1789 = vmatpush.bf16.msra.mxu0 %v1765
        %1790 = vmatpush.bf16.msra.mxu0 %v1763
        %1791 = vmatpush.bf16.msra.mxu0 %v1761
        %1792 = vmatmul.bf16.gmra.mxu0 %v1773
        %v1793 = vpop.f32.mrf.mxu0
        %v1794 = vadd.f32 0.0, %v1793
        %v1795 = vpop.f32.mrf.mxu0
        %v1796 = vadd.f32 0.0, %v1795
        %1797 = vmatmul.bf16.gmra.mxu0 %v1776
        %v1798 = vpop.f32.mrf.mxu0
        %v1799 = vadd.f32 0.0, %v1798
        %v1800 = vpop.f32.mrf.mxu0
        %v1801 = vadd.f32 0.0, %v1800
        %1802 = vmatmul.bf16.gmra.mxu0 %v1779
        %v1803 = vpop.f32.mrf.mxu0
        %v1804 = vadd.f32 0.0, %v1803
        %v1805 = vpop.f32.mrf.mxu0
        %v1806 = vadd.f32 0.0, %v1805
        %1807 = vmatmul.bf16.gmra.mxu0 %v1782
        %v1808 = vpop.f32.mrf.mxu0
        %v1809 = vadd.f32 0.0, %v1808
        %v1810 = vpop.f32.mrf.mxu0
        %v1811 = vadd.f32 0.0, %v1810
        %1812 = vdwg.mxu0
        %v1821 = vunpack.c.l.b16 %v1732
        %v1822 = vunpack.c.l.b16 %v1733
        %v1823 = vunpack.c.l.b16 %v1734
        %v1824 = vunpack.c.l.b16 %v1735
        %v1825 = vunpack.c.l.b16 %v1736
        %v1826 = vunpack.c.l.b16 %v1737
        %v1827 = vunpack.c.l.b16 %v1738
        %v1828 = vunpack.c.l.b16 %v1739
        %v1829 = vpack.c.b16 %v1822, %v1821
        %v1830 = vpack.c.b16 %v1824, %v1823
        %v1831 = vpack.c.b16 %v1826, %v1825
        %v1832 = vpack.c.b16 %v1828, %v1827
        %1833 = vrot.lane.b32.xlu0 %v572, 56
        %v1834 = vpop.permute.xlu0 %1833
        %1835 = vrot.lane.b32.xlu0 %v573, 56
        %v1836 = vpop.permute.xlu0 %1835
        %1837 = vrot.lane.b32.xlu0 %v574, 56
        %v1838 = vpop.permute.xlu0 %1837
        %1839 = vrot.lane.b32.xlu0 %v575, 56
        %v1840 = vpop.permute.xlu0 %1839
        %v1846 = vsel %vm637, %v1829, 0
        %v1849 = vsel %vm637, %v1830, 0
        %v1852 = vsel %vm637, %v1831, 0
        %v1855 = vsel %vm637, %v1832, 0
        %1857 = vmatpush.bf16.msra.mxu0 0
        %1858 = vmatpush.bf16.msra.mxu0 0
        %1859 = vmatpush.bf16.msra.mxu0 0
        %1860 = vmatpush.bf16.msra.mxu0 0
        %1861 = vmatpush.bf16.msra.mxu0 %v1840
        %1862 = vmatpush.bf16.msra.mxu0 %v1838
        %1863 = vmatpush.bf16.msra.mxu0 %v1836
        %1864 = vmatpush.bf16.msra.mxu0 %v1834
        %1865 = vmatmul.bf16.gmra.mxu0 %v1846
        %v1866 = vpop.f32.mrf.mxu0
        %v1867 = vadd.f32 0.0, %v1866
        %v1868 = vpop.f32.mrf.mxu0
        %v1869 = vadd.f32 0.0, %v1868
        %1870 = vmatmul.bf16.gmra.mxu0 %v1849
        %v1871 = vpop.f32.mrf.mxu0
        %v1872 = vadd.f32 0.0, %v1871
        %v1873 = vpop.f32.mrf.mxu0
        %v1874 = vadd.f32 0.0, %v1873
        %1875 = vmatmul.bf16.gmra.mxu0 %v1852
        %v1876 = vpop.f32.mrf.mxu0
        %v1877 = vadd.f32 0.0, %v1876
        %v1878 = vpop.f32.mrf.mxu0
        %v1879 = vadd.f32 0.0, %v1878
        %1880 = vmatmul.bf16.gmra.mxu0 %v1855
        %v1881 = vpop.f32.mrf.mxu0
        %v1882 = vadd.f32 0.0, %v1881
        %v1883 = vpop.f32.mrf.mxu0
        %v1884 = vadd.f32 0.0, %v1883
        %1885 = vdwg.mxu0
        %v1886 = vpack.c.bf16 %v1796, %v1794
        %v1887 = vpack.c.bf16 %v1801, %v1799
        %v1888 = vpack.c.bf16 %v1806, %v1804
        %v1889 = vpack.c.bf16 %v1811, %v1809
        %v1890 = vpack.c.bf16 %v1869, %v1867
        %v1891 = vpack.c.bf16 %v1874, %v1872
        %v1892 = vpack.c.bf16 %v1879, %v1877
        %v1893 = vpack.c.bf16 %v1884, %v1882
        %v1894 = vld [vmem:[%s3 + $0x4] sm:$0xf]
        %v1896 = vsel %vm502, %v1886, 0
        %v1899 = vsel %vm502, %v1887, 0
        %v1902 = vsel %vm502, %v1888, 0
        %v1905 = vsel %vm502, %v1889, 0
        %v1908 = vsel %vm502, %v1890, 0
        %v1911 = vsel %vm502, %v1891, 0
        %v1914 = vsel %vm502, %v1892, 0
        %v1917 = vsel %vm502, %v1893, 0
        %vm1919 = vcmask 1043456
        %v1921 = vsel %vm1919, %v1894, 0
        %1923 = vmatpush.bf16.msra.mxu0 0
        %1924 = vmatpush.bf16.msra.mxu0 0
        %1925 = vmatpush.bf16.msra.mxu0 0
        %1926 = vmatpush.bf16.msra.mxu0 0
        %1927 = vmatpush.bf16.msra.mxu0 0
        %1928 = vmatpush.bf16.msra.mxu0 0
        %1929 = vmatpush.bf16.msra.mxu0 0
        %1930 = vmatpush.bf16.msra.mxu0 %v1921
        %1931 = vmatmul.bf16.gmra.mxu0 %v1896
        %v1932 = vpop.f32.mrf.mxu0
        %v1933 = vadd.f32 0.0, %v1932
        %v1934 = vpop.f32.mrf.mxu0
        %v1935 = vadd.f32 0.0, %v1934
        %1936 = vmatmul.bf16.gmra.mxu0 %v1899
        %v1937 = vpop.f32.mrf.mxu0
        %v1938 = vadd.f32 0.0, %v1937
        %v1939 = vpop.f32.mrf.mxu0
        %v1940 = vadd.f32 0.0, %v1939
        %1941 = vmatmul.bf16.gmra.mxu0 %v1902
        %v1942 = vpop.f32.mrf.mxu0
        %v1943 = vadd.f32 0.0, %v1942
        %v1944 = vpop.f32.mrf.mxu0
        %v1945 = vadd.f32 0.0, %v1944
        %1946 = vmatmul.bf16.gmra.mxu0 %v1905
        %v1947 = vpop.f32.mrf.mxu0
        %v1948 = vadd.f32 0.0, %v1947
        %v1949 = vpop.f32.mrf.mxu0
        %v1950 = vadd.f32 0.0, %v1949
        %1951 = vmatmul.bf16.gmra.mxu0 %v1908
        %v1952 = vpop.f32.mrf.mxu0
        %v1953 = vadd.f32 0.0, %v1952
        %v1954 = vpop.f32.mrf.mxu0
        %v1955 = vadd.f32 0.0, %v1954
        %1956 = vmatmul.bf16.gmra.mxu0 %v1911
        %v1957 = vpop.f32.mrf.mxu0
        %v1958 = vadd.f32 0.0, %v1957
        %v1959 = vpop.f32.mrf.mxu0
        %v1960 = vadd.f32 0.0, %v1959
        %1961 = vmatmul.bf16.gmra.mxu0 %v1914
        %v1962 = vpop.f32.mrf.mxu0
        %v1963 = vadd.f32 0.0, %v1962
        %v1964 = vpop.f32.mrf.mxu0
        %v1965 = vadd.f32 0.0, %v1964
        %1966 = vmatmul.bf16.gmra.mxu0 %v1917
        %v1967 = vpop.f32.mrf.mxu0
        %v1968 = vadd.f32 0.0, %v1967
        %v1969 = vpop.f32.mrf.mxu0
        %v1970 = vadd.f32 0.0, %v1969
        %1971 = vdwg.mxu0
        %v1973 = vsel %vm502, %v1184, 0
        %v1976 = vsel %vm502, %v1185, 0
        %v1979 = vsel %vm502, %v1186, 0
        %v1982 = vsel %vm502, %v1187, 0
        %v1985 = vsel %vm502, %v1188, 0
        %v1988 = vsel %vm502, %v1189, 0
        %v1991 = vsel %vm502, %v1190, 0
        %v1994 = vsel %vm502, %v1191, 0
        %v1997 = vsel %vm1919, %v1192, 0
        %1999 = vmatpush.bf16.msra.mxu0 0
        %2000 = vmatpush.bf16.msra.mxu0 0
        %2001 = vmatpush.bf16.msra.mxu0 0
        %2002 = vmatpush.bf16.msra.mxu0 0
        %2003 = vmatpush.bf16.msra.mxu0 0
        %2004 = vmatpush.bf16.msra.mxu0 0
        %2005 = vmatpush.bf16.msra.mxu0 0
        %2006 = vmatpush.bf16.msra.mxu0 %v1997
        %2007 = vmatmul.bf16.gmra.mxu0 %v1973
        %v2008 = vpop.f32.mrf.mxu0
        %v2009 = vadd.f32 %v1933, %v2008
        %v2010 = vpop.f32.mrf.mxu0
        %v2011 = vadd.f32 %v1935, %v2010
        %2012 = vmatmul.bf16.gmra.mxu0 %v1976
        %v2013 = vpop.f32.mrf.mxu0
        %v2014 = vadd.f32 %v1938, %v2013
        %v2015 = vpop.f32.mrf.mxu0
        %v2016 = vadd.f32 %v1940, %v2015
        %2017 = vmatmul.bf16.gmra.mxu0 %v1979
        %v2018 = vpop.f32.mrf.mxu0
        %v2019 = vadd.f32 %v1943, %v2018
        %v2020 = vpop.f32.mrf.mxu0
        %v2021 = vadd.f32 %v1945, %v2020
        %2022 = vmatmul.bf16.gmra.mxu0 %v1982
        %v2023 = vpop.f32.mrf.mxu0
        %v2024 = vadd.f32 %v1948, %v2023
        %v2025 = vpop.f32.mrf.mxu0
        %v2026 = vadd.f32 %v1950, %v2025
        %2027 = vmatmul.bf16.gmra.mxu0 %v1985
        %v2028 = vpop.f32.mrf.mxu0
        %v2029 = vadd.f32 %v1953, %v2028
        %v2030 = vpop.f32.mrf.mxu0
        %v2031 = vadd.f32 %v1955, %v2030
        %2032 = vmatmul.bf16.gmra.mxu0 %v1988
        %v2033 = vpop.f32.mrf.mxu0
        %v2034 = vadd.f32 %v1958, %v2033
        %v2035 = vpop.f32.mrf.mxu0
        %v2036 = vadd.f32 %v1960, %v2035
        %2037 = vmatmul.bf16.gmra.mxu0 %v1991
        %v2038 = vpop.f32.mrf.mxu0
        %v2039 = vadd.f32 %v1963, %v2038
        %v2040 = vpop.f32.mrf.mxu0
        %v2041 = vadd.f32 %v1965, %v2040
        %2042 = vmatmul.bf16.gmra.mxu0 %v1994
        %v2043 = vpop.f32.mrf.mxu0
        %v2044 = vadd.f32 %v1968, %v2043
        %v2045 = vpop.f32.mrf.mxu0
        %v2046 = vadd.f32 %v1970, %v2045
        %2047 = vdwg.mxu0
        %s2048 = scalar_lea.vmem %s5, 128
        %v2049 = vld [vmem:[%s2048] sm:$0xff]
        %v2050 = vld [vmem:[%s2048 + $0x8] sm:$0xff]
        %v2051 = vld [vmem:[%s2048 + $0x10] sm:$0xff]
        %v2052 = vld [vmem:[%s2048 + $0x18] sm:$0xff]
        %v2053 = vld [vmem:[%s2048 + $0x20] sm:$0xff]
        %v2054 = vld [vmem:[%s2048 + $0x28] sm:$0xff]
        %v2055 = vld [vmem:[%s2048 + $0x30] sm:$0xff]
        %v2056 = vld [vmem:[%s2048 + $0x38] sm:$0xff]
        %2057 = vrot.lane.b32.xlu0 %v490, 112
        %v2058 = vpop.permute.xlu0 %2057
        %2059 = vrot.lane.b32.xlu0 %v491, 112
        %v2060 = vpop.permute.xlu0 %2059
        %2061 = vrot.lane.b32.xlu0 %v492, 112
        %v2062 = vpop.permute.xlu0 %2061
        %2063 = vrot.lane.b32.xlu0 %v493, 112
        %v2064 = vpop.permute.xlu0 %2063
        %2065 = vrot.lane.b32.xlu0 %v490, 80
        %v2066 = vpop.permute.xlu0 %2065
        %2067 = vrot.lane.b32.xlu0 %v491, 80
        %v2068 = vpop.permute.xlu0 %2067
        %2069 = vrot.lane.b32.xlu0 %v492, 80
        %v2070 = vpop.permute.xlu0 %2069
        %2071 = vrot.lane.b32.xlu0 %v493, 80
        %v2072 = vpop.permute.xlu0 %2071
        %v2074 = vsel %vm502, %v2058, 0
        %v2077 = vsel %vm502, %v2060, 0
        %v2080 = vsel %vm502, %v2062, 0
        %v2083 = vsel %vm502, %v2064, 0
        %v2086 = vsel %vm502, %v2066, 0
        %v2089 = vsel %vm502, %v2068, 0
        %v2092 = vsel %vm502, %v2070, 0
        %v2095 = vsel %vm502, %v2072, 0
        %2097 = vmatpush.bf16.xpose.msra.mxu0 0
        %2098 = vmatpush.bf16.xpose.msra.mxu0 0
        %2099 = vmatpush.bf16.xpose.msra.mxu0 0
        %2100 = vmatpush.bf16.xpose.msra.mxu0 0
        %2101 = vmatpush.bf16.xpose.msra.mxu0 %v2095
        %2102 = vmatpush.bf16.xpose.msra.mxu0 %v2092
        %2103 = vmatpush.bf16.xpose.msra.mxu0 %v2089
        %2104 = vmatpush.bf16.xpose.msra.mxu0 %v2086
        %2105 = vmatmul.bf16.gmra.mxu0 %v2074
        %v2106 = vpop.f32.mrf.mxu0
        %v2107 = vadd.f32 %v2049, %v2106
        %v2108 = vpop.f32.mrf.mxu0
        %v2109 = vadd.f32 %v2050, %v2108
        %2110 = vmatmul.bf16.gmra.mxu0 %v2077
        %v2111 = vpop.f32.mrf.mxu0
        %v2112 = vadd.f32 %v2051, %v2111
        %v2113 = vpop.f32.mrf.mxu0
        %v2114 = vadd.f32 %v2052, %v2113
        %2115 = vmatmul.bf16.gmra.mxu0 %v2080
        %v2116 = vpop.f32.mrf.mxu0
        %v2117 = vadd.f32 %v2053, %v2116
        %v2118 = vpop.f32.mrf.mxu0
        %v2119 = vadd.f32 %v2054, %v2118
        %2120 = vmatmul.bf16.gmra.mxu0 %v2083
        %v2121 = vpop.f32.mrf.mxu0
        %v2122 = vadd.f32 %v2055, %v2121
        %v2123 = vpop.f32.mrf.mxu0
        %v2124 = vadd.f32 %v2056, %v2123
        %2125 = vdwg.mxu0
        %2126 = vrot.lane.b32.xlu0 %v572, 112
        %v2127 = vpop.permute.xlu0 %2126
        %2128 = vrot.lane.b32.xlu0 %v573, 112
        %v2129 = vpop.permute.xlu0 %2128
        %2130 = vrot.lane.b32.xlu0 %v574, 112
        %v2131 = vpop.permute.xlu0 %2130
        %2132 = vrot.lane.b32.xlu0 %v575, 112
        %v2133 = vpop.permute.xlu0 %2132
        %2134 = vrot.lane.b32.xlu0 %v572, 80
        %v2135 = vpop.permute.xlu0 %2134
        %2136 = vrot.lane.b32.xlu0 %v573, 80
        %v2137 = vpop.permute.xlu0 %2136
        %2138 = vrot.lane.b32.xlu0 %v574, 80
        %v2139 = vpop.permute.xlu0 %2138
        %2140 = vrot.lane.b32.xlu0 %v575, 80
        %v2141 = vpop.permute.xlu0 %2140
        %v2143 = vsel %vm502, %v2127, 0
        %v2146 = vsel %vm502, %v2129, 0
        %v2149 = vsel %vm502, %v2131, 0
        %v2152 = vsel %vm502, %v2133, 0
        %v2155 = vsel %vm502, %v2135, 0
        %v2158 = vsel %vm502, %v2137, 0
        %v2161 = vsel %vm502, %v2139, 0
        %v2164 = vsel %vm502, %v2141, 0
        %2166 = vmatpush.bf16.xpose.msra.mxu0 0
        %2167 = vmatpush.bf16.xpose.msra.mxu0 0
        %2168 = vmatpush.bf16.xpose.msra.mxu0 0
        %2169 = vmatpush.bf16.xpose.msra.mxu0 0
        %2170 = vmatpush.bf16.xpose.msra.mxu0 %v2164
        %2171 = vmatpush.bf16.xpose.msra.mxu0 %v2161
        %2172 = vmatpush.bf16.xpose.msra.mxu0 %v2158
        %2173 = vmatpush.bf16.xpose.msra.mxu0 %v2155
        %2174 = vmatmul.bf16.gmra.mxu0 %v2143
        %v2175 = vpop.f32.mrf.mxu0
        %v2176 = vadd.f32 %v2049, %v2175
        %v2177 = vpop.f32.mrf.mxu0
        %v2178 = vadd.f32 %v2050, %v2177
        %2179 = vmatmul.bf16.gmra.mxu0 %v2146
        %v2180 = vpop.f32.mrf.mxu0
        %v2181 = vadd.f32 %v2051, %v2180
        %v2182 = vpop.f32.mrf.mxu0
        %v2183 = vadd.f32 %v2052, %v2182
        %2184 = vmatmul.bf16.gmra.mxu0 %v2149
        %v2185 = vpop.f32.mrf.mxu0
        %v2186 = vadd.f32 %v2053, %v2185
        %v2187 = vpop.f32.mrf.mxu0
        %v2188 = vadd.f32 %v2054, %v2187
        %2189 = vmatmul.bf16.gmra.mxu0 %v2152
        %v2190 = vpop.f32.mrf.mxu0
        %v2191 = vadd.f32 %v2055, %v2190
        %v2192 = vpop.f32.mrf.mxu0
        %v2193 = vadd.f32 %v2056, %v2192
        %2194 = vdwg.mxu0
        %v2195 = vsel %vm637, %v2107, -inf
        %2196 = vmax.xlane.f32.xlu0 %v2195
        %v2197 = vpop.xlane.xlu0 %2196
        %v2198 = vsel %vm637, %v2109, -inf
        %2199 = vmax.xlane.f32.xlu0 %v2198
        %v2200 = vpop.xlane.xlu0 %2199
        %v2201 = vsel %vm637, %v2112, -inf
        %2202 = vmax.xlane.f32.xlu0 %v2201
        %v2203 = vpop.xlane.xlu0 %2202
        %v2204 = vsel %vm637, %v2114, -inf
        %2205 = vmax.xlane.f32.xlu0 %v2204
        %v2206 = vpop.xlane.xlu0 %2205
        %v2207 = vsel %vm637, %v2117, -inf
        %2208 = vmax.xlane.f32.xlu0 %v2207
        %v2209 = vpop.xlane.xlu0 %2208
        %v2210 = vsel %vm637, %v2119, -inf
        %2211 = vmax.xlane.f32.xlu0 %v2210
        %v2212 = vpop.xlane.xlu0 %2211
        %v2213 = vsel %vm637, %v2122, -inf
        %2214 = vmax.xlane.f32.xlu0 %v2213
        %v2215 = vpop.xlane.xlu0 %2214
        %v2216 = vsel %vm637, %v2124, -inf
        %2217 = vmax.xlane.f32.xlu0 %v2216
        %v2218 = vpop.xlane.xlu0 %2217
        %v2219 = vsel %vm637, %v2176, -inf
        %2220 = vmax.xlane.f32.xlu0 %v2219
        %v2221 = vpop.xlane.xlu0 %2220
        %v2222 = vsel %vm637, %v2178, -inf
        %2223 = vmax.xlane.f32.xlu0 %v2222
        %v2224 = vpop.xlane.xlu0 %2223
        %v2225 = vsel %vm637, %v2181, -inf
        %2226 = vmax.xlane.f32.xlu0 %v2225
        %v2227 = vpop.xlane.xlu0 %2226
        %v2228 = vsel %vm637, %v2183, -inf
        %2229 = vmax.xlane.f32.xlu0 %v2228
        %v2230 = vpop.xlane.xlu0 %2229
        %v2231 = vsel %vm637, %v2186, -inf
        %2232 = vmax.xlane.f32.xlu0 %v2231
        %v2233 = vpop.xlane.xlu0 %2232
        %v2234 = vsel %vm637, %v2188, -inf
        %2235 = vmax.xlane.f32.xlu0 %v2234
        %v2236 = vpop.xlane.xlu0 %2235
        %v2237 = vsel %vm637, %v2191, -inf
        %2238 = vmax.xlane.f32.xlu0 %v2237
        %v2239 = vpop.xlane.xlu0 %2238
        %v2240 = vsel %vm637, %v2193, -inf
        %2241 = vmax.xlane.f32.xlu0 %v2240
        %v2242 = vpop.xlane.xlu0 %2241
        %v2243 = vsub.f32 %v2107, %v2197
        %v2244 = vsub.f32 %v2109, %v2200
        %v2245 = vsub.f32 %v2112, %v2203
        %v2246 = vsub.f32 %v2114, %v2206
        %v2247 = vsub.f32 %v2117, %v2209
        %v2248 = vsub.f32 %v2119, %v2212
        %v2249 = vsub.f32 %v2122, %v2215
        %v2250 = vsub.f32 %v2124, %v2218
        %v2251 = vsub.f32 %v2176, %v2221
        %v2252 = vsub.f32 %v2178, %v2224
        %v2253 = vsub.f32 %v2181, %v2227
        %v2254 = vsub.f32 %v2183, %v2230
        %v2255 = vsub.f32 %v2186, %v2233
        %v2256 = vsub.f32 %v2188, %v2236
        %v2257 = vsub.f32 %v2191, %v2239
        %v2258 = vsub.f32 %v2193, %v2242
        %v2259 = vmul.f32 %v2243, 1.442695
        %v2260 = vpow.pop %v2259
        %v2261 = vmul.f32 %v2244, 1.442695
        %v2262 = vpow.pop %v2261
        %v2263 = vmul.f32 %v2245, 1.442695
        %v2264 = vpow.pop %v2263
        %v2265 = vmul.f32 %v2246, 1.442695
        %v2266 = vpow.pop %v2265
        %v2267 = vmul.f32 %v2247, 1.442695
        %v2268 = vpow.pop %v2267
        %v2269 = vmul.f32 %v2248, 1.442695
        %v2270 = vpow.pop %v2269
        %v2271 = vmul.f32 %v2249, 1.442695
        %v2272 = vpow.pop %v2271
        %v2273 = vmul.f32 %v2250, 1.442695
        %v2274 = vpow.pop %v2273
        %v2275 = vmul.f32 %v2251, 1.442695
        %v2276 = vpow.pop %v2275
        %v2277 = vmul.f32 %v2252, 1.442695
        %v2278 = vpow.pop %v2277
        %v2279 = vmul.f32 %v2253, 1.442695
        %v2280 = vpow.pop %v2279
        %v2281 = vmul.f32 %v2254, 1.442695
        %v2282 = vpow.pop %v2281
        %v2283 = vmul.f32 %v2255, 1.442695
        %v2284 = vpow.pop %v2283
        %v2285 = vmul.f32 %v2256, 1.442695
        %v2286 = vpow.pop %v2285
        %v2287 = vmul.f32 %v2257, 1.442695
        %v2288 = vpow.pop %v2287
        %v2289 = vmul.f32 %v2258, 1.442695
        %v2290 = vpow.pop %v2289
        %v2291 = vsel %vm637, %v2260, 0.0
        %2292 = vadd.xlane.f32.xlu0 %v2291
        %v2293 = vpop.xlane.xlu0 %2292
        %v2294 = vsel %vm637, %v2262, 0.0
        %2295 = vadd.xlane.f32.xlu0 %v2294
        %v2296 = vpop.xlane.xlu0 %2295
        %v2297 = vsel %vm637, %v2264, 0.0
        %2298 = vadd.xlane.f32.xlu0 %v2297
        %v2299 = vpop.xlane.xlu0 %2298
        %v2300 = vsel %vm637, %v2266, 0.0
        %2301 = vadd.xlane.f32.xlu0 %v2300
        %v2302 = vpop.xlane.xlu0 %2301
        %v2303 = vsel %vm637, %v2268, 0.0
        %2304 = vadd.xlane.f32.xlu0 %v2303
        %v2305 = vpop.xlane.xlu0 %2304
        %v2306 = vsel %vm637, %v2270, 0.0
        %2307 = vadd.xlane.f32.xlu0 %v2306
        %v2308 = vpop.xlane.xlu0 %2307
        %v2309 = vsel %vm637, %v2272, 0.0
        %2310 = vadd.xlane.f32.xlu0 %v2309
        %v2311 = vpop.xlane.xlu0 %2310
        %v2312 = vsel %vm637, %v2274, 0.0
        %2313 = vadd.xlane.f32.xlu0 %v2312
        %v2314 = vpop.xlane.xlu0 %2313
        %v2315 = vsel %vm637, %v2276, 0.0
        %2316 = vadd.xlane.f32.xlu0 %v2315
        %v2317 = vpop.xlane.xlu0 %2316
        %v2318 = vsel %vm637, %v2278, 0.0
        %2319 = vadd.xlane.f32.xlu0 %v2318
        %v2320 = vpop.xlane.xlu0 %2319
        %v2321 = vsel %vm637, %v2280, 0.0
        %2322 = vadd.xlane.f32.xlu0 %v2321
        %v2323 = vpop.xlane.xlu0 %2322
        %v2324 = vsel %vm637, %v2282, 0.0
        %2325 = vadd.xlane.f32.xlu0 %v2324
        %v2326 = vpop.xlane.xlu0 %2325
        %v2327 = vsel %vm637, %v2284, 0.0
        %2328 = vadd.xlane.f32.xlu0 %v2327
        %v2329 = vpop.xlane.xlu0 %2328
        %v2330 = vsel %vm637, %v2286, 0.0
        %2331 = vadd.xlane.f32.xlu0 %v2330
        %v2332 = vpop.xlane.xlu0 %2331
        %v2333 = vsel %vm637, %v2288, 0.0
        %2334 = vadd.xlane.f32.xlu0 %v2333
        %v2335 = vpop.xlane.xlu0 %2334
        %v2336 = vsel %vm637, %v2290, 0.0
        %2337 = vadd.xlane.f32.xlu0 %v2336
        %v2338 = vpop.xlane.xlu0 %2337
        %v2339 = vrcp.pop %v2293
        %v2340 = vmul.f32 %v2293, %v2339
        %v2341 = vsub.f32 1.0, %v2340
        %v2342 = vmul.f32 %v2339, %v2341
        %v2343 = vadd.f32 %v2339, %v2342
        %vm2344 = vweird.f32 %v2293
        %vm2345 = vweird.f32 %v2339
        %vm2346 = vmor %vm2344, %vm2345
        %v2347 = vsel %vm2346, %v2339, %v2343
        %v2348 = vand.u32 2147483647, %v2293
        %vm2349 = vcmp.eq.f32.partialorder %v2348, 8.507059e+37
        %v2350 = vand.u32 %v2293, 2147483648
        %v2351 = vor.u32 1.1754944e-38, %v2350
        %v2352 = vsel %vm2349, %v2351, %v2347
        %v2353 = vrcp.pop %v2296
        %v2354 = vmul.f32 %v2296, %v2353
        %v2355 = vsub.f32 1.0, %v2354
        %v2356 = vmul.f32 %v2353, %v2355
        %v2357 = vadd.f32 %v2353, %v2356
        %vm2358 = vweird.f32 %v2296
        %vm2359 = vweird.f32 %v2353
        %vm2360 = vmor %vm2358, %vm2359
        %v2361 = vsel %vm2360, %v2353, %v2357
        %v2362 = vand.u32 2147483647, %v2296
        %vm2363 = vcmp.eq.f32.partialorder %v2362, 8.507059e+37
        %v2364 = vand.u32 %v2296, 2147483648
        %v2365 = vor.u32 1.1754944e-38, %v2364
        %v2366 = vsel %vm2363, %v2365, %v2361
        %v2367 = vrcp.pop %v2299
        %v2368 = vmul.f32 %v2299, %v2367
        %v2369 = vsub.f32 1.0, %v2368
        %v2370 = vmul.f32 %v2367, %v2369
        %v2371 = vadd.f32 %v2367, %v2370
        %vm2372 = vweird.f32 %v2299
        %vm2373 = vweird.f32 %v2367
        %vm2374 = vmor %vm2372, %vm2373
        %v2375 = vsel %vm2374, %v2367, %v2371
        %v2376 = vand.u32 2147483647, %v2299
        %vm2377 = vcmp.eq.f32.partialorder %v2376, 8.507059e+37
        %v2378 = vand.u32 %v2299, 2147483648
        %v2379 = vor.u32 1.1754944e-38, %v2378
        %v2380 = vsel %vm2377, %v2379, %v2375
        %v2381 = vrcp.pop %v2302
        %v2382 = vmul.f32 %v2302, %v2381
        %v2383 = vsub.f32 1.0, %v2382
        %v2384 = vmul.f32 %v2381, %v2383
        %v2385 = vadd.f32 %v2381, %v2384
        %vm2386 = vweird.f32 %v2302
        %vm2387 = vweird.f32 %v2381
        %vm2388 = vmor %vm2386, %vm2387
        %v2389 = vsel %vm2388, %v2381, %v2385
        %v2390 = vand.u32 2147483647, %v2302
        %vm2391 = vcmp.eq.f32.partialorder %v2390, 8.507059e+37
        %v2392 = vand.u32 %v2302, 2147483648
        %v2393 = vor.u32 1.1754944e-38, %v2392
        %v2394 = vsel %vm2391, %v2393, %v2389
        %v2395 = vrcp.pop %v2305
        %v2396 = vmul.f32 %v2305, %v2395
        %v2397 = vsub.f32 1.0, %v2396
        %v2398 = vmul.f32 %v2395, %v2397
        %v2399 = vadd.f32 %v2395, %v2398
        %vm2400 = vweird.f32 %v2305
        %vm2401 = vweird.f32 %v2395
        %vm2402 = vmor %vm2400, %vm2401
        %v2403 = vsel %vm2402, %v2395, %v2399
        %v2404 = vand.u32 2147483647, %v2305
        %vm2405 = vcmp.eq.f32.partialorder %v2404, 8.507059e+37
        %v2406 = vand.u32 %v2305, 2147483648
        %v2407 = vor.u32 1.1754944e-38, %v2406
        %v2408 = vsel %vm2405, %v2407, %v2403
        %v2409 = vrcp.pop %v2308
        %v2410 = vmul.f32 %v2308, %v2409
        %v2411 = vsub.f32 1.0, %v2410
        %v2412 = vmul.f32 %v2409, %v2411
        %v2413 = vadd.f32 %v2409, %v2412
        %vm2414 = vweird.f32 %v2308
        %vm2415 = vweird.f32 %v2409
        %vm2416 = vmor %vm2414, %vm2415
        %v2417 = vsel %vm2416, %v2409, %v2413
        %v2418 = vand.u32 2147483647, %v2308
        %vm2419 = vcmp.eq.f32.partialorder %v2418, 8.507059e+37
        %v2420 = vand.u32 %v2308, 2147483648
        %v2421 = vor.u32 1.1754944e-38, %v2420
        %v2422 = vsel %vm2419, %v2421, %v2417
        %v2423 = vrcp.pop %v2311
        %v2424 = vmul.f32 %v2311, %v2423
        %v2425 = vsub.f32 1.0, %v2424
        %v2426 = vmul.f32 %v2423, %v2425
        %v2427 = vadd.f32 %v2423, %v2426
        %vm2428 = vweird.f32 %v2311
        %vm2429 = vweird.f32 %v2423
        %vm2430 = vmor %vm2428, %vm2429
        %v2431 = vsel %vm2430, %v2423, %v2427
        %v2432 = vand.u32 2147483647, %v2311
        %vm2433 = vcmp.eq.f32.partialorder %v2432, 8.507059e+37
        %v2434 = vand.u32 %v2311, 2147483648
        %v2435 = vor.u32 1.1754944e-38, %v2434
        %v2436 = vsel %vm2433, %v2435, %v2431
        %v2437 = vrcp.pop %v2314
        %v2438 = vmul.f32 %v2314, %v2437
        %v2439 = vsub.f32 1.0, %v2438
        %v2440 = vmul.f32 %v2437, %v2439
        %v2441 = vadd.f32 %v2437, %v2440
        %vm2442 = vweird.f32 %v2314
        %vm2443 = vweird.f32 %v2437
        %vm2444 = vmor %vm2442, %vm2443
        %v2445 = vsel %vm2444, %v2437, %v2441
        %v2446 = vand.u32 2147483647, %v2314
        %vm2447 = vcmp.eq.f32.partialorder %v2446, 8.507059e+37
        %v2448 = vand.u32 %v2314, 2147483648
        %v2449 = vor.u32 1.1754944e-38, %v2448
        %v2450 = vsel %vm2447, %v2449, %v2445
        %v2451 = vrcp.pop %v2317
        %v2452 = vmul.f32 %v2317, %v2451
        %v2453 = vsub.f32 1.0, %v2452
        %v2454 = vmul.f32 %v2451, %v2453
        %v2455 = vadd.f32 %v2451, %v2454
        %vm2456 = vweird.f32 %v2317
        %vm2457 = vweird.f32 %v2451
        %vm2458 = vmor %vm2456, %vm2457
        %v2459 = vsel %vm2458, %v2451, %v2455
        %v2460 = vand.u32 2147483647, %v2317
        %vm2461 = vcmp.eq.f32.partialorder %v2460, 8.507059e+37
        %v2462 = vand.u32 %v2317, 2147483648
        %v2463 = vor.u32 1.1754944e-38, %v2462
        %v2464 = vsel %vm2461, %v2463, %v2459
        %v2465 = vrcp.pop %v2320
        %v2466 = vmul.f32 %v2320, %v2465
        %v2467 = vsub.f32 1.0, %v2466
        %v2468 = vmul.f32 %v2465, %v2467
        %v2469 = vadd.f32 %v2465, %v2468
        %vm2470 = vweird.f32 %v2320
        %vm2471 = vweird.f32 %v2465
        %vm2472 = vmor %vm2470, %vm2471
        %v2473 = vsel %vm2472, %v2465, %v2469
        %v2474 = vand.u32 2147483647, %v2320
        %vm2475 = vcmp.eq.f32.partialorder %v2474, 8.507059e+37
        %v2476 = vand.u32 %v2320, 2147483648
        %v2477 = vor.u32 1.1754944e-38, %v2476
        %v2478 = vsel %vm2475, %v2477, %v2473
        %v2479 = vrcp.pop %v2323
        %v2480 = vmul.f32 %v2323, %v2479
        %v2481 = vsub.f32 1.0, %v2480
        %v2482 = vmul.f32 %v2479, %v2481
        %v2483 = vadd.f32 %v2479, %v2482
        %vm2484 = vweird.f32 %v2323
        %vm2485 = vweird.f32 %v2479
        %vm2486 = vmor %vm2484, %vm2485
        %v2487 = vsel %vm2486, %v2479, %v2483
        %v2488 = vand.u32 2147483647, %v2323
        %vm2489 = vcmp.eq.f32.partialorder %v2488, 8.507059e+37
        %v2490 = vand.u32 %v2323, 2147483648
        %v2491 = vor.u32 1.1754944e-38, %v2490
        %v2492 = vsel %vm2489, %v2491, %v2487
        %v2493 = vrcp.pop %v2326
        %v2494 = vmul.f32 %v2326, %v2493
        %v2495 = vsub.f32 1.0, %v2494
        %v2496 = vmul.f32 %v2493, %v2495
        %v2497 = vadd.f32 %v2493, %v2496
        %vm2498 = vweird.f32 %v2326
        %vm2499 = vweird.f32 %v2493
        %vm2500 = vmor %vm2498, %vm2499
        %v2501 = vsel %vm2500, %v2493, %v2497
        %v2502 = vand.u32 2147483647, %v2326
        %vm2503 = vcmp.eq.f32.partialorder %v2502, 8.507059e+37
        %v2504 = vand.u32 %v2326, 2147483648
        %v2505 = vor.u32 1.1754944e-38, %v2504
        %v2506 = vsel %vm2503, %v2505, %v2501
        %v2507 = vrcp.pop %v2329
        %v2508 = vmul.f32 %v2329, %v2507
        %v2509 = vsub.f32 1.0, %v2508
        %v2510 = vmul.f32 %v2507, %v2509
        %v2511 = vadd.f32 %v2507, %v2510
        %vm2512 = vweird.f32 %v2329
        %vm2513 = vweird.f32 %v2507
        %vm2514 = vmor %vm2512, %vm2513
        %v2515 = vsel %vm2514, %v2507, %v2511
        %v2516 = vand.u32 2147483647, %v2329
        %vm2517 = vcmp.eq.f32.partialorder %v2516, 8.507059e+37
        %v2518 = vand.u32 %v2329, 2147483648
        %v2519 = vor.u32 1.1754944e-38, %v2518
        %v2520 = vsel %vm2517, %v2519, %v2515
        %v2521 = vrcp.pop %v2332
        %v2522 = vmul.f32 %v2332, %v2521
        %v2523 = vsub.f32 1.0, %v2522
        %v2524 = vmul.f32 %v2521, %v2523
        %v2525 = vadd.f32 %v2521, %v2524
        %vm2526 = vweird.f32 %v2332
        %vm2527 = vweird.f32 %v2521
        %vm2528 = vmor %vm2526, %vm2527
        %v2529 = vsel %vm2528, %v2521, %v2525
        %v2530 = vand.u32 2147483647, %v2332
        %vm2531 = vcmp.eq.f32.partialorder %v2530, 8.507059e+37
        %v2532 = vand.u32 %v2332, 2147483648
        %v2533 = vor.u32 1.1754944e-38, %v2532
        %v2534 = vsel %vm2531, %v2533, %v2529
        %v2535 = vrcp.pop %v2335
        %v2536 = vmul.f32 %v2335, %v2535
        %v2537 = vsub.f32 1.0, %v2536
        %v2538 = vmul.f32 %v2535, %v2537
        %v2539 = vadd.f32 %v2535, %v2538
        %vm2540 = vweird.f32 %v2335
        %vm2541 = vweird.f32 %v2535
        %vm2542 = vmor %vm2540, %vm2541
        %v2543 = vsel %vm2542, %v2535, %v2539
        %v2544 = vand.u32 2147483647, %v2335
        %vm2545 = vcmp.eq.f32.partialorder %v2544, 8.507059e+37
        %v2546 = vand.u32 %v2335, 2147483648
        %v2547 = vor.u32 1.1754944e-38, %v2546
        %v2548 = vsel %vm2545, %v2547, %v2543
        %v2549 = vrcp.pop %v2338
        %v2550 = vmul.f32 %v2338, %v2549
        %v2551 = vsub.f32 1.0, %v2550
        %v2552 = vmul.f32 %v2549, %v2551
        %v2553 = vadd.f32 %v2549, %v2552
        %vm2554 = vweird.f32 %v2338
        %vm2555 = vweird.f32 %v2549
        %vm2556 = vmor %vm2554, %vm2555
        %v2557 = vsel %vm2556, %v2549, %v2553
        %v2558 = vand.u32 2147483647, %v2338
        %vm2559 = vcmp.eq.f32.partialorder %v2558, 8.507059e+37
        %v2560 = vand.u32 %v2338, 2147483648
        %v2561 = vor.u32 1.1754944e-38, %v2560
        %v2562 = vsel %vm2559, %v2561, %v2557
        %v2563 = vmul.f32 %v2260, %v2352
        %v2564 = vmul.f32 %v2262, %v2366
        %v2565 = vmul.f32 %v2264, %v2380
        %v2566 = vmul.f32 %v2266, %v2394
        %v2567 = vmul.f32 %v2268, %v2408
        %v2568 = vmul.f32 %v2270, %v2422
        %v2569 = vmul.f32 %v2272, %v2436
        %v2570 = vmul.f32 %v2274, %v2450
        %v2571 = vmul.f32 %v2276, %v2464
        %v2572 = vmul.f32 %v2278, %v2478
        %v2573 = vmul.f32 %v2280, %v2492
        %v2574 = vmul.f32 %v2282, %v2506
        %v2575 = vmul.f32 %v2284, %v2520
        %v2576 = vmul.f32 %v2286, %v2534
        %v2577 = vmul.f32 %v2288, %v2548
        %v2578 = vmul.f32 %v2290, %v2562
        %v2579 = vpack.c.bf16 %v2563, %v2563
        %v2580 = vpack.c.bf16 %v2564, %v2564
        %v2581 = vpack.c.bf16 %v2565, %v2565
        %v2582 = vpack.c.bf16 %v2566, %v2566
        %v2583 = vpack.c.bf16 %v2567, %v2567
        %v2584 = vpack.c.bf16 %v2568, %v2568
        %v2585 = vpack.c.bf16 %v2569, %v2569
        %v2586 = vpack.c.bf16 %v2570, %v2570
        %v2587 = vpack.c.bf16 %v2571, %v2571
        %v2588 = vpack.c.bf16 %v2572, %v2572
        %v2589 = vpack.c.bf16 %v2573, %v2573
        %v2590 = vpack.c.bf16 %v2574, %v2574
        %v2591 = vpack.c.bf16 %v2575, %v2575
        %v2592 = vpack.c.bf16 %v2576, %v2576
        %v2593 = vpack.c.bf16 %v2577, %v2577
        %v2594 = vpack.c.bf16 %v2578, %v2578
        %v2603 = vunpack.c.l.b16 %v2579
        %v2604 = vunpack.c.l.b16 %v2580
        %v2605 = vunpack.c.l.b16 %v2581
        %v2606 = vunpack.c.l.b16 %v2582
        %v2607 = vunpack.c.l.b16 %v2583
        %v2608 = vunpack.c.l.b16 %v2584
        %v2609 = vunpack.c.l.b16 %v2585
        %v2610 = vunpack.c.l.b16 %v2586
        %v2611 = vpack.c.b16 %v2604, %v2603
        %v2612 = vpack.c.b16 %v2606, %v2605
        %v2613 = vpack.c.b16 %v2608, %v2607
        %v2614 = vpack.c.b16 %v2610, %v2609
        %2615 = vrot.lane.b32.xlu0 %v490, 48
        %v2616 = vpop.permute.xlu0 %2615
        %2617 = vrot.lane.b32.xlu0 %v491, 48
        %v2618 = vpop.permute.xlu0 %2617
        %2619 = vrot.lane.b32.xlu0 %v492, 48
        %v2620 = vpop.permute.xlu0 %2619
        %2621 = vrot.lane.b32.xlu0 %v493, 48
        %v2622 = vpop.permute.xlu0 %2621
        %v2628 = vsel %vm637, %v2611, 0
        %v2631 = vsel %vm637, %v2612, 0
        %v2634 = vsel %vm637, %v2613, 0
        %v2637 = vsel %vm637, %v2614, 0
        %2639 = vmatpush.bf16.msra.mxu0 0
        %2640 = vmatpush.bf16.msra.mxu0 0
        %2641 = vmatpush.bf16.msra.mxu0 0
        %2642 = vmatpush.bf16.msra.mxu0 0
        %2643 = vmatpush.bf16.msra.mxu0 %v2622
        %2644 = vmatpush.bf16.msra.mxu0 %v2620
        %2645 = vmatpush.bf16.msra.mxu0 %v2618
        %2646 = vmatpush.bf16.msra.mxu0 %v2616
        %2647 = vmatmul.bf16.gmra.mxu0 %v2628
        %v2648 = vpop.f32.mrf.mxu0
        %v2649 = vadd.f32 0.0, %v2648
        %v2650 = vpop.f32.mrf.mxu0
        %v2651 = vadd.f32 0.0, %v2650
        %2652 = vmatmul.bf16.gmra.mxu0 %v2631
        %v2653 = vpop.f32.mrf.mxu0
        %v2654 = vadd.f32 0.0, %v2653
        %v2655 = vpop.f32.mrf.mxu0
        %v2656 = vadd.f32 0.0, %v2655
        %2657 = vmatmul.bf16.gmra.mxu0 %v2634
        %v2658 = vpop.f32.mrf.mxu0
        %v2659 = vadd.f32 0.0, %v2658
        %v2660 = vpop.f32.mrf.mxu0
        %v2661 = vadd.f32 0.0, %v2660
        %2662 = vmatmul.bf16.gmra.mxu0 %v2637
        %v2663 = vpop.f32.mrf.mxu0
        %v2664 = vadd.f32 0.0, %v2663
        %v2665 = vpop.f32.mrf.mxu0
        %v2666 = vadd.f32 0.0, %v2665
        %2667 = vdwg.mxu0
        %v2676 = vunpack.c.l.b16 %v2587
        %v2677 = vunpack.c.l.b16 %v2588
        %v2678 = vunpack.c.l.b16 %v2589
        %v2679 = vunpack.c.l.b16 %v2590
        %v2680 = vunpack.c.l.b16 %v2591
        %v2681 = vunpack.c.l.b16 %v2592
        %v2682 = vunpack.c.l.b16 %v2593
        %v2683 = vunpack.c.l.b16 %v2594
        %v2684 = vpack.c.b16 %v2677, %v2676
        %v2685 = vpack.c.b16 %v2679, %v2678
        %v2686 = vpack.c.b16 %v2681, %v2680
        %v2687 = vpack.c.b16 %v2683, %v2682
        %2688 = vrot.lane.b32.xlu0 %v572, 48
        %v2689 = vpop.permute.xlu0 %2688
        %2690 = vrot.lane.b32.xlu0 %v573, 48
        %v2691 = vpop.permute.xlu0 %2690
        %2692 = vrot.lane.b32.xlu0 %v574, 48
        %v2693 = vpop.permute.xlu0 %2692
        %2694 = vrot.lane.b32.xlu0 %v575, 48
        %v2695 = vpop.permute.xlu0 %2694
        %v2701 = vsel %vm637, %v2684, 0
        %v2704 = vsel %vm637, %v2685, 0
        %v2707 = vsel %vm637, %v2686, 0
        %v2710 = vsel %vm637, %v2687, 0
        %2712 = vmatpush.bf16.msra.mxu0 0
        %2713 = vmatpush.bf16.msra.mxu0 0
        %2714 = vmatpush.bf16.msra.mxu0 0
        %2715 = vmatpush.bf16.msra.mxu0 0
        %2716 = vmatpush.bf16.msra.mxu0 %v2695
        %2717 = vmatpush.bf16.msra.mxu0 %v2693
        %2718 = vmatpush.bf16.msra.mxu0 %v2691
        %2719 = vmatpush.bf16.msra.mxu0 %v2689
        %2720 = vmatmul.bf16.gmra.mxu0 %v2701
        %v2721 = vpop.f32.mrf.mxu0
        %v2722 = vadd.f32 0.0, %v2721
        %v2723 = vpop.f32.mrf.mxu0
        %v2724 = vadd.f32 0.0, %v2723
        %2725 = vmatmul.bf16.gmra.mxu0 %v2704
        %v2726 = vpop.f32.mrf.mxu0
        %v2727 = vadd.f32 0.0, %v2726
        %v2728 = vpop.f32.mrf.mxu0
        %v2729 = vadd.f32 0.0, %v2728
        %2730 = vmatmul.bf16.gmra.mxu0 %v2707
        %v2731 = vpop.f32.mrf.mxu0
        %v2732 = vadd.f32 0.0, %v2731
        %v2733 = vpop.f32.mrf.mxu0
        %v2734 = vadd.f32 0.0, %v2733
        %2735 = vmatmul.bf16.gmra.mxu0 %v2710
        %v2736 = vpop.f32.mrf.mxu0
        %v2737 = vadd.f32 0.0, %v2736
        %v2738 = vpop.f32.mrf.mxu0
        %v2739 = vadd.f32 0.0, %v2738
        %2740 = vdwg.mxu0
        %v2741 = vpack.c.bf16 %v2651, %v2649
        %v2742 = vpack.c.bf16 %v2656, %v2654
        %v2743 = vpack.c.bf16 %v2661, %v2659
        %v2744 = vpack.c.bf16 %v2666, %v2664
        %v2745 = vpack.c.bf16 %v2724, %v2722
        %v2746 = vpack.c.bf16 %v2729, %v2727
        %v2747 = vpack.c.bf16 %v2734, %v2732
        %v2748 = vpack.c.bf16 %v2739, %v2737
        %v2749 = vld [vmem:[%s3 + $0x8] sm:$0xf]
        %v2751 = vsel %vm502, %v2741, 0
        %v2754 = vsel %vm502, %v2742, 0
        %v2757 = vsel %vm502, %v2743, 0
        %v2760 = vsel %vm502, %v2744, 0
        %v2763 = vsel %vm502, %v2745, 0
        %v2766 = vsel %vm502, %v2746, 0
        %v2769 = vsel %vm502, %v2747, 0
        %v2772 = vsel %vm502, %v2748, 0
        %v2775 = vsel %vm1919, %v2749, 0
        %2777 = vmatpush.bf16.msra.mxu0 0
        %2778 = vmatpush.bf16.msra.mxu0 0
        %2779 = vmatpush.bf16.msra.mxu0 0
        %2780 = vmatpush.bf16.msra.mxu0 0
        %2781 = vmatpush.bf16.msra.mxu0 0
        %2782 = vmatpush.bf16.msra.mxu0 0
        %2783 = vmatpush.bf16.msra.mxu0 0
        %2784 = vmatpush.bf16.msra.mxu0 %v2775
        %2785 = vmatmul.bf16.gmra.mxu0 %v2751
        %v2786 = vpop.f32.mrf.mxu0
        %v2787 = vadd.f32 0.0, %v2786
        %v2788 = vpop.f32.mrf.mxu0
        %v2789 = vadd.f32 0.0, %v2788
        %2790 = vmatmul.bf16.gmra.mxu0 %v2754
        %v2791 = vpop.f32.mrf.mxu0
        %v2792 = vadd.f32 0.0, %v2791
        %v2793 = vpop.f32.mrf.mxu0
        %v2794 = vadd.f32 0.0, %v2793
        %2795 = vmatmul.bf16.gmra.mxu0 %v2757
        %v2796 = vpop.f32.mrf.mxu0
        %v2797 = vadd.f32 0.0, %v2796
        %v2798 = vpop.f32.mrf.mxu0
        %v2799 = vadd.f32 0.0, %v2798
        %2800 = vmatmul.bf16.gmra.mxu0 %v2760
        %v2801 = vpop.f32.mrf.mxu0
        %v2802 = vadd.f32 0.0, %v2801
        %v2803 = vpop.f32.mrf.mxu0
        %v2804 = vadd.f32 0.0, %v2803
        %2805 = vmatmul.bf16.gmra.mxu0 %v2763
        %v2806 = vpop.f32.mrf.mxu0
        %v2807 = vadd.f32 0.0, %v2806
        %v2808 = vpop.f32.mrf.mxu0
        %v2809 = vadd.f32 0.0, %v2808
        %2810 = vmatmul.bf16.gmra.mxu0 %v2766
        %v2811 = vpop.f32.mrf.mxu0
        %v2812 = vadd.f32 0.0, %v2811
        %v2813 = vpop.f32.mrf.mxu0
        %v2814 = vadd.f32 0.0, %v2813
        %2815 = vmatmul.bf16.gmra.mxu0 %v2769
        %v2816 = vpop.f32.mrf.mxu0
        %v2817 = vadd.f32 0.0, %v2816
        %v2818 = vpop.f32.mrf.mxu0
        %v2819 = vadd.f32 0.0, %v2818
        %2820 = vmatmul.bf16.gmra.mxu0 %v2772
        %v2821 = vpop.f32.mrf.mxu0
        %v2822 = vadd.f32 0.0, %v2821
        %v2823 = vpop.f32.mrf.mxu0
        %v2824 = vadd.f32 0.0, %v2823
        %2825 = vdwg.mxu0
        %v2826 = vadd.f32 %v2009, %v2787
        %v2827 = vadd.f32 %v2011, %v2789
        %v2828 = vadd.f32 %v2014, %v2792
        %v2829 = vadd.f32 %v2016, %v2794
        %v2830 = vadd.f32 %v2019, %v2797
        %v2831 = vadd.f32 %v2021, %v2799
        %v2832 = vadd.f32 %v2024, %v2802
        %v2833 = vadd.f32 %v2026, %v2804
        %v2834 = vadd.f32 %v2029, %v2807
        %v2835 = vadd.f32 %v2031, %v2809
        %v2836 = vadd.f32 %v2034, %v2812
        %v2837 = vadd.f32 %v2036, %v2814
        %v2838 = vadd.f32 %v2039, %v2817
        %v2839 = vadd.f32 %v2041, %v2819
        %v2840 = vadd.f32 %v2044, %v2822
        %v2841 = vadd.f32 %v2046, %v2824
        %s2842 = scalar_lea.vmem %s5, 192
        %v2843 = vld [vmem:[%s2842] sm:$0xff]
        %v2844 = vld [vmem:[%s2842 + $0x8] sm:$0xff]
        %v2845 = vld [vmem:[%s2842 + $0x10] sm:$0xff]
        %v2846 = vld [vmem:[%s2842 + $0x18] sm:$0xff]
        %v2847 = vld [vmem:[%s2842 + $0x20] sm:$0xff]
        %v2848 = vld [vmem:[%s2842 + $0x28] sm:$0xff]
        %v2849 = vld [vmem:[%s2842 + $0x30] sm:$0xff]
        %v2850 = vld [vmem:[%s2842 + $0x38] sm:$0xff]
        %2851 = vrot.lane.b32.xlu0 %v490, 104
        %v2852 = vpop.permute.xlu0 %2851
        %2853 = vrot.lane.b32.xlu0 %v491, 104
        %v2854 = vpop.permute.xlu0 %2853
        %2855 = vrot.lane.b32.xlu0 %v492, 104
        %v2856 = vpop.permute.xlu0 %2855
        %2857 = vrot.lane.b32.xlu0 %v493, 104
        %v2858 = vpop.permute.xlu0 %2857
        %2859 = vrot.lane.b32.xlu0 %v490, 72
        %v2860 = vpop.permute.xlu0 %2859
        %2861 = vrot.lane.b32.xlu0 %v491, 72
        %v2862 = vpop.permute.xlu0 %2861
        %2863 = vrot.lane.b32.xlu0 %v492, 72
        %v2864 = vpop.permute.xlu0 %2863
        %2865 = vrot.lane.b32.xlu0 %v493, 72
        %v2866 = vpop.permute.xlu0 %2865
        %v2868 = vsel %vm502, %v2852, 0
        %v2871 = vsel %vm502, %v2854, 0
        %v2874 = vsel %vm502, %v2856, 0
        %v2877 = vsel %vm502, %v2858, 0
        %v2880 = vsel %vm502, %v2860, 0
        %v2883 = vsel %vm502, %v2862, 0
        %v2886 = vsel %vm502, %v2864, 0
        %v2889 = vsel %vm502, %v2866, 0
        %2891 = vmatpush.bf16.xpose.msra.mxu0 0
        %2892 = vmatpush.bf16.xpose.msra.mxu0 0
        %2893 = vmatpush.bf16.xpose.msra.mxu0 0
        %2894 = vmatpush.bf16.xpose.msra.mxu0 0
        %2895 = vmatpush.bf16.xpose.msra.mxu0 %v2889
        %2896 = vmatpush.bf16.xpose.msra.mxu0 %v2886
        %2897 = vmatpush.bf16.xpose.msra.mxu0 %v2883
        %2898 = vmatpush.bf16.xpose.msra.mxu0 %v2880
        %2899 = vmatmul.bf16.gmra.mxu0 %v2868
        %v2900 = vpop.f32.mrf.mxu0
        %v2901 = vadd.f32 %v2843, %v2900
        %v2902 = vpop.f32.mrf.mxu0
        %v2903 = vadd.f32 %v2844, %v2902
        %2904 = vmatmul.bf16.gmra.mxu0 %v2871
        %v2905 = vpop.f32.mrf.mxu0
        %v2906 = vadd.f32 %v2845, %v2905
        %v2907 = vpop.f32.mrf.mxu0
        %v2908 = vadd.f32 %v2846, %v2907
        %2909 = vmatmul.bf16.gmra.mxu0 %v2874
        %v2910 = vpop.f32.mrf.mxu0
        %v2911 = vadd.f32 %v2847, %v2910
        %v2912 = vpop.f32.mrf.mxu0
        %v2913 = vadd.f32 %v2848, %v2912
        %2914 = vmatmul.bf16.gmra.mxu0 %v2877
        %v2915 = vpop.f32.mrf.mxu0
        %v2916 = vadd.f32 %v2849, %v2915
        %v2917 = vpop.f32.mrf.mxu0
        %v2918 = vadd.f32 %v2850, %v2917
        %2919 = vdwg.mxu0
        %2920 = vrot.lane.b32.xlu0 %v572, 104
        %v2921 = vpop.permute.xlu0 %2920
        %2922 = vrot.lane.b32.xlu0 %v573, 104
        %v2923 = vpop.permute.xlu0 %2922
        %2924 = vrot.lane.b32.xlu0 %v574, 104
        %v2925 = vpop.permute.xlu0 %2924
        %2926 = vrot.lane.b32.xlu0 %v575, 104
        %v2927 = vpop.permute.xlu0 %2926
        %2928 = vrot.lane.b32.xlu0 %v572, 72
        %v2929 = vpop.permute.xlu0 %2928
        %2930 = vrot.lane.b32.xlu0 %v573, 72
        %v2931 = vpop.permute.xlu0 %2930
        %2932 = vrot.lane.b32.xlu0 %v574, 72
        %v2933 = vpop.permute.xlu0 %2932
        %2934 = vrot.lane.b32.xlu0 %v575, 72
        %v2935 = vpop.permute.xlu0 %2934
        %v2937 = vsel %vm502, %v2921, 0
        %v2940 = vsel %vm502, %v2923, 0
        %v2943 = vsel %vm502, %v2925, 0
        %v2946 = vsel %vm502, %v2927, 0
        %v2949 = vsel %vm502, %v2929, 0
        %v2952 = vsel %vm502, %v2931, 0
        %v2955 = vsel %vm502, %v2933, 0
        %v2958 = vsel %vm502, %v2935, 0
        %2960 = vmatpush.bf16.xpose.msra.mxu0 0
        %2961 = vmatpush.bf16.xpose.msra.mxu0 0
        %2962 = vmatpush.bf16.xpose.msra.mxu0 0
        %2963 = vmatpush.bf16.xpose.msra.mxu0 0
        %2964 = vmatpush.bf16.xpose.msra.mxu0 %v2958
        %2965 = vmatpush.bf16.xpose.msra.mxu0 %v2955
        %2966 = vmatpush.bf16.xpose.msra.mxu0 %v2952
        %2967 = vmatpush.bf16.xpose.msra.mxu0 %v2949
        %2968 = vmatmul.bf16.gmra.mxu0 %v2937
        %v2969 = vpop.f32.mrf.mxu0
        %v2970 = vadd.f32 %v2843, %v2969
        %v2971 = vpop.f32.mrf.mxu0
        %v2972 = vadd.f32 %v2844, %v2971
        %2973 = vmatmul.bf16.gmra.mxu0 %v2940
        %v2974 = vpop.f32.mrf.mxu0
        %v2975 = vadd.f32 %v2845, %v2974
        %v2976 = vpop.f32.mrf.mxu0
        %v2977 = vadd.f32 %v2846, %v2976
        %2978 = vmatmul.bf16.gmra.mxu0 %v2943
        %v2979 = vpop.f32.mrf.mxu0
        %v2980 = vadd.f32 %v2847, %v2979
        %v2981 = vpop.f32.mrf.mxu0
        %v2982 = vadd.f32 %v2848, %v2981
        %2983 = vmatmul.bf16.gmra.mxu0 %v2946
        %v2984 = vpop.f32.mrf.mxu0
        %v2985 = vadd.f32 %v2849, %v2984
        %v2986 = vpop.f32.mrf.mxu0
        %v2987 = vadd.f32 %v2850, %v2986
        %2988 = vdwg.mxu0
        %v2989 = vsel %vm637, %v2901, -inf
        %2990 = vmax.xlane.f32.xlu0 %v2989
        %v2991 = vpop.xlane.xlu0 %2990
        %v2992 = vsel %vm637, %v2903, -inf
        %2993 = vmax.xlane.f32.xlu0 %v2992
        %v2994 = vpop.xlane.xlu0 %2993
        %v2995 = vsel %vm637, %v2906, -inf
        %2996 = vmax.xlane.f32.xlu0 %v2995
        %v2997 = vpop.xlane.xlu0 %2996
        %v2998 = vsel %vm637, %v2908, -inf
        %2999 = vmax.xlane.f32.xlu0 %v2998
        %v3000 = vpop.xlane.xlu0 %2999
        %v3001 = vsel %vm637, %v2911, -inf
        %3002 = vmax.xlane.f32.xlu0 %v3001
        %v3003 = vpop.xlane.xlu0 %3002
        %v3004 = vsel %vm637, %v2913, -inf
        %3005 = vmax.xlane.f32.xlu0 %v3004
        %v3006 = vpop.xlane.xlu0 %3005
        %v3007 = vsel %vm637, %v2916, -inf
        %3008 = vmax.xlane.f32.xlu0 %v3007
        %v3009 = vpop.xlane.xlu0 %3008
        %v3010 = vsel %vm637, %v2918, -inf
        %3011 = vmax.xlane.f32.xlu0 %v3010
        %v3012 = vpop.xlane.xlu0 %3011
        %v3013 = vsel %vm637, %v2970, -inf
        %3014 = vmax.xlane.f32.xlu0 %v3013
        %v3015 = vpop.xlane.xlu0 %3014
        %v3016 = vsel %vm637, %v2972, -inf
        %3017 = vmax.xlane.f32.xlu0 %v3016
        %v3018 = vpop.xlane.xlu0 %3017
        %v3019 = vsel %vm637, %v2975, -inf
        %3020 = vmax.xlane.f32.xlu0 %v3019
        %v3021 = vpop.xlane.xlu0 %3020
        %v3022 = vsel %vm637, %v2977, -inf
        %3023 = vmax.xlane.f32.xlu0 %v3022
        %v3024 = vpop.xlane.xlu0 %3023
        %v3025 = vsel %vm637, %v2980, -inf
        %3026 = vmax.xlane.f32.xlu0 %v3025
        %v3027 = vpop.xlane.xlu0 %3026
        %v3028 = vsel %vm637, %v2982, -inf
        %3029 = vmax.xlane.f32.xlu0 %v3028
        %v3030 = vpop.xlane.xlu0 %3029
        %v3031 = vsel %vm637, %v2985, -inf
        %3032 = vmax.xlane.f32.xlu0 %v3031
        %v3033 = vpop.xlane.xlu0 %3032
        %v3034 = vsel %vm637, %v2987, -inf
        %3035 = vmax.xlane.f32.xlu0 %v3034
        %v3036 = vpop.xlane.xlu0 %3035
        %v3037 = vsub.f32 %v2901, %v2991
        %v3038 = vsub.f32 %v2903, %v2994
        %v3039 = vsub.f32 %v2906, %v2997
        %v3040 = vsub.f32 %v2908, %v3000
        %v3041 = vsub.f32 %v2911, %v3003
        %v3042 = vsub.f32 %v2913, %v3006
        %v3043 = vsub.f32 %v2916, %v3009
        %v3044 = vsub.f32 %v2918, %v3012
        %v3045 = vsub.f32 %v2970, %v3015
        %v3046 = vsub.f32 %v2972, %v3018
        %v3047 = vsub.f32 %v2975, %v3021
        %v3048 = vsub.f32 %v2977, %v3024
        %v3049 = vsub.f32 %v2980, %v3027
        %v3050 = vsub.f32 %v2982, %v3030
        %v3051 = vsub.f32 %v2985, %v3033
        %v3052 = vsub.f32 %v2987, %v3036
        %v3053 = vmul.f32 %v3037, 1.442695
        %v3054 = vpow.pop %v3053
        %v3055 = vmul.f32 %v3038, 1.442695
        %v3056 = vpow.pop %v3055
        %v3057 = vmul.f32 %v3039, 1.442695
        %v3058 = vpow.pop %v3057
        %v3059 = vmul.f32 %v3040, 1.442695
        %v3060 = vpow.pop %v3059
        %v3061 = vmul.f32 %v3041, 1.442695
        %v3062 = vpow.pop %v3061
        %v3063 = vmul.f32 %v3042, 1.442695
        %v3064 = vpow.pop %v3063
        %v3065 = vmul.f32 %v3043, 1.442695
        %v3066 = vpow.pop %v3065
        %v3067 = vmul.f32 %v3044, 1.442695
        %v3068 = vpow.pop %v3067
        %v3069 = vmul.f32 %v3045, 1.442695
        %v3070 = vpow.pop %v3069
        %v3071 = vmul.f32 %v3046, 1.442695
        %v3072 = vpow.pop %v3071
        %v3073 = vmul.f32 %v3047, 1.442695
        %v3074 = vpow.pop %v3073
        %v3075 = vmul.f32 %v3048, 1.442695
        %v3076 = vpow.pop %v3075
        %v3077 = vmul.f32 %v3049, 1.442695
        %v3078 = vpow.pop %v3077
        %v3079 = vmul.f32 %v3050, 1.442695
        %v3080 = vpow.pop %v3079
        %v3081 = vmul.f32 %v3051, 1.442695
        %v3082 = vpow.pop %v3081
        %v3083 = vmul.f32 %v3052, 1.442695
        %v3084 = vpow.pop %v3083
        %v3085 = vsel %vm637, %v3054, 0.0
        %3086 = vadd.xlane.f32.xlu0 %v3085
        %v3087 = vpop.xlane.xlu0 %3086
        %v3088 = vsel %vm637, %v3056, 0.0
        %3089 = vadd.xlane.f32.xlu0 %v3088
        %v3090 = vpop.xlane.xlu0 %3089
        %v3091 = vsel %vm637, %v3058, 0.0
        %3092 = vadd.xlane.f32.xlu0 %v3091
        %v3093 = vpop.xlane.xlu0 %3092
        %v3094 = vsel %vm637, %v3060, 0.0
        %3095 = vadd.xlane.f32.xlu0 %v3094
        %v3096 = vpop.xlane.xlu0 %3095
        %v3097 = vsel %vm637, %v3062, 0.0
        %3098 = vadd.xlane.f32.xlu0 %v3097
        %v3099 = vpop.xlane.xlu0 %3098
        %v3100 = vsel %vm637, %v3064, 0.0
        %3101 = vadd.xlane.f32.xlu0 %v3100
        %v3102 = vpop.xlane.xlu0 %3101
        %v3103 = vsel %vm637, %v3066, 0.0
        %3104 = vadd.xlane.f32.xlu0 %v3103
        %v3105 = vpop.xlane.xlu0 %3104
        %v3106 = vsel %vm637, %v3068, 0.0
        %3107 = vadd.xlane.f32.xlu0 %v3106
        %v3108 = vpop.xlane.xlu0 %3107
        %v3109 = vsel %vm637, %v3070, 0.0
        %3110 = vadd.xlane.f32.xlu0 %v3109
        %v3111 = vpop.xlane.xlu0 %3110
        %v3112 = vsel %vm637, %v3072, 0.0
        %3113 = vadd.xlane.f32.xlu0 %v3112
        %v3114 = vpop.xlane.xlu0 %3113
        %v3115 = vsel %vm637, %v3074, 0.0
        %3116 = vadd.xlane.f32.xlu0 %v3115
        %v3117 = vpop.xlane.xlu0 %3116
        %v3118 = vsel %vm637, %v3076, 0.0
        %3119 = vadd.xlane.f32.xlu0 %v3118
        %v3120 = vpop.xlane.xlu0 %3119
        %v3121 = vsel %vm637, %v3078, 0.0
        %3122 = vadd.xlane.f32.xlu0 %v3121
        %v3123 = vpop.xlane.xlu0 %3122
        %v3124 = vsel %vm637, %v3080, 0.0
        %3125 = vadd.xlane.f32.xlu0 %v3124
        %v3126 = vpop.xlane.xlu0 %3125
        %v3127 = vsel %vm637, %v3082, 0.0
        %3128 = vadd.xlane.f32.xlu0 %v3127
        %v3129 = vpop.xlane.xlu0 %3128
        %v3130 = vsel %vm637, %v3084, 0.0
        %3131 = vadd.xlane.f32.xlu0 %v3130
        %v3132 = vpop.xlane.xlu0 %3131
        %v3133 = vrcp.pop %v3087
        %v3134 = vmul.f32 %v3087, %v3133
        %v3135 = vsub.f32 1.0, %v3134
        %v3136 = vmul.f32 %v3133, %v3135
        %v3137 = vadd.f32 %v3133, %v3136
        %vm3138 = vweird.f32 %v3087
        %vm3139 = vweird.f32 %v3133
        %vm3140 = vmor %vm3138, %vm3139
        %v3141 = vsel %vm3140, %v3133, %v3137
        %v3142 = vand.u32 2147483647, %v3087
        %vm3143 = vcmp.eq.f32.partialorder %v3142, 8.507059e+37
        %v3144 = vand.u32 %v3087, 2147483648
        %v3145 = vor.u32 1.1754944e-38, %v3144
        %v3146 = vsel %vm3143, %v3145, %v3141
        %v3147 = vrcp.pop %v3090
        %v3148 = vmul.f32 %v3090, %v3147
        %v3149 = vsub.f32 1.0, %v3148
        %v3150 = vmul.f32 %v3147, %v3149
        %v3151 = vadd.f32 %v3147, %v3150
        %vm3152 = vweird.f32 %v3090
        %vm3153 = vweird.f32 %v3147
        %vm3154 = vmor %vm3152, %vm3153
        %v3155 = vsel %vm3154, %v3147, %v3151
        %v3156 = vand.u32 2147483647, %v3090
        %vm3157 = vcmp.eq.f32.partialorder %v3156, 8.507059e+37
        %v3158 = vand.u32 %v3090, 2147483648
        %v3159 = vor.u32 1.1754944e-38, %v3158
        %v3160 = vsel %vm3157, %v3159, %v3155
        %v3161 = vrcp.pop %v3093
        %v3162 = vmul.f32 %v3093, %v3161
        %v3163 = vsub.f32 1.0, %v3162
        %v3164 = vmul.f32 %v3161, %v3163
        %v3165 = vadd.f32 %v3161, %v3164
        %vm3166 = vweird.f32 %v3093
        %vm3167 = vweird.f32 %v3161
        %vm3168 = vmor %vm3166, %vm3167
        %v3169 = vsel %vm3168, %v3161, %v3165
        %v3170 = vand.u32 2147483647, %v3093
        %vm3171 = vcmp.eq.f32.partialorder %v3170, 8.507059e+37
        %v3172 = vand.u32 %v3093, 2147483648
        %v3173 = vor.u32 1.1754944e-38, %v3172
        %v3174 = vsel %vm3171, %v3173, %v3169
        %v3175 = vrcp.pop %v3096
        %v3176 = vmul.f32 %v3096, %v3175
        %v3177 = vsub.f32 1.0, %v3176
        %v3178 = vmul.f32 %v3175, %v3177
        %v3179 = vadd.f32 %v3175, %v3178
        %vm3180 = vweird.f32 %v3096
        %vm3181 = vweird.f32 %v3175
        %vm3182 = vmor %vm3180, %vm3181
        %v3183 = vsel %vm3182, %v3175, %v3179
        %v3184 = vand.u32 2147483647, %v3096
        %vm3185 = vcmp.eq.f32.partialorder %v3184, 8.507059e+37
        %v3186 = vand.u32 %v3096, 2147483648
        %v3187 = vor.u32 1.1754944e-38, %v3186
        %v3188 = vsel %vm3185, %v3187, %v3183
        %v3189 = vrcp.pop %v3099
        %v3190 = vmul.f32 %v3099, %v3189
        %v3191 = vsub.f32 1.0, %v3190
        %v3192 = vmul.f32 %v3189, %v3191
        %v3193 = vadd.f32 %v3189, %v3192
        %vm3194 = vweird.f32 %v3099
        %vm3195 = vweird.f32 %v3189
        %vm3196 = vmor %vm3194, %vm3195
        %v3197 = vsel %vm3196, %v3189, %v3193
        %v3198 = vand.u32 2147483647, %v3099
        %vm3199 = vcmp.eq.f32.partialorder %v3198, 8.507059e+37
        %v3200 = vand.u32 %v3099, 2147483648
        %v3201 = vor.u32 1.1754944e-38, %v3200
        %v3202 = vsel %vm3199, %v3201, %v3197
        %v3203 = vrcp.pop %v3102
        %v3204 = vmul.f32 %v3102, %v3203
        %v3205 = vsub.f32 1.0, %v3204
        %v3206 = vmul.f32 %v3203, %v3205
        %v3207 = vadd.f32 %v3203, %v3206
        %vm3208 = vweird.f32 %v3102
        %vm3209 = vweird.f32 %v3203
        %vm3210 = vmor %vm3208, %vm3209
        %v3211 = vsel %vm3210, %v3203, %v3207
        %v3212 = vand.u32 2147483647, %v3102
        %vm3213 = vcmp.eq.f32.partialorder %v3212, 8.507059e+37
        %v3214 = vand.u32 %v3102, 2147483648
        %v3215 = vor.u32 1.1754944e-38, %v3214
        %v3216 = vsel %vm3213, %v3215, %v3211
        %v3217 = vrcp.pop %v3105
        %v3218 = vmul.f32 %v3105, %v3217
        %v3219 = vsub.f32 1.0, %v3218
        %v3220 = vmul.f32 %v3217, %v3219
        %v3221 = vadd.f32 %v3217, %v3220
        %vm3222 = vweird.f32 %v3105
        %vm3223 = vweird.f32 %v3217
        %vm3224 = vmor %vm3222, %vm3223
        %v3225 = vsel %vm3224, %v3217, %v3221
        %v3226 = vand.u32 2147483647, %v3105
        %vm3227 = vcmp.eq.f32.partialorder %v3226, 8.507059e+37
        %v3228 = vand.u32 %v3105, 2147483648
        %v3229 = vor.u32 1.1754944e-38, %v3228
        %v3230 = vsel %vm3227, %v3229, %v3225
        %v3231 = vrcp.pop %v3108
        %v3232 = vmul.f32 %v3108, %v3231
        %v3233 = vsub.f32 1.0, %v3232
        %v3234 = vmul.f32 %v3231, %v3233
        %v3235 = vadd.f32 %v3231, %v3234
        %vm3236 = vweird.f32 %v3108
        %vm3237 = vweird.f32 %v3231
        %vm3238 = vmor %vm3236, %vm3237
        %v3239 = vsel %vm3238, %v3231, %v3235
        %v3240 = vand.u32 2147483647, %v3108
        %vm3241 = vcmp.eq.f32.partialorder %v3240, 8.507059e+37
        %v3242 = vand.u32 %v3108, 2147483648
        %v3243 = vor.u32 1.1754944e-38, %v3242
        %v3244 = vsel %vm3241, %v3243, %v3239
        %v3245 = vrcp.pop %v3111
        %v3246 = vmul.f32 %v3111, %v3245
        %v3247 = vsub.f32 1.0, %v3246
        %v3248 = vmul.f32 %v3245, %v3247
        %v3249 = vadd.f32 %v3245, %v3248
        %vm3250 = vweird.f32 %v3111
        %vm3251 = vweird.f32 %v3245
        %vm3252 = vmor %vm3250, %vm3251
        %v3253 = vsel %vm3252, %v3245, %v3249
        %v3254 = vand.u32 2147483647, %v3111
        %vm3255 = vcmp.eq.f32.partialorder %v3254, 8.507059e+37
        %v3256 = vand.u32 %v3111, 2147483648
        %v3257 = vor.u32 1.1754944e-38, %v3256
        %v3258 = vsel %vm3255, %v3257, %v3253
        %v3259 = vrcp.pop %v3114
        %v3260 = vmul.f32 %v3114, %v3259
        %v3261 = vsub.f32 1.0, %v3260
        %v3262 = vmul.f32 %v3259, %v3261
        %v3263 = vadd.f32 %v3259, %v3262
        %vm3264 = vweird.f32 %v3114
        %vm3265 = vweird.f32 %v3259
        %vm3266 = vmor %vm3264, %vm3265
        %v3267 = vsel %vm3266, %v3259, %v3263
        %v3268 = vand.u32 2147483647, %v3114
        %vm3269 = vcmp.eq.f32.partialorder %v3268, 8.507059e+37
        %v3270 = vand.u32 %v3114, 2147483648
        %v3271 = vor.u32 1.1754944e-38, %v3270
        %v3272 = vsel %vm3269, %v3271, %v3267
        %v3273 = vrcp.pop %v3117
        %v3274 = vmul.f32 %v3117, %v3273
        %v3275 = vsub.f32 1.0, %v3274
        %v3276 = vmul.f32 %v3273, %v3275
        %v3277 = vadd.f32 %v3273, %v3276
        %vm3278 = vweird.f32 %v3117
        %vm3279 = vweird.f32 %v3273
        %vm3280 = vmor %vm3278, %vm3279
        %v3281 = vsel %vm3280, %v3273, %v3277
        %v3282 = vand.u32 2147483647, %v3117
        %vm3283 = vcmp.eq.f32.partialorder %v3282, 8.507059e+37
        %v3284 = vand.u32 %v3117, 2147483648
        %v3285 = vor.u32 1.1754944e-38, %v3284
        %v3286 = vsel %vm3283, %v3285, %v3281
        %v3287 = vrcp.pop %v3120
        %v3288 = vmul.f32 %v3120, %v3287
        %v3289 = vsub.f32 1.0, %v3288
        %v3290 = vmul.f32 %v3287, %v3289
        %v3291 = vadd.f32 %v3287, %v3290
        %vm3292 = vweird.f32 %v3120
        %vm3293 = vweird.f32 %v3287
        %vm3294 = vmor %vm3292, %vm3293
        %v3295 = vsel %vm3294, %v3287, %v3291
        %v3296 = vand.u32 2147483647, %v3120
        %vm3297 = vcmp.eq.f32.partialorder %v3296, 8.507059e+37
        %v3298 = vand.u32 %v3120, 2147483648
        %v3299 = vor.u32 1.1754944e-38, %v3298
        %v3300 = vsel %vm3297, %v3299, %v3295
        %v3301 = vrcp.pop %v3123
        %v3302 = vmul.f32 %v3123, %v3301
        %v3303 = vsub.f32 1.0, %v3302
        %v3304 = vmul.f32 %v3301, %v3303
        %v3305 = vadd.f32 %v3301, %v3304
        %vm3306 = vweird.f32 %v3123
        %vm3307 = vweird.f32 %v3301
        %vm3308 = vmor %vm3306, %vm3307
        %v3309 = vsel %vm3308, %v3301, %v3305
        %v3310 = vand.u32 2147483647, %v3123
        %vm3311 = vcmp.eq.f32.partialorder %v3310, 8.507059e+37
        %v3312 = vand.u32 %v3123, 2147483648
        %v3313 = vor.u32 1.1754944e-38, %v3312
        %v3314 = vsel %vm3311, %v3313, %v3309
        %v3315 = vrcp.pop %v3126
        %v3316 = vmul.f32 %v3126, %v3315
        %v3317 = vsub.f32 1.0, %v3316
        %v3318 = vmul.f32 %v3315, %v3317
        %v3319 = vadd.f32 %v3315, %v3318
        %vm3320 = vweird.f32 %v3126
        %vm3321 = vweird.f32 %v3315
        %vm3322 = vmor %vm3320, %vm3321
        %v3323 = vsel %vm3322, %v3315, %v3319
        %v3324 = vand.u32 2147483647, %v3126
        %vm3325 = vcmp.eq.f32.partialorder %v3324, 8.507059e+37
        %v3326 = vand.u32 %v3126, 2147483648
        %v3327 = vor.u32 1.1754944e-38, %v3326
        %v3328 = vsel %vm3325, %v3327, %v3323
        %v3329 = vrcp.pop %v3129
        %v3330 = vmul.f32 %v3129, %v3329
        %v3331 = vsub.f32 1.0, %v3330
        %v3332 = vmul.f32 %v3329, %v3331
        %v3333 = vadd.f32 %v3329, %v3332
        %vm3334 = vweird.f32 %v3129
        %vm3335 = vweird.f32 %v3329
        %vm3336 = vmor %vm3334, %vm3335
        %v3337 = vsel %vm3336, %v3329, %v3333
        %v3338 = vand.u32 2147483647, %v3129
        %vm3339 = vcmp.eq.f32.partialorder %v3338, 8.507059e+37
        %v3340 = vand.u32 %v3129, 2147483648
        %v3341 = vor.u32 1.1754944e-38, %v3340
        %v3342 = vsel %vm3339, %v3341, %v3337
        %v3343 = vrcp.pop %v3132
        %v3344 = vmul.f32 %v3132, %v3343
        %v3345 = vsub.f32 1.0, %v3344
        %v3346 = vmul.f32 %v3343, %v3345
        %v3347 = vadd.f32 %v3343, %v3346
        %vm3348 = vweird.f32 %v3132
        %vm3349 = vweird.f32 %v3343
        %vm3350 = vmor %vm3348, %vm3349
        %v3351 = vsel %vm3350, %v3343, %v3347
        %v3352 = vand.u32 2147483647, %v3132
        %vm3353 = vcmp.eq.f32.partialorder %v3352, 8.507059e+37
        %v3354 = vand.u32 %v3132, 2147483648
        %v3355 = vor.u32 1.1754944e-38, %v3354
        %v3356 = vsel %vm3353, %v3355, %v3351
        %v3357 = vmul.f32 %v3054, %v3146
        %v3358 = vmul.f32 %v3056, %v3160
        %v3359 = vmul.f32 %v3058, %v3174
        %v3360 = vmul.f32 %v3060, %v3188
        %v3361 = vmul.f32 %v3062, %v3202
        %v3362 = vmul.f32 %v3064, %v3216
        %v3363 = vmul.f32 %v3066, %v3230
        %v3364 = vmul.f32 %v3068, %v3244
        %v3365 = vmul.f32 %v3070, %v3258
        %v3366 = vmul.f32 %v3072, %v3272
        %v3367 = vmul.f32 %v3074, %v3286
        %v3368 = vmul.f32 %v3076, %v3300
        %v3369 = vmul.f32 %v3078, %v3314
        %v3370 = vmul.f32 %v3080, %v3328
        %v3371 = vmul.f32 %v3082, %v3342
        %v3372 = vmul.f32 %v3084, %v3356
        %v3373 = vpack.c.bf16 %v3357, %v3357
        %v3374 = vpack.c.bf16 %v3358, %v3358
        %v3375 = vpack.c.bf16 %v3359, %v3359
        %v3376 = vpack.c.bf16 %v3360, %v3360
        %v3377 = vpack.c.bf16 %v3361, %v3361
        %v3378 = vpack.c.bf16 %v3362, %v3362
        %v3379 = vpack.c.bf16 %v3363, %v3363
        %v3380 = vpack.c.bf16 %v3364, %v3364
        %v3381 = vpack.c.bf16 %v3365, %v3365
        %v3382 = vpack.c.bf16 %v3366, %v3366
        %v3383 = vpack.c.bf16 %v3367, %v3367
        %v3384 = vpack.c.bf16 %v3368, %v3368
        %v3385 = vpack.c.bf16 %v3369, %v3369
        %v3386 = vpack.c.bf16 %v3370, %v3370
        %v3387 = vpack.c.bf16 %v3371, %v3371
        %v3388 = vpack.c.bf16 %v3372, %v3372
        %v3397 = vunpack.c.l.b16 %v3373
        %v3398 = vunpack.c.l.b16 %v3374
        %v3399 = vunpack.c.l.b16 %v3375
        %v3400 = vunpack.c.l.b16 %v3376
        %v3401 = vunpack.c.l.b16 %v3377
        %v3402 = vunpack.c.l.b16 %v3378
        %v3403 = vunpack.c.l.b16 %v3379
        %v3404 = vunpack.c.l.b16 %v3380
        %v3405 = vpack.c.b16 %v3398, %v3397
        %v3406 = vpack.c.b16 %v3400, %v3399
        %v3407 = vpack.c.b16 %v3402, %v3401
        %v3408 = vpack.c.b16 %v3404, %v3403
        %3409 = vrot.lane.b32.xlu0 %v490, 40
        %v3410 = vpop.permute.xlu0 %3409
        %3411 = vrot.lane.b32.xlu0 %v491, 40
        %v3412 = vpop.permute.xlu0 %3411
        %3413 = vrot.lane.b32.xlu0 %v492, 40
        %v3414 = vpop.permute.xlu0 %3413
        %3415 = vrot.lane.b32.xlu0 %v493, 40
        %v3416 = vpop.permute.xlu0 %3415
        %v3422 = vsel %vm637, %v3405, 0
        %v3425 = vsel %vm637, %v3406, 0
        %v3428 = vsel %vm637, %v3407, 0
        %v3431 = vsel %vm637, %v3408, 0
        %3433 = vmatpush.bf16.msra.mxu0 0
        %3434 = vmatpush.bf16.msra.mxu0 0
        %3435 = vmatpush.bf16.msra.mxu0 0
        %3436 = vmatpush.bf16.msra.mxu0 0
        %3437 = vmatpush.bf16.msra.mxu0 %v3416
        %3438 = vmatpush.bf16.msra.mxu0 %v3414
        %3439 = vmatpush.bf16.msra.mxu0 %v3412
        %3440 = vmatpush.bf16.msra.mxu0 %v3410
        %3441 = vmatmul.bf16.gmra.mxu0 %v3422
        %v3442 = vpop.f32.mrf.mxu0
        %v3443 = vadd.f32 0.0, %v3442
        %v3444 = vpop.f32.mrf.mxu0
        %v3445 = vadd.f32 0.0, %v3444
        %3446 = vmatmul.bf16.gmra.mxu0 %v3425
        %v3447 = vpop.f32.mrf.mxu0
        %v3448 = vadd.f32 0.0, %v3447
        %v3449 = vpop.f32.mrf.mxu0
        %v3450 = vadd.f32 0.0, %v3449
        %3451 = vmatmul.bf16.gmra.mxu0 %v3428
        %v3452 = vpop.f32.mrf.mxu0
        %v3453 = vadd.f32 0.0, %v3452
        %v3454 = vpop.f32.mrf.mxu0
        %v3455 = vadd.f32 0.0, %v3454
        %3456 = vmatmul.bf16.gmra.mxu0 %v3431
        %v3457 = vpop.f32.mrf.mxu0
        %v3458 = vadd.f32 0.0, %v3457
        %v3459 = vpop.f32.mrf.mxu0
        %v3460 = vadd.f32 0.0, %v3459
        %3461 = vdwg.mxu0
        %v3470 = vunpack.c.l.b16 %v3381
        %v3471 = vunpack.c.l.b16 %v3382
        %v3472 = vunpack.c.l.b16 %v3383
        %v3473 = vunpack.c.l.b16 %v3384
        %v3474 = vunpack.c.l.b16 %v3385
        %v3475 = vunpack.c.l.b16 %v3386
        %v3476 = vunpack.c.l.b16 %v3387
        %v3477 = vunpack.c.l.b16 %v3388
        %v3478 = vpack.c.b16 %v3471, %v3470
        %v3479 = vpack.c.b16 %v3473, %v3472
        %v3480 = vpack.c.b16 %v3475, %v3474
        %v3481 = vpack.c.b16 %v3477, %v3476
        %3482 = vrot.lane.b32.xlu0 %v572, 40
        %v3483 = vpop.permute.xlu0 %3482
        %3484 = vrot.lane.b32.xlu0 %v573, 40
        %v3485 = vpop.permute.xlu0 %3484
        %3486 = vrot.lane.b32.xlu0 %v574, 40
        %v3487 = vpop.permute.xlu0 %3486
        %3488 = vrot.lane.b32.xlu0 %v575, 40
        %v3489 = vpop.permute.xlu0 %3488
        %v3495 = vsel %vm637, %v3478, 0
        %v3498 = vsel %vm637, %v3479, 0
        %v3501 = vsel %vm637, %v3480, 0
        %v3504 = vsel %vm637, %v3481, 0
        %3506 = vmatpush.bf16.msra.mxu0 0
        %3507 = vmatpush.bf16.msra.mxu0 0
        %3508 = vmatpush.bf16.msra.mxu0 0
        %3509 = vmatpush.bf16.msra.mxu0 0
        %3510 = vmatpush.bf16.msra.mxu0 %v3489
        %3511 = vmatpush.bf16.msra.mxu0 %v3487
        %3512 = vmatpush.bf16.msra.mxu0 %v3485
        %3513 = vmatpush.bf16.msra.mxu0 %v3483
        %3514 = vmatmul.bf16.gmra.mxu0 %v3495
        %v3515 = vpop.f32.mrf.mxu0
        %v3516 = vadd.f32 0.0, %v3515
        %v3517 = vpop.f32.mrf.mxu0
        %v3518 = vadd.f32 0.0, %v3517
        %3519 = vmatmul.bf16.gmra.mxu0 %v3498
        %v3520 = vpop.f32.mrf.mxu0
        %v3521 = vadd.f32 0.0, %v3520
        %v3522 = vpop.f32.mrf.mxu0
        %v3523 = vadd.f32 0.0, %v3522
        %3524 = vmatmul.bf16.gmra.mxu0 %v3501
        %v3525 = vpop.f32.mrf.mxu0
        %v3526 = vadd.f32 0.0, %v3525
        %v3527 = vpop.f32.mrf.mxu0
        %v3528 = vadd.f32 0.0, %v3527
        %3529 = vmatmul.bf16.gmra.mxu0 %v3504
        %v3530 = vpop.f32.mrf.mxu0
        %v3531 = vadd.f32 0.0, %v3530
        %v3532 = vpop.f32.mrf.mxu0
        %v3533 = vadd.f32 0.0, %v3532
        %3534 = vdwg.mxu0
        %v3535 = vpack.c.bf16 %v3445, %v3443
        %v3536 = vpack.c.bf16 %v3450, %v3448
        %v3537 = vpack.c.bf16 %v3455, %v3453
        %v3538 = vpack.c.bf16 %v3460, %v3458
        %v3539 = vpack.c.bf16 %v3518, %v3516
        %v3540 = vpack.c.bf16 %v3523, %v3521
        %v3541 = vpack.c.bf16 %v3528, %v3526
        %v3542 = vpack.c.bf16 %v3533, %v3531
        %v3543 = vld [vmem:[%s3 + $0xc] sm:$0xf]
        %v3545 = vsel %vm502, %v3535, 0
        %v3548 = vsel %vm502, %v3536, 0
        %v3551 = vsel %vm502, %v3537, 0
        %v3554 = vsel %vm502, %v3538, 0
        %v3557 = vsel %vm502, %v3539, 0
        %v3560 = vsel %vm502, %v3540, 0
        %v3563 = vsel %vm502, %v3541, 0
        %v3566 = vsel %vm502, %v3542, 0
        %v3569 = vsel %vm1919, %v3543, 0
        %3571 = vmatpush.bf16.msra.mxu0 0
        %3572 = vmatpush.bf16.msra.mxu0 0
        %3573 = vmatpush.bf16.msra.mxu0 0
        %3574 = vmatpush.bf16.msra.mxu0 0
        %3575 = vmatpush.bf16.msra.mxu0 0
        %3576 = vmatpush.bf16.msra.mxu0 0
        %3577 = vmatpush.bf16.msra.mxu0 0
        %3578 = vmatpush.bf16.msra.mxu0 %v3569
        %3579 = vmatmul.bf16.gmra.mxu0 %v3545
        %v3580 = vpop.f32.mrf.mxu0
        %v3581 = vadd.f32 0.0, %v3580
        %v3582 = vpop.f32.mrf.mxu0
        %v3583 = vadd.f32 0.0, %v3582
        %3584 = vmatmul.bf16.gmra.mxu0 %v3548
        %v3585 = vpop.f32.mrf.mxu0
        %v3586 = vadd.f32 0.0, %v3585
        %v3587 = vpop.f32.mrf.mxu0
        %v3588 = vadd.f32 0.0, %v3587
        %3589 = vmatmul.bf16.gmra.mxu0 %v3551
        %v3590 = vpop.f32.mrf.mxu0
        %v3591 = vadd.f32 0.0, %v3590
        %v3592 = vpop.f32.mrf.mxu0
        %v3593 = vadd.f32 0.0, %v3592
        %3594 = vmatmul.bf16.gmra.mxu0 %v3554
        %v3595 = vpop.f32.mrf.mxu0
        %v3596 = vadd.f32 0.0, %v3595
        %v3597 = vpop.f32.mrf.mxu0
        %v3598 = vadd.f32 0.0, %v3597
        %3599 = vmatmul.bf16.gmra.mxu0 %v3557
        %v3600 = vpop.f32.mrf.mxu0
        %v3601 = vadd.f32 0.0, %v3600
        %v3602 = vpop.f32.mrf.mxu0
        %v3603 = vadd.f32 0.0, %v3602
        %3604 = vmatmul.bf16.gmra.mxu0 %v3560
        %v3605 = vpop.f32.mrf.mxu0
        %v3606 = vadd.f32 0.0, %v3605
        %v3607 = vpop.f32.mrf.mxu0
        %v3608 = vadd.f32 0.0, %v3607
        %3609 = vmatmul.bf16.gmra.mxu0 %v3563
        %v3610 = vpop.f32.mrf.mxu0
        %v3611 = vadd.f32 0.0, %v3610
        %v3612 = vpop.f32.mrf.mxu0
        %v3613 = vadd.f32 0.0, %v3612
        %3614 = vmatmul.bf16.gmra.mxu0 %v3566
        %v3615 = vpop.f32.mrf.mxu0
        %v3616 = vadd.f32 0.0, %v3615
        %v3617 = vpop.f32.mrf.mxu0
        %v3618 = vadd.f32 0.0, %v3617
        %3619 = vdwg.mxu0
        %v3620 = vadd.f32 %v2826, %v3581
        %v3621 = vadd.f32 %v2827, %v3583
        %v3622 = vadd.f32 %v2828, %v3586
        %v3623 = vadd.f32 %v2829, %v3588
        %v3624 = vadd.f32 %v2830, %v3591
        %v3625 = vadd.f32 %v2831, %v3593
        %v3626 = vadd.f32 %v2832, %v3596
        %v3627 = vadd.f32 %v2833, %v3598
        %v3628 = vadd.f32 %v2834, %v3601
        %v3629 = vadd.f32 %v2835, %v3603
        %v3630 = vadd.f32 %v2836, %v3606
        %v3631 = vadd.f32 %v2837, %v3608
        %v3632 = vadd.f32 %v2838, %v3611
        %v3633 = vadd.f32 %v2839, %v3613
        %v3634 = vadd.f32 %v2840, %v3616
        %v3635 = vadd.f32 %v2841, %v3618
        %v3636 = vld [vmem:[%s4] sm:$0x1]
        %v3638 = vperm.slane %v3636, 0
        %v3640 = vadd.f32 %v3620, %v3638
        %v3641 = vadd.f32 %v3621, %v3638
        %v3642 = vadd.f32 %v3622, %v3638
        %v3643 = vadd.f32 %v3623, %v3638
        %v3644 = vadd.f32 %v3624, %v3638
        %v3645 = vadd.f32 %v3625, %v3638
        %v3646 = vadd.f32 %v3626, %v3638
        %v3647 = vadd.f32 %v3627, %v3638
        %v3648 = vadd.f32 %v3628, %v3638
        %v3649 = vadd.f32 %v3629, %v3638
        %v3650 = vadd.f32 %v3630, %v3638
        %v3651 = vadd.f32 %v3631, %v3638
        %v3652 = vadd.f32 %v3632, %v3638
        %v3653 = vadd.f32 %v3633, %v3638
        %v3654 = vadd.f32 %v3634, %v3638
        %v3655 = vadd.f32 %v3635, %v3638
        %3656 = vxpose.xlu0.b32.start [1/16] %v3640, 128
        %3657 = vxpose.xlu0.b32.cont [2/16] %v3648, 128
        %3658 = vxpose.xlu0.b32.cont [3/16] %v3641, 128
        %3659 = vxpose.xlu0.b32.cont [4/16] %v3649, 128
        %3660 = vxpose.xlu0.b32.cont [5/16] %v3642, 128
        %3661 = vxpose.xlu0.b32.cont [6/16] %v3650, 128
        %3662 = vxpose.xlu0.b32.cont [7/16] %v3643, 128
        %3663 = vxpose.xlu0.b32.cont [8/16] %v3651, 128
        %3664 = vxpose.xlu0.b32.cont [9/16] %v3644, 128
        %3665 = vxpose.xlu0.b32.cont [10/16] %v3652, 128
        %3666 = vxpose.xlu0.b32.cont [11/16] %v3645, 128
        %3667 = vxpose.xlu0.b32.cont [12/16] %v3653, 128
        %3668 = vxpose.xlu0.b32.cont [13/16] %v3646, 128
        %3669 = vxpose.xlu0.b32.cont [14/16] %v3654, 128
        %3670 = vxpose.xlu0.b32.cont [15/16] %v3647, 128
        %3671 = vxpose.xlu0.b32.end [16/16] %v3655, 128
        %v3672 = vpop.trf.xlu0
        %v3673 = vpop.trf.xlu0
        %v3674 = vpop.trf.xlu0
        %v3675 = vpop.trf.xlu0
        %v3676 = vpop.trf.xlu0
        %v3677 = vpop.trf.xlu0
        %v3678 = vpop.trf.xlu0
        %v3679 = vpop.trf.xlu0
        %v3680 = vpop.trf.xlu0
        %v3681 = vpop.trf.xlu0
        %v3682 = vpop.trf.xlu0
        %v3683 = vpop.trf.xlu0
        %v3684 = vpop.trf.xlu0
        %v3685 = vpop.trf.xlu0
        %v3686 = vpop.trf.xlu0
        %v3687 = vpop.trf.xlu0
        %3688 = vst [vmem:[%s310] sm:$0xff] %v3672
        %3689 = vst [vmem:[%s310 + $0x8] sm:$0xff] %v3673
        %3690 = vst [vmem:[%s310 + $0x10] sm:$0xff] %v3674
        %3691 = vst [vmem:[%s310 + $0x18] sm:$0xff] %v3675
        %s3692 = sand.u32 %s172, 1
        %s3693 = sand.u32 %s172, 1
        %s3694 = smul.addr %s3693, 32
        %s3695 = scalar_lea.vmem [#allocation3], %s3694
        // Predicated region
        $region83: #{attention_forward.1} parent=77 // pred_check
          %p3696 = pneg %p182
        $region84: #{attention_forward.1} parent=77 // pred_check_branch
          %3698 = sbr.rel (%p3696) target = $region86
        $region85: #{attention_forward.1} parent=77 // pred_region
          %s3699 = smul.addr %s21, 8
          %s3700 = sadd.s32 %s22, %s3699
          %s3701 = smul.addr %s3700, 8
          %s3702 = scalar_lea.vmem %s6, %s3701
          // Predicated region
          $region87: #{attention_forward.1} parent=85 // pred_check
            _
          $region88: #{attention_forward.1} parent=85 // pred_check_branch
            %3704 = sbr.rel (0) target = $region90
          $region89: #{attention_forward.1} parent=85 // pred_region
            // Predicated region
            $region91: #{attention_forward.1} parent=89 // pred_check
              _
            $region92: #{attention_forward.1} parent=89 // pred_check_branch
              %3706 = sbr.rel (0) target = $region94
            $region93: #{attention_forward.1} parent=89 // pred_region
              // Predicated region
              $region106: #{attention_forward.1} parent=93 // pred_check
                _
              $region107: #{attention_forward.1} parent=93 // pred_check_branch
                %3728 = sbr.rel (0) target = $region109
              $region108: #{attention_forward.1} parent=93 // pred_region
                loop: start=0, step=1, limit=1
                $region110: #{attention_forward.1} parent=108 // loop_pre_header
                  _
                $region111: #{attention_forward.1} parent=108 // loop_header
                  %s3730 = sphi 0, %s3734
                  %p3731 = scmp.ge.s32.totalorder %s3730, 1
                  %s3735 = sphi %s3695, %s3695
                  %s3736 = sphi %s3702, %s3702
                $region112: #{attention_forward.1} parent=108 // loop_header_branch
                  %3733 = sbr.rel (%p3731) target = $region116
                $region113: #{attention_forward.1} parent=108 // loop_body
                  %v3737 = vld [vmem:[%s3735] sm:$0xff]
                  %3738 = vst [vmem:[%s3736] sm:$0xff] %v3737
                  %v3739 = vld [vmem:[%s3735 + $0x8] sm:$0xff]
                  %3740 = vst [vmem:[%s3736 + $0x10] sm:$0xff] %v3739
                  %v3741 = vld [vmem:[%s3735 + $0x10] sm:$0xff]
                  %3742 = vst [vmem:[%s3736 + $0x20] sm:$0xff] %v3741
                  %v3743 = vld [vmem:[%s3735 + $0x18] sm:$0xff]
                  %3744 = vst [vmem:[%s3736 + $0x30] sm:$0xff] %v3743
                $region114: #{attention_forward.1} parent=108 // loop_footer
                  %s3734 = sadd.s32 1, %s3730
                $region115: #{attention_forward.1} parent=108 // loop_footer_branch
                  %3729 = sbr.rel target = $region111
                $region116: #{attention_forward.1} parent=108 // loop_exit
                  _
              $region109: #{attention_forward.1} parent=93 // pred_fallthru
                _
              // Predicated region
              $region117: #{attention_forward.1} parent=93 // pred_check
                _
              $region118: #{attention_forward.1} parent=93 // pred_check_branch
                %3746 = sbr.rel target = $region120
              $region119: #{attention_forward.1} parent=93 // pred_region
                _
              $region120: #{attention_forward.1} parent=93 // pred_fallthru
                _
            $region94: #{attention_forward.1} parent=89 // pred_fallthru
              _
            // Predicated region
            $region95: #{attention_forward.1} parent=89 // pred_check
              _
            $region96: #{attention_forward.1} parent=89 // pred_check_branch
              %3708 = sbr.rel target = $region98
            $region97: #{attention_forward.1} parent=89 // pred_region
              %s3710 = ssub.s32 256, 1
              loop: start=0, step=1, limit=1
              $region99: #{attention_forward.1} parent=97 // loop_pre_header
                _
              $region100: #{attention_forward.1} parent=97 // loop_header
                %s3712 = sphi 0, %s3716
                %p3713 = scmp.ge.s32.totalorder %s3712, 1
                %s3717 = sphi %s3695, %s3695
                %s3718 = sphi %s3702, %s3702
              $region101: #{attention_forward.1} parent=97 // loop_header_branch
                %3715 = sbr.rel (%p3713) target = $region105
              $region102: #{attention_forward.1} parent=97 // loop_body
                %v3719 = vld [vmem:[%s3717] sm:%s3710]
                %3720 = vst [vmem:[%s3718] sm:%s3710] %v3719
                %v3721 = vld [vmem:[%s3717 + $0x8] sm:%s3710]
                %3722 = vst [vmem:[%s3718 + $0x10] sm:%s3710] %v3721
                %v3723 = vld [vmem:[%s3717 + $0x10] sm:%s3710]
                %3724 = vst [vmem:[%s3718 + $0x20] sm:%s3710] %v3723
                %v3725 = vld [vmem:[%s3717 + $0x18] sm:%s3710]
                %3726 = vst [vmem:[%s3718 + $0x30] sm:%s3710] %v3725
              $region103: #{attention_forward.1} parent=97 // loop_footer
                %s3716 = sadd.s32 1, %s3712
              $region104: #{attention_forward.1} parent=97 // loop_footer_branch
                %3711 = sbr.rel target = $region100
              $region105: #{attention_forward.1} parent=97 // loop_exit
                _
            $region98: #{attention_forward.1} parent=89 // pred_fallthru
              _
          $region90: #{attention_forward.1} parent=85 // pred_fallthru
            _
          %3747 = vnop
        $region86: #{attention_forward.1} parent=77 // pred_fallthru
          _
      $region78: #{attention_forward.1} parent=5 // pred_fallthru
        _
      %p3748 = scmp.le.s32.totalorder 2, %s12
      // Predicated region
      $region121: #{attention_forward.1} parent=5 // pred_check
        %p3749 = pneg %p3748
      $region122: #{attention_forward.1} parent=5 // pred_check_branch
        %3751 = sbr.rel (%p3749) target = $region124
      $region123: #{attention_forward.1} parent=5 // pred_region
        %s3752 = ssub.s32 %s12, 2
        // Predicated region
        $region125: #{attention_forward.1} parent=123 // pred_check
          %p3753 = pneg %p188
        $region126: #{attention_forward.1} parent=123 // pred_check_branch
          %3755 = sbr.rel (%p3753) target = $region128
        $region127: #{attention_forward.1} parent=123 // pred_region
          %s3756 = sand.u32 %s173, 1
          %s3757 = sand.u32 %s173, 1
          %s3758 = smul.addr %s3757, 32
          %s3759 = scalar_lea.vmem [#allocation3], %s3758
        $region128: #{attention_forward.1} parent=123 // pred_fallthru
          _
      $region124: #{attention_forward.1} parent=5 // pred_fallthru
        _
    $region6: #{attention_forward.1} parent=1 // loop_footer
      %s16 = sadd.s32 1, %s12
    $region7: #{attention_forward.1} parent=1 // loop_footer_branch
      %11 = sbr.rel target = $region3
    $region8: #{attention_forward.1} parent=1 // loop_exit
      _

</llo_original>
